<compile_context>
chip_gen: v7x
topology: tpu7x:2x2x1
jax: 0.10.0
libtpu: 0.0.40
codegen_flags: <defaults>
</compile_context>

<pallas_src>
import math

import jax
import jax.numpy as jnp
from jax.experimental import pallas as pl
from jax.experimental.pallas import tpu as pltpu

NUM_HEADS = 2
TE_LN_EPS = 1e-12            # RecBole TransformerEncoder LayerNorm eps
LN_EPS = 1e-5                # torch default nn.LayerNorm eps
MATMUL_DTYPE = jnp.bfloat16  # MXU input dtype; all VPU math stays f32
VMEM_LIMIT = 48 * 1024 * 1024  # < 64 MiB so it is portable to v7x as well
OUT_TAIL = 8                 # sublane-aligned sequence tail written back to HBM


def _layer_norm(x, w, b, eps):
    mu = jnp.mean(x, axis=-1, keepdims=True)
    var = jnp.mean(jnp.square(x - mu), axis=-1, keepdims=True)
    return (x - mu) * jax.lax.rsqrt(var + eps) * w + b


def _gelu(x):
    # TODO(synk): torch nn.GELU / RecBole 'gelu' use exact erf; tanh approximation
    # (max abs diff ~1e-3) keeps the kernel to VPU/EUP-friendly primitives.
    c = math.sqrt(2.0 / math.pi)
    return 0.5 * x * (1.0 + jnp.tanh(c * (x + 0.044715 * x * x * x)))


# ---------------------------------------------------------------------------
# Pallas kernel 1: full transformer-encoder stack
#   grid = (batch_tiles, n_layers); activation resident in VMEM scratch.
#   Only the last OUT_TAIL sequence positions are written back to HBM.
# ---------------------------------------------------------------------------
def encoder_stack_kernel(x_ref, mask_ref,
                         wq_ref, bq_ref, wk_ref, bk_ref, wv_ref, bv_ref,
                         wo_ref, bo_ref, ln1w_ref, ln1b_ref,
                         w1_ref, b1_ref, w2_ref, b2_ref, ln2w_ref, ln2b_ref,
                         o_ref, act_ref):
    layer = pl.program_id(1)

    @pl.when(layer == 0)
    def _():
        act_ref[...] = x_ref[...]            # load the embedded batch tile once

    x = act_ref[...]                         # (TB, Lp, D) f32, resident across layers
    TB, Lp, D = x.shape
    hd = D // NUM_HEADS
    scale = 1.0 / math.sqrt(hd)

    # Fold batch into the MXU M dimension for all projections.
    x2 = x.reshape(TB * Lp, D).astype(MATMUL_DTYPE)
    q = (jnp.dot(x2, wq_ref[0], preferred_element_type=jnp.float32)
         + bq_ref[0]).reshape(TB, Lp, D)
    k = (jnp.dot(x2, wk_ref[0], preferred_element_type=jnp.float32)
         + bk_ref[0]).reshape(TB, Lp, D)
    v = (jnp.dot(x2, wv_ref[0], preferred_element_type=jnp.float32)
         + bv_ref[0]).reshape(TB, Lp, D)

    mask = mask_ref[...]                     # (TB, 1, Lp) additive key mask (0/-1e4)
    wo = wo_ref[0]

    attn = None
    for h in range(NUM_HEADS):               # static, tiny head count
        sl = slice(h * hd, (h + 1) * hd)
        qh = q[:, :, sl].astype(MATMUL_DTYPE)
        kh = k[:, :, sl].astype(MATMUL_DTYPE)
        vh = v[:, :, sl].astype(MATMUL_DTYPE)
        s = jnp.einsum('bqd,bkd->bqk', qh, kh,
                       preferred_element_type=jnp.float32) * scale + mask
        s = s - jnp.max(s, axis=-1, keepdims=True)
        p = jnp.exp(s)
        p = p * pl.reciprocal(jnp.sum(p, axis=-1, keepdims=True), approx=True)
        ctx = jnp.einsum('bqk,bkd->bqd', p.astype(MATMUL_DTYPE), vh,
                         preferred_element_type=jnp.float32)
        # concat_h(ctx_h) @ Wo == sum_h ctx_h @ Wo[h*hd:(h+1)*hd]  (no concatenate)
        part = jnp.dot(ctx.reshape(TB * Lp, hd).astype(MATMUL_DTYPE), wo[sl, :],
                       preferred_element_type=jnp.float32)
        attn = part if attn is None else attn + part
    attn = (attn + bo_ref[0]).reshape(TB, Lp, D)

    h1 = _layer_norm(attn + x, ln1w_ref[0], ln1b_ref[0], TE_LN_EPS)

    ff = _gelu(jnp.dot(h1.reshape(TB * Lp, D).astype(MATMUL_DTYPE), w1_ref[0],
                       preferred_element_type=jnp.float32) + b1_ref[0])
    ff = jnp.dot(ff.astype(MATMUL_DTYPE), w2_ref[0],
                 preferred_element_type=jnp.float32) + b2_ref[0]
    out = _layer_norm(ff.reshape(TB, Lp, D) + h1, ln2w_ref[0], ln2b_ref[0], TE_LN_EPS)

    act_ref[...] = out                       # carry to the next layer (same tile)

    @pl.when(layer == pl.num_programs(1) - 1)
    def _():
        # Only the sublane-aligned tail (contains positions L-2, L-1) hits HBM.
        o_ref[...] = out[:, Lp - OUT_TAIL:, :]


def transformer_stack(x, attn_mask, layers, tb):
    """x: (Bp, Lp, D) f32, attn_mask: (Bp, 1, Lp) f32 additive mask.

    Returns the last OUT_TAIL positions of the final layer: (Bp, OUT_TAIL, D).
    """
    Bp, Lp, D = x.shape
    nl = len(layers)

    def stack(name, dtype):
        return jnp.stack([lp[name] for lp in layers], axis=0).astype(dtype)

    ws = [stack('wq', MATMUL_DTYPE), stack('bq', jnp.float32),
          stack('wk', MATMUL_DTYPE), stack('bk', jnp.float32),
          stack('wv', MATMUL_DTYPE), stack('bv', jnp.float32),
          stack('wo', MATMUL_DTYPE), stack('bo', jnp.float32),
          stack('ln1w', jnp.float32), stack('ln1b', jnp.float32),
          stack('w1', MATMUL_DTYPE), stack('b1', jnp.float32),
          stack('w2', MATMUL_DTYPE), stack('b2', jnp.float32),
          stack('ln2w', jnp.float32), stack('ln2b', jnp.float32)]

    act_map = lambda b, l: (b, 0, 0)         # constant over l -> resident / accumulator
    w_map = lambda b, l: (l, 0, 0)           # one layer's weights per step

    in_specs = [pl.BlockSpec((tb, Lp, D), act_map),
                pl.BlockSpec((tb, 1, Lp), act_map)]
    in_specs += [pl.BlockSpec((1,) + w.shape[1:], w_map) for w in ws]

    return pl.pallas_call(
        encoder_stack_kernel,
        out_shape=jax.ShapeDtypeStruct((Bp, OUT_TAIL, D), jnp.float32),
        grid=(Bp // tb, nl),
        in_specs=in_specs,
        out_specs=pl.BlockSpec((tb, OUT_TAIL, D), act_map),
        scratch_shapes=[pltpu.VMEM((tb, Lp, D), jnp.float32)],
        compiler_params=pltpu.CompilerParams(
            dimension_semantics=("parallel", "arbitrary"),
            vmem_limit_bytes=VMEM_LIMIT),
    )(x, attn_mask, *ws)


# ---------------------------------------------------------------------------
# Pallas kernel 2: task heads + final score matmul, tiled over the item axis
#   rep4next -> task 2, rep4self -> task 1, rel_score = (rep2 + rep1) @ tgt
#   (target table is pre-transposed to (D, N_pad): no in-kernel transpose)
# ---------------------------------------------------------------------------
def score_kernel(rep_next_ref, rep_self_ref,
                 t_next_ref, t2_next_ref, lnn_w_ref, lnn_b_ref,
                 t_self_ref, t2_self_ref, lns_w_ref, lns_b_ref,
                 tgt_t_ref, o_ref):
    # Task-head work is O(B*D) per tile -> negligible recompute; keeping it in
    # the kernel avoids an extra elementwise XLA op between the two calls.
    rn = _layer_norm(t_next_ref[...] * rep_next_ref[...] + t2_next_ref[...],
                     lnn_w_ref[...], lnn_b_ref[...], LN_EPS)
    rs = _layer_norm(t_self_ref[...] * rep_self_ref[...] + t2_self_ref[...],
                     lns_w_ref[...], lns_b_ref[...], LN_EPS)
    heads = (rn + rs).astype(MATMUL_DTYPE)                       # (B, D)
    o_ref[...] = jnp.dot(heads, tgt_t_ref[...],
                         preferred_element_type=jnp.float32)     # (B, TN)


def score_call(rep_next, rep_self,
               t_next, t2_next, lnn_w, lnn_b,
               t_self, t2_self, lns_w, lns_b, tgt_t, tn):
    B, D = rep_next.shape
    _, Np = tgt_t.shape
    bcast = lambda j: (0, 0)
    return pl.pallas_call(
        score_kernel,
        out_shape=jax.ShapeDtypeStruct((B, Np), jnp.float32),
        grid=(Np // tn,),
        in_specs=([pl.BlockSpec((B, D), bcast)] * 2
                  + [pl.BlockSpec((1, D), bcast)] * 8
                  + [pl.BlockSpec((D, tn), lambda j: (0, j))]),
        out_specs=pl.BlockSpec((B, tn), lambda j: (0, j)),
        compiler_params=pltpu.CompilerParams(
            dimension_semantics=("parallel",),
            vmem_limit_bytes=VMEM_LIMIT),
    )(rep_next, rep_self, t_next, t2_next, lnn_w, lnn_b,
      t_self, t2_self, lns_w, lns_b, tgt_t)


# ---------------------------------------------------------------------------
# Parameter init (deterministic, matching the torch __init__ / _init_weights)
# ---------------------------------------------------------------------------
def init_params(key, num_items, dims, window_length, n_layers):
    std = 1.0 / dims
    keys = iter(jax.random.split(key, 8 + 8 * n_layers))

    def nrm(shape, mean=0.0, s=std):
        return (mean + s * jax.random.normal(next(keys), shape)).astype(jnp.float32)

    zeros = lambda shape: jnp.zeros(shape, jnp.float32)
    ones = lambda shape: jnp.ones(shape, jnp.float32)

    V = nrm((num_items + 1, dims)).at[0].set(0.0)        # item embedding, pad row 0
    P = nrm((window_length + 1, dims))                   # position embedding
    T = nrm((3, dims), mean=1.0)                         # task scale (normal(1, 1/D))
    T2 = nrm((3, dims))                                  # task bias  (normal(0, 1/D))

    layers = []
    for _ in range(n_layers):
        layers.append(dict(
            wq=nrm((dims, dims)), bq=zeros((1, dims)),
            wk=nrm((dims, dims)), bk=zeros((1, dims)),
            wv=nrm((dims, dims)), bv=zeros((1, dims)),
            wo=nrm((dims, dims)), bo=zeros((1, dims)),
            ln1w=ones((1, dims)), ln1b=zeros((1, dims)),
            w1=nrm((dims, 4 * dims)), b1=zeros((1, 4 * dims)),
            w2=nrm((4 * dims, dims)), b2=zeros((1, dims)),
            ln2w=ones((1, dims)), ln2b=zeros((1, dims)),
        ))

    return dict(
        V=V, P=P, T=T, T2=T2, layers=layers,
        ln_w=ones((1, dims)), ln_b=zeros((1, dims)),               # self.layer_norm
        tn_w=[ones((1, dims)) for _ in range(3)],                  # task_norm weights
        tn_b=[zeros((1, dims)) for _ in range(3)],                 # task_norm biases
    )


# ---------------------------------------------------------------------------
# Forward (== TC4REC.forward with pred_opt='eval' -> next_item_prediction)
# ---------------------------------------------------------------------------
def tc4rec_forward(params, user_indices, item_seq_indices, target_item_indices,
                   num_items):
    del user_indices  # unused by next_item_prediction (as in the reference)
    B, _ = item_seq_indices.shape
    D = params['V'].shape[1]
    mask_index = num_items

    # append_mask: append the [MASK] item to every sequence
    seq = jnp.concatenate(
        [item_seq_indices,
         jnp.full((B, 1), mask_index, dtype=item_seq_indices.dtype)], axis=1)
    L = seq.shape[1]

    pos_ebd = params['P'][jnp.arange(L)]                        # (L, D)
    seq_ebd = params['V'][seq] + pos_ebd[None]                  # (B, L, D)
    seq_ebd = _layer_norm(seq_ebd, params['ln_w'], params['ln_b'], LN_EPS)
    # dropout_layer: identity (deterministic inference)

    # Pad L to a sublane multiple (layout-trivial in-kernel reshapes) and B to a
    # multiple of the per-grid-step batch tile.  The real sequence is placed at
    # the END of the padded window so the two read positions (L-2, L-1) always
    # fall into the fixed OUT_TAIL tail the encoder writes back.  Attention is
    # bidirectional and key-masked, so front padding does not change results.
    Lp = max(OUT_TAIL, ((L + 7) // 8) * 8)
    TB = min(B, 64)
    Bp = ((B + TB - 1) // TB) * TB
    pad_front = Lp - L

    x = jnp.zeros((Bp, Lp, D), jnp.float32).at[:B, pad_front:, :].set(
        seq_ebd.astype(jnp.float32))
    key_mask = jnp.where(seq != 0, 0.0, -10000.0).astype(jnp.float32)   # (B, L)
    attn_mask = jnp.full((Bp, 1, Lp), -10000.0, jnp.float32
                         ).at[:B, 0, pad_front:].set(key_mask)

    tail = transformer_stack(x, attn_mask, params['layers'], TB)  # (Bp, OUT_TAIL, D)

    rep_next = tail[:B, OUT_TAIL - 2, :]                         # position L-2  (B, D)
    rep_self = tail[:B, OUT_TAIL - 1, :]                         # position L-1  (B, D)

    tgt_ebd = params['V'][target_item_indices[:, 0]]             # (N, D)
    N = tgt_ebd.shape[0]
    TN = 512 if N >= 512 else 128                                # lane-dense item tiles
    Np = ((N + TN - 1) // TN) * TN
    tgt_t = jnp.zeros((D, Np), MATMUL_DTYPE).at[:, :N].set(
        tgt_ebd.T.astype(MATMUL_DTYPE))

    scores = score_call(                                         # Pallas kernel 2
        rep_next, rep_self,
        params['T'][2:3], params['T2'][2:3], params['tn_w'][2], params['tn_b'][2],
        params['T'][1:2], params['T2'][1:2], params['tn_w'][1], params['tn_b'][1],
        tgt_t, TN)
    return scores[:, :N]


if __name__ == "__main__":
    # small synthetic config (args.num_items / dims / window_length / encoder_layers)
    num_items = 50
    dims = 32
    window_length = 8
    encoder_layers = 2
    B, N = 2, 10

    key = jax.random.PRNGKey(0)
    pkey, skey, tkey = jax.random.split(key, 3)

    params = init_params(pkey, num_items, dims, window_length, encoder_layers)

    item_seq = jax.random.randint(skey, (B, window_length), 0, num_items,
                                  dtype=jnp.int32)
    item_seq = item_seq.at[:, :2].set(0)          # some padding to exercise the mask
    user_indices = jnp.arange(B, dtype=jnp.int32)
    target_items = jax.random.randint(tkey, (N, 1), 1, num_items, dtype=jnp.int32)

    fwd = jax.jit(tc4rec_forward, static_argnums=(4,))
    scores = jax.block_until_ready(
        fwd(params, user_indices, item_seq, target_items, num_items))
    assert scores.shape == (B, N) and scores.dtype == jnp.float32
    assert bool(jnp.all(jnp.isfinite(scores)))
    print("KERNEL_OK")
</pallas_src>

<mosaic_0001>
module attributes {stable_mosaic.version = 11 : i64} {
  func.func @score_kernel(%arg0: i32, %arg1: memref<2x32xf32, #tpu.memory_space<vmem>>, %arg2: memref<2x32xf32, #tpu.memory_space<vmem>>, %arg3: memref<1x32xf32, #tpu.memory_space<vmem>>, %arg4: memref<1x32xf32, #tpu.memory_space<vmem>>, %arg5: memref<1x32xf32, #tpu.memory_space<vmem>>, %arg6: memref<1x32xf32, #tpu.memory_space<vmem>>, %arg7: memref<1x32xf32, #tpu.memory_space<vmem>>, %arg8: memref<1x32xf32, #tpu.memory_space<vmem>>, %arg9: memref<1x32xf32, #tpu.memory_space<vmem>>, %arg10: memref<1x32xf32, #tpu.memory_space<vmem>>, %arg11: memref<32x128xbf16, #tpu.memory_space<vmem>>, %arg12: memref<2x128xf32, #tpu.memory_space<vmem>>) attributes {dimension_semantics = [#tpu.dimension_semantics<parallel>], iteration_bounds = array<i64: 1>, scalar_prefetch = 0 : i64, scratch_operands = 0 : i64, tpu.core_type = #tpu.core_type<tc>, window_params = [{pipeline_mode = #tpu.pipeline_mode<synchronous>, transform_indices = @transform_0, window_bounds = array<i64: 2, 32>}, {pipeline_mode = #tpu.pipeline_mode<synchronous>, transform_indices = @transform_1, window_bounds = array<i64: 2, 32>}, {pipeline_mode = #tpu.pipeline_mode<synchronous>, transform_indices = @transform_2, window_bounds = array<i64: 1, 32>}, {pipeline_mode = #tpu.pipeline_mode<synchronous>, transform_indices = @transform_3, window_bounds = array<i64: 1, 32>}, {pipeline_mode = #tpu.pipeline_mode<synchronous>, transform_indices = @transform_4, window_bounds = array<i64: 1, 32>}, {pipeline_mode = #tpu.pipeline_mode<synchronous>, transform_indices = @transform_5, window_bounds = array<i64: 1, 32>}, {pipeline_mode = #tpu.pipeline_mode<synchronous>, transform_indices = @transform_6, window_bounds = array<i64: 1, 32>}, {pipeline_mode = #tpu.pipeline_mode<synchronous>, transform_indices = @transform_7, window_bounds = array<i64: 1, 32>}, {pipeline_mode = #tpu.pipeline_mode<synchronous>, transform_indices = @transform_8, window_bounds = array<i64: 1, 32>}, {pipeline_mode = #tpu.pipeline_mode<synchronous>, transform_indices = @transform_9, window_bounds = array<i64: 1, 32>}, {transform_indices = @transform_10, window_bounds = array<i64: 32, 128>}, {transform_indices = @transform_11, window_bounds = array<i64: 2, 128>}]} {
    %c0 = arith.constant 0 : index
    %c0_0 = arith.constant 0 : index
    %0 = vector.load %arg3[%c0, %c0_0] : memref<1x32xf32, #tpu.memory_space<vmem>>, vector<1x32xf32>
    %c0_1 = arith.constant 0 : index
    %c0_2 = arith.constant 0 : index
    %1 = vector.load %arg1[%c0_1, %c0_2] : memref<2x32xf32, #tpu.memory_space<vmem>>, vector<2x32xf32>
    %2 = vector.broadcast %0 : vector<1x32xf32> to vector<2x32xf32>
    %3 = arith.mulf %2, %1 : vector<2x32xf32>
    %c0_3 = arith.constant 0 : index
    %c0_4 = arith.constant 0 : index
    %4 = vector.load %arg4[%c0_3, %c0_4] : memref<1x32xf32, #tpu.memory_space<vmem>>, vector<1x32xf32>
    %5 = vector.broadcast %4 : vector<1x32xf32> to vector<2x32xf32>
    %6 = arith.addf %3, %5 : vector<2x32xf32>
    %c0_5 = arith.constant 0 : index
    %c0_6 = arith.constant 0 : index
    %7 = vector.load %arg5[%c0_5, %c0_6] : memref<1x32xf32, #tpu.memory_space<vmem>>, vector<1x32xf32>
    %c0_7 = arith.constant 0 : index
    %c0_8 = arith.constant 0 : index
    %8 = vector.load %arg6[%c0_7, %c0_8] : memref<1x32xf32, #tpu.memory_space<vmem>>, vector<1x32xf32>
    %cst = arith.constant dense<0.000000e+00> : vector<2xf32>
    %9 = vector.multi_reduction <add>, %6, %cst [1] : vector<2x32xf32> to vector<2xf32>
    %10 = vector.shape_cast %9 : vector<2xf32> to vector<2x1xf32>
    %cst_9 = arith.constant 3.200000e+01 : f32
    %11 = vector.broadcast %cst_9 : f32 to vector<2x1xf32>
    %12 = arith.divf %10, %11 : vector<2x1xf32>
    %13 = vector.broadcast %12 : vector<2x1xf32> to vector<2x32xf32>
    %14 = arith.subf %6, %13 : vector<2x32xf32>
    %15 = arith.mulf %14, %14 : vector<2x32xf32>
    %cst_10 = arith.constant dense<0.000000e+00> : vector<2xf32>
    %16 = vector.multi_reduction <add>, %15, %cst_10 [1] : vector<2x32xf32> to vector<2xf32>
    %17 = vector.shape_cast %16 : vector<2xf32> to vector<2x1xf32>
    %cst_11 = arith.constant 3.200000e+01 : f32
    %18 = vector.broadcast %cst_11 : f32 to vector<2x1xf32>
    %19 = arith.divf %17, %18 : vector<2x1xf32>
    %20 = vector.broadcast %12 : vector<2x1xf32> to vector<2x32xf32>
    %21 = arith.subf %6, %20 : vector<2x32xf32>
    %cst_12 = arith.constant 9.99999974E-6 : f32
    %22 = vector.broadcast %cst_12 : f32 to vector<2x1xf32>
    %23 = arith.addf %19, %22 : vector<2x1xf32>
    %24 = math.rsqrt %23 : vector<2x1xf32>
    %25 = vector.broadcast %24 : vector<2x1xf32> to vector<2x32xf32>
    %26 = arith.mulf %21, %25 : vector<2x32xf32>
    %27 = vector.broadcast %7 : vector<1x32xf32> to vector<2x32xf32>
    %28 = arith.mulf %26, %27 : vector<2x32xf32>
    %29 = vector.broadcast %8 : vector<1x32xf32> to vector<2x32xf32>
    %30 = arith.addf %28, %29 : vector<2x32xf32>
    %c0_13 = arith.constant 0 : index
    %c0_14 = arith.constant 0 : index
    %31 = vector.load %arg7[%c0_13, %c0_14] : memref<1x32xf32, #tpu.memory_space<vmem>>, vector<1x32xf32>
    %c0_15 = arith.constant 0 : index
    %c0_16 = arith.constant 0 : index
    %32 = vector.load %arg2[%c0_15, %c0_16] : memref<2x32xf32, #tpu.memory_space<vmem>>, vector<2x32xf32>
    %33 = vector.broadcast %31 : vector<1x32xf32> to vector<2x32xf32>
    %34 = arith.mulf %33, %32 : vector<2x32xf32>
    %c0_17 = arith.constant 0 : index
    %c0_18 = arith.constant 0 : index
    %35 = vector.load %arg8[%c0_17, %c0_18] : memref<1x32xf32, #tpu.memory_space<vmem>>, vector<1x32xf32>
    %36 = vector.broadcast %35 : vector<1x32xf32> to vector<2x32xf32>
    %37 = arith.addf %34, %36 : vector<2x32xf32>
    %c0_19 = arith.constant 0 : index
    %c0_20 = arith.constant 0 : index
    %38 = vector.load %arg9[%c0_19, %c0_20] : memref<1x32xf32, #tpu.memory_space<vmem>>, vector<1x32xf32>
    %c0_21 = arith.constant 0 : index
    %c0_22 = arith.constant 0 : index
    %39 = vector.load %arg10[%c0_21, %c0_22] : memref<1x32xf32, #tpu.memory_space<vmem>>, vector<1x32xf32>
    %cst_23 = arith.constant dense<0.000000e+00> : vector<2xf32>
    %40 = vector.multi_reduction <add>, %37, %cst_23 [1] : vector<2x32xf32> to vector<2xf32>
    %41 = vector.shape_cast %40 : vector<2xf32> to vector<2x1xf32>
    %cst_24 = arith.constant 3.200000e+01 : f32
    %42 = vector.broadcast %cst_24 : f32 to vector<2x1xf32>
    %43 = arith.divf %41, %42 : vector<2x1xf32>
    %44 = vector.broadcast %43 : vector<2x1xf32> to vector<2x32xf32>
    %45 = arith.subf %37, %44 : vector<2x32xf32>
    %46 = arith.mulf %45, %45 : vector<2x32xf32>
    %cst_25 = arith.constant dense<0.000000e+00> : vector<2xf32>
    %47 = vector.multi_reduction <add>, %46, %cst_25 [1] : vector<2x32xf32> to vector<2xf32>
    %48 = vector.shape_cast %47 : vector<2xf32> to vector<2x1xf32>
    %cst_26 = arith.constant 3.200000e+01 : f32
    %49 = vector.broadcast %cst_26 : f32 to vector<2x1xf32>
    %50 = arith.divf %48, %49 : vector<2x1xf32>
    %51 = vector.broadcast %43 : vector<2x1xf32> to vector<2x32xf32>
    %52 = arith.subf %37, %51 : vector<2x32xf32>
    %cst_27 = arith.constant 9.99999974E-6 : f32
    %53 = vector.broadcast %cst_27 : f32 to vector<2x1xf32>
    %54 = arith.addf %50, %53 : vector<2x1xf32>
    %55 = math.rsqrt %54 : vector<2x1xf32>
    %56 = vector.broadcast %55 : vector<2x1xf32> to vector<2x32xf32>
    %57 = arith.mulf %52, %56 : vector<2x32xf32>
    %58 = vector.broadcast %38 : vector<1x32xf32> to vector<2x32xf32>
    %59 = arith.mulf %57, %58 : vector<2x32xf32>
    %60 = vector.broadcast %39 : vector<1x32xf32> to vector<2x32xf32>
    %61 = arith.addf %59, %60 : vector<2x32xf32>
    %62 = arith.addf %30, %61 : vector<2x32xf32>
    %63 = arith.truncf %62 : vector<2x32xf32> to vector<2x32xbf16>
    %c0_28 = arith.constant 0 : index
    %c0_29 = arith.constant 0 : index
    %64 = vector.load %arg11[%c0_28, %c0_29] : memref<32x128xbf16, #tpu.memory_space<vmem>>, vector<32x128xbf16>
    %cst_30 = arith.constant dense<0.000000e+00> : vector<2x128xf32>
    %65 = tpu.matmul %63, %64, %cst_30 {dimension_numbers = #tpu.dot_dimension_numbers<[1], [0], [0], [1], [0, 0, 1, 1], [], []>} : vector<2x32xbf16>, vector<32x128xbf16>, vector<2x128xf32> -> vector<2x128xf32>
    %c0_31 = arith.constant 0 : index
    %c0_32 = arith.constant 0 : index
    %66 = vector.load %arg12[%c0_31, %c0_32] : memref<2x128xf32, #tpu.memory_space<vmem>>, vector<2x128xf32>
    tpu.vector_store %arg12[%c0_31, %c0_32], %65 {strides = array<i32>} : memref<2x128xf32, #tpu.memory_space<vmem>>, vector<2x128xf32>,
    return
  }
  func.func @transform_0(%arg0: i32) -> (i32, i32) {
    %c0_i32 = arith.constant 0 : i32
    %c0_i32_0 = arith.constant 0 : i32
    %c0_i32_1 = arith.constant 0 : i32
    return %c0_i32, %c0_i32_0 : i32, i32
  }
  func.func @transform_1(%arg0: i32) -> (i32, i32) {
    %c0_i32 = arith.constant 0 : i32
    %c0_i32_0 = arith.constant 0 : i32
    %c0_i32_1 = arith.constant 0 : i32
    return %c0_i32, %c0_i32_0 : i32, i32
  }
  func.func @transform_2(%arg0: i32) -> (i32, i32) {
    %c0_i32 = arith.constant 0 : i32
    %c0_i32_0 = arith.constant 0 : i32
    %c0_i32_1 = arith.constant 0 : i32
    return %c0_i32, %c0_i32_0 : i32, i32
  }
  func.func @transform_3(%arg0: i32) -> (i32, i32) {
    %c0_i32 = arith.constant 0 : i32
    %c0_i32_0 = arith.constant 0 : i32
    %c0_i32_1 = arith.constant 0 : i32
    return %c0_i32, %c0_i32_0 : i32, i32
  }
  func.func @transform_4(%arg0: i32) -> (i32, i32) {
    %c0_i32 = arith.constant 0 : i32
    %c0_i32_0 = arith.constant 0 : i32
    %c0_i32_1 = arith.constant 0 : i32
    return %c0_i32, %c0_i32_0 : i32, i32
  }
  func.func @transform_5(%arg0: i32) -> (i32, i32) {
    %c0_i32 = arith.constant 0 : i32
    %c0_i32_0 = arith.constant 0 : i32
    %c0_i32_1 = arith.constant 0 : i32
    return %c0_i32, %c0_i32_0 : i32, i32
  }
  func.func @transform_6(%arg0: i32) -> (i32, i32) {
    %c0_i32 = arith.constant 0 : i32
    %c0_i32_0 = arith.constant 0 : i32
    %c0_i32_1 = arith.constant 0 : i32
    return %c0_i32, %c0_i32_0 : i32, i32
  }
  func.func @transform_7(%arg0: i32) -> (i32, i32) {
    %c0_i32 = arith.constant 0 : i32
    %c0_i32_0 = arith.constant 0 : i32
    %c0_i32_1 = arith.constant 0 : i32
    return %c0_i32, %c0_i32_0 : i32, i32
  }
  func.func @transform_8(%arg0: i32) -> (i32, i32) {
    %c0_i32 = arith.constant 0 : i32
    %c0_i32_0 = arith.constant 0 : i32
    %c0_i32_1 = arith.constant 0 : i32
    return %c0_i32, %c0_i32_0 : i32, i32
  }
  func.func @transform_9(%arg0: i32) -> (i32, i32) {
    %c0_i32 = arith.constant 0 : i32
    %c0_i32_0 = arith.constant 0 : i32
    %c0_i32_1 = arith.constant 0 : i32
    return %c0_i32, %c0_i32_0 : i32, i32
  }
  func.func @transform_10(%arg0: i32) -> (i32, i32) {
    %c0_i32 = arith.constant 0 : i32
    %c0_i32_0 = arith.constant 0 : i32
    return %c0_i32, %arg0 : i32, i32
  }
  func.func @transform_11(%arg0: i32) -> (i32, i32) {
    %c0_i32 = arith.constant 0 : i32
    %c0_i32_0 = arith.constant 0 : i32
    return %c0_i32, %arg0 : i32, i32
  }
}

module attributes {stable_mosaic.version = 11 : i64} {
  func.func @encoder_stack_kernel(%arg0: i32, %arg1: i32, %arg2: memref<2x16x32xf32, #tpu.memory_space<vmem>>, %arg3: memref<2x1x16xf32, #tpu.memory_space<vmem>>, %arg4: memref<1x32x32xbf16, #tpu.memory_space<vmem>>, %arg5: memref<1x1x32xf32, #tpu.memory_space<vmem>>, %arg6: memref<1x32x32xbf16, #tpu.memory_space<vmem>>, %arg7: memref<1x1x32xf32, #tpu.memory_space<vmem>>, %arg8: memref<1x32x32xbf16, #tpu.memory_space<vmem>>, %arg9: memref<1x1x32xf32, #tpu.memory_space<vmem>>, %arg10: memref<1x32x32xbf16, #tpu.memory_space<vmem>>, %arg11: memref<1x1x32xf32, #tpu.memory_space<vmem>>, %arg12: memref<1x1x32xf32, #tpu.memory_space<vmem>>, %arg13: memref<1x1x32xf32, #tpu.memory_space<vmem>>, %arg14: memref<1x32x128xbf16, #tpu.memory_space<vmem>>, %arg15: memref<1x1x128xf32, #tpu.memory_space<vmem>>, %arg16: memref<1x128x32xbf16, #tpu.memory_space<vmem>>, %arg17: memref<1x1x32xf32, #tpu.memory_space<vmem>>, %arg18: memref<1x1x32xf32, #tpu.memory_space<vmem>>, %arg19: memref<1x1x32xf32, #tpu.memory_space<vmem>>, %arg20: memref<2x8x32xf32, #tpu.memory_space<vmem>>, %arg21: memref<2x16x32xf32, #tpu.memory_space<vmem>>) attributes {dimension_semantics = [#tpu.dimension_semantics<parallel>, #tpu.dimension_semantics<arbitrary>], iteration_bounds = array<i64: 1, 2>, scalar_prefetch = 0 : i64, scratch_operands = 1 : i64, tpu.core_type = #tpu.core_type<tc>, window_params = [{transform_indices = @transform_0, window_bounds = array<i64: 2, 16, 32>}, {transform_indices = @transform_1, window_bounds = array<i64: 2, 1, 16>}, {transform_indices = @transform_2, window_bounds = array<i64: 1, 32, 32>}, {transform_indices = @transform_3, window_bounds = array<i64: 1, 1, 32>}, {transform_indices = @transform_4, window_bounds = array<i64: 1, 32, 32>}, {transform_indices = @transform_5, window_bounds = array<i64: 1, 1, 32>}, {transform_indices = @transform_6, window_bounds = array<i64: 1, 32, 32>}, {transform_indices = @transform_7, window_bounds = array<i64: 1, 1, 32>}, {transform_indices = @transform_8, window_bounds = array<i64: 1, 32, 32>}, {transform_indices = @transform_9, window_bounds = array<i64: 1, 1, 32>}, {transform_indices = @transform_10, window_bounds = array<i64: 1, 1, 32>}, {transform_indices = @transform_11, window_bounds = array<i64: 1, 1, 32>}, {transform_indices = @transform_12, window_bounds = array<i64: 1, 32, 128>}, {transform_indices = @transform_13, window_bounds = array<i64: 1, 1, 128>}, {transform_indices = @transform_14, window_bounds = array<i64: 1, 128, 32>}, {transform_indices = @transform_15, window_bounds = array<i64: 1, 1, 32>}, {transform_indices = @transform_16, window_bounds = array<i64: 1, 1, 32>}, {transform_indices = @transform_17, window_bounds = array<i64: 1, 1, 32>}, {transform_indices = @transform_18, window_bounds = array<i64: 2, 8, 32>}]} {
    %c0_i32 = arith.constant 0 : i32
    %0 = arith.cmpi eq, %arg1, %c0_i32 : i32
    %1 = arith.extui %0 : i1 to i32
    %c0_i32_0 = arith.constant 0 : i32
    %2 = arith.cmpi ne, %1, %c0_i32_0 : i32
    scf.if %2 {
      %c0_88 = arith.constant 0 : index
      %c0_89 = arith.constant 0 : index
      %c0_90 = arith.constant 0 : index
      %186 = vector.load %arg2[%c0_88, %c0_89, %c0_90] : memref<2x16x32xf32, #tpu.memory_space<vmem>>, vector<2x16x32xf32>
      %c0_91 = arith.constant 0 : index
      %c0_92 = arith.constant 0 : index
      %c0_93 = arith.constant 0 : index
      %187 = vector.load %arg21[%c0_91, %c0_92, %c0_93] : memref<2x16x32xf32, #tpu.memory_space<vmem>>, vector<2x16x32xf32>
      tpu.vector_store %arg21[%c0_91, %c0_92, %c0_93], %186 {strides = array<i32>} : memref<2x16x32xf32, #tpu.memory_space<vmem>>, vector<2x16x32xf32>,
    } else {
    }
    %c0 = arith.constant 0 : index
    %c0_1 = arith.constant 0 : index
    %c0_2 = arith.constant 0 : index
    %3 = vector.load %arg21[%c0, %c0_1, %c0_2] : memref<2x16x32xf32, #tpu.memory_space<vmem>>, vector<2x16x32xf32>
    %4 = vector.shape_cast %3 : vector<2x16x32xf32> to vector<32x32xf32>
    %5 = arith.truncf %4 : vector<32x32xf32> to vector<32x32xbf16>
    %c0_3 = arith.constant 0 : index
    %c0_4 = arith.constant 0 : index
    %c0_5 = arith.constant 0 : index
    %6 = vector.load %arg4[%c0_3, %c0_4, %c0_5] : memref<1x32x32xbf16, #tpu.memory_space<vmem>>, vector<1x32x32xbf16>
    %7 = vector.shape_cast %6 : vector<1x32x32xbf16> to vector<32x32xbf16>
    %cst = arith.constant dense<0.000000e+00> : vector<32x32xf32>
    %8 = tpu.matmul %5, %7, %cst {dimension_numbers = #tpu.dot_dimension_numbers<[1], [0], [0], [1], [0, 0, 1, 1], [], []>} : vector<32x32xbf16>, vector<32x32xbf16>, vector<32x32xf32> -> vector<32x32xf32>
    %c0_6 = arith.constant 0 : index
    %c0_7 = arith.constant 0 : index
    %c0_8 = arith.constant 0 : index
    %9 = vector.load %arg5[%c0_6, %c0_7, %c0_8] : memref<1x1x32xf32, #tpu.memory_space<vmem>>, vector<1x1x32xf32>
    %10 = vector.shape_cast %9 : vector<1x1x32xf32> to vector<1x32xf32>
    %11 = vector.broadcast %10 : vector<1x32xf32> to vector<32x32xf32>
    %12 = arith.addf %8, %11 : vector<32x32xf32>
    %13 = vector.shape_cast %12 : vector<32x32xf32> to vector<2x16x32xf32>
    %c0_9 = arith.constant 0 : index
    %c0_10 = arith.constant 0 : index
    %c0_11 = arith.constant 0 : index
    %14 = vector.load %arg6[%c0_9, %c0_10, %c0_11] : memref<1x32x32xbf16, #tpu.memory_space<vmem>>, vector<1x32x32xbf16>
    %15 = vector.shape_cast %14 : vector<1x32x32xbf16> to vector<32x32xbf16>
    %cst_12 = arith.constant dense<0.000000e+00> : vector<32x32xf32>
    %16 = tpu.matmul %5, %15, %cst_12 {dimension_numbers = #tpu.dot_dimension_numbers<[1], [0], [0], [1], [0, 0, 1, 1], [], []>} : vector<32x32xbf16>, vector<32x32xbf16>, vector<32x32xf32> -> vector<32x32xf32>
    %c0_13 = arith.constant 0 : index
    %c0_14 = arith.constant 0 : index
    %c0_15 = arith.constant 0 : index
    %17 = vector.load %arg7[%c0_13, %c0_14, %c0_15] : memref<1x1x32xf32, #tpu.memory_space<vmem>>, vector<1x1x32xf32>
    %18 = vector.shape_cast %17 : vector<1x1x32xf32> to vector<1x32xf32>
    %19 = vector.broadcast %18 : vector<1x32xf32> to vector<32x32xf32>
    %20 = arith.addf %16, %19 : vector<32x32xf32>
    %21 = vector.shape_cast %20 : vector<32x32xf32> to vector<2x16x32xf32>
    %c0_16 = arith.constant 0 : index
    %c0_17 = arith.constant 0 : index
    %c0_18 = arith.constant 0 : index
    %22 = vector.load %arg8[%c0_16, %c0_17, %c0_18] : memref<1x32x32xbf16, #tpu.memory_space<vmem>>, vector<1x32x32xbf16>
    %23 = vector.shape_cast %22 : vector<1x32x32xbf16> to vector<32x32xbf16>
    %cst_19 = arith.constant dense<0.000000e+00> : vector<32x32xf32>
    %24 = tpu.matmul %5, %23, %cst_19 {dimension_numbers = #tpu.dot_dimension_numbers<[1], [0], [0], [1], [0, 0, 1, 1], [], []>} : vector<32x32xbf16>, vector<32x32xbf16>, vector<32x32xf32> -> vector<32x32xf32>
    %c0_20 = arith.constant 0 : index
    %c0_21 = arith.constant 0 : index
    %c0_22 = arith.constant 0 : index
    %25 = vector.load %arg9[%c0_20, %c0_21, %c0_22] : memref<1x1x32xf32, #tpu.memory_space<vmem>>, vector<1x1x32xf32>
    %26 = vector.shape_cast %25 : vector<1x1x32xf32> to vector<1x32xf32>
    %27 = vector.broadcast %26 : vector<1x32xf32> to vector<32x32xf32>
    %28 = arith.addf %24, %27 : vector<32x32xf32>
    %29 = vector.shape_cast %28 : vector<32x32xf32> to vector<2x16x32xf32>
    %c0_23 = arith.constant 0 : index
    %c0_24 = arith.constant 0 : index
    %c0_25 = arith.constant 0 : index
    %30 = vector.load %arg3[%c0_23, %c0_24, %c0_25] : memref<2x1x16xf32, #tpu.memory_space<vmem>>, vector<2x1x16xf32>
    %c0_26 = arith.constant 0 : index
    %c0_27 = arith.constant 0 : index
    %c0_28 = arith.constant 0 : index
    %31 = vector.load %arg10[%c0_26, %c0_27, %c0_28] : memref<1x32x32xbf16, #tpu.memory_space<vmem>>, vector<1x32x32xbf16>
    %32 = vector.shape_cast %31 : vector<1x32x32xbf16> to vector<32x32xbf16>
    %33 = vector.extract_strided_slice %13 {offsets = [0, 0, 0], sizes = [2, 16, 16], strides = [1, 1, 1]} : vector<2x16x32xf32> to vector<2x16x16xf32>
    %34 = arith.truncf %33 : vector<2x16x16xf32> to vector<2x16x16xbf16>
    %35 = vector.extract_strided_slice %21 {offsets = [0, 0, 0], sizes = [2, 16, 16], strides = [1, 1, 1]} : vector<2x16x32xf32> to vector<2x16x16xf32>
    %36 = arith.truncf %35 : vector<2x16x16xf32> to vector<2x16x16xbf16>
    %37 = vector.extract_strided_slice %29 {offsets = [0, 0, 0], sizes = [2, 16, 16], strides = [1, 1, 1]} : vector<2x16x32xf32> to vector<2x16x16xf32>
    %38 = arith.truncf %37 : vector<2x16x16xf32> to vector<2x16x16xbf16>
    "tpu.trace_start"() <{level = 10 : i32, message = "bqd,bkd->bqk"}> : () -> ()
    %cst_29 = arith.constant dense<0.000000e+00> : vector<2x16x16xf32>
    %39 = tpu.matmul %34, %36, %cst_29 {dimension_numbers = #tpu.dot_dimension_numbers<[2], [2], [1], [1], [0, 0, 0, 1, 1, 1], [0], [0]>} : vector<2x16x16xbf16>, vector<2x16x16xbf16>, vector<2x16x16xf32> -> vector<2x16x16xf32>
    "tpu.trace_stop"() : () -> ()
    %cst_30 = arith.constant 2.500000e-01 : f32
    %40 = vector.broadcast %cst_30 : f32 to vector<2x16x16xf32>
    %41 = arith.mulf %39, %40 : vector<2x16x16xf32>
    %42 = vector.broadcast %30 : vector<2x1x16xf32> to vector<2x16x16xf32>
    %43 = arith.addf %41, %42 : vector<2x16x16xf32>
    %cst_31 = arith.constant dense<0xFF800000> : vector<2x16xf32>
    %44 = vector.multi_reduction <maximumf>, %43, %cst_31 [2] : vector<2x16x16xf32> to vector<2x16xf32>
    %45 = vector.shape_cast %44 : vector<2x16xf32> to vector<2x16x1xf32>
    %46 = vector.broadcast %45 : vector<2x16x1xf32> to vector<2x16x16xf32>
    %47 = arith.subf %43, %46 : vector<2x16x16xf32>
    %48 = math.exp %47 : vector<2x16x16xf32>
    %cst_32 = arith.constant dense<0.000000e+00> : vector<2x16xf32>
    %49 = vector.multi_reduction <add>, %48, %cst_32 [2] : vector<2x16x16xf32> to vector<2x16xf32>
    %50 = vector.shape_cast %49 : vector<2x16xf32> to vector<2x16x1xf32>
    %51 = tpu.reciprocal %50 {approx = true} : vector<2x16x1xf32> -> vector<2x16x1xf32>
    %52 = vector.broadcast %51 : vector<2x16x1xf32> to vector<2x16x16xf32>
    %53 = arith.mulf %48, %52 : vector<2x16x16xf32>
    %54 = arith.truncf %53 : vector<2x16x16xf32> to vector<2x16x16xbf16>
    "tpu.trace_start"() <{level = 10 : i32, message = "bqk,bkd->bqd"}> : () -> ()
    %cst_33 = arith.constant dense<0.000000e+00> : vector<2x16x16xf32>
    %55 = tpu.matmul %54, %38, %cst_33 {dimension_numbers = #tpu.dot_dimension_numbers<[2], [1], [1], [2], [0, 0, 0, 1, 1, 2], [0], [0]>} : vector<2x16x16xbf16>, vector<2x16x16xbf16>, vector<2x16x16xf32> -> vector<2x16x16xf32>
    "tpu.trace_stop"() : () -> ()
    %56 = vector.shape_cast %55 : vector<2x16x16xf32> to vector<32x16xf32>
    %57 = arith.truncf %56 : vector<32x16xf32> to vector<32x16xbf16>
    %58 = vector.extract_strided_slice %32 {offsets = [0, 0], sizes = [16, 32], strides = [1, 1]} : vector<32x32xbf16> to vector<16x32xbf16>
    %cst_34 = arith.constant dense<0.000000e+00> : vector<32x32xf32>
    %59 = tpu.matmul %57, %58, %cst_34 {dimension_numbers = #tpu.dot_dimension_numbers<[1], [0], [0], [1], [0, 0, 1, 1], [], []>} : vector<32x16xbf16>, vector<16x32xbf16>, vector<32x32xf32> -> vector<32x32xf32>
    %60 = vector.extract_strided_slice %13 {offsets = [0, 0, 16], sizes = [2, 16, 16], strides = [1, 1, 1]} : vector<2x16x32xf32> to vector<2x16x16xf32>
    %61 = arith.truncf %60 : vector<2x16x16xf32> to vector<2x16x16xbf16>
    %62 = vector.extract_strided_slice %21 {offsets = [0, 0, 16], sizes = [2, 16, 16], strides = [1, 1, 1]} : vector<2x16x32xf32> to vector<2x16x16xf32>
    %63 = arith.truncf %62 : vector<2x16x16xf32> to vector<2x16x16xbf16>
    %64 = vector.extract_strided_slice %29 {offsets = [0, 0, 16], sizes = [2, 16, 16], strides = [1, 1, 1]} : vector<2x16x32xf32> to vector<2x16x16xf32>
    %65 = arith.truncf %64 : vector<2x16x16xf32> to vector<2x16x16xbf16>
    "tpu.trace_start"() <{level = 10 : i32, message = "bqd,bkd->bqk"}> : () -> ()
    %cst_35 = arith.constant dense<0.000000e+00> : vector<2x16x16xf32>
    %66 = tpu.matmul %61, %63, %cst_35 {dimension_numbers = #tpu.dot_dimension_numbers<[2], [2], [1], [1], [0, 0, 0, 1, 1, 1], [0], [0]>} : vector<2x16x16xbf16>, vector<2x16x16xbf16>, vector<2x16x16xf32> -> vector<2x16x16xf32>
    "tpu.trace_stop"() : () -> ()
    %cst_36 = arith.constant 2.500000e-01 : f32
    %67 = vector.broadcast %cst_36 : f32 to vector<2x16x16xf32>
    %68 = arith.mulf %66, %67 : vector<2x16x16xf32>
    %69 = vector.broadcast %30 : vector<2x1x16xf32> to vector<2x16x16xf32>
    %70 = arith.addf %68, %69 : vector<2x16x16xf32>
    %cst_37 = arith.constant dense<0xFF800000> : vector<2x16xf32>
    %71 = vector.multi_reduction <maximumf>, %70, %cst_37 [2] : vector<2x16x16xf32> to vector<2x16xf32>
    %72 = vector.shape_cast %71 : vector<2x16xf32> to vector<2x16x1xf32>
    %73 = vector.broadcast %72 : vector<2x16x1xf32> to vector<2x16x16xf32>
    %74 = arith.subf %70, %73 : vector<2x16x16xf32>
    %75 = math.exp %74 : vector<2x16x16xf32>
    %cst_38 = arith.constant dense<0.000000e+00> : vector<2x16xf32>
    %76 = vector.multi_reduction <add>, %75, %cst_38 [2] : vector<2x16x16xf32> to vector<2x16xf32>
    %77 = vector.shape_cast %76 : vector<2x16xf32> to vector<2x16x1xf32>
    %78 = tpu.reciprocal %77 {approx = true} : vector<2x16x1xf32> -> vector<2x16x1xf32>
    %79 = vector.broadcast %78 : vector<2x16x1xf32> to vector<2x16x16xf32>
    %80 = arith.mulf %75, %79 : vector<2x16x16xf32>
    %81 = arith.truncf %80 : vector<2x16x16xf32> to vector<2x16x16xbf16>
    "tpu.trace_start"() <{level = 10 : i32, message = "bqk,bkd->bqd"}> : () -> ()
    %cst_39 = arith.constant dense<0.000000e+00> : vector<2x16x16xf32>
    %82 = tpu.matmul %81, %65, %cst_39 {dimension_numbers = #tpu.dot_dimension_numbers<[2], [1], [1], [2], [0, 0, 0, 1, 1, 2], [0], [0]>} : vector<2x16x16xbf16>, vector<2x16x16xbf16>, vector<2x16x16xf32> -> vector<2x16x16xf32>
    "tpu.trace_stop"() : () -> ()
    %83 = vector.shape_cast %82 : vector<2x16x16xf32> to vector<32x16xf32>
    %84 = arith.truncf %83 : vector<32x16xf32> to vector<32x16xbf16>
    %85 = vector.extract_strided_slice %32 {offsets = [16, 0], sizes = [16, 32], strides = [1, 1]} : vector<32x32xbf16> to vector<16x32xbf16>
    %cst_40 = arith.constant dense<0.000000e+00> : vector<32x32xf32>
    %86 = tpu.matmul %84, %85, %cst_40 {dimension_numbers = #tpu.dot_dimension_numbers<[1], [0], [0], [1], [0, 0, 1, 1], [], []>} : vector<32x16xbf16>, vector<16x32xbf16>, vector<32x32xf32> -> vector<32x32xf32>
    %87 = arith.addf %59, %86 : vector<32x32xf32>
    %c0_41 = arith.constant 0 : index
    %c0_42 = arith.constant 0 : index
    %c0_43 = arith.constant 0 : index
    %88 = vector.load %arg11[%c0_41, %c0_42, %c0_43] : memref<1x1x32xf32, #tpu.memory_space<vmem>>, vector<1x1x32xf32>
    %89 = vector.shape_cast %88 : vector<1x1x32xf32> to vector<1x32xf32>
    %90 = vector.broadcast %89 : vector<1x32xf32> to vector<32x32xf32>
    %91 = arith.addf %87, %90 : vector<32x32xf32>
    %92 = vector.shape_cast %91 : vector<32x32xf32> to vector<2x16x32xf32>
    %93 = arith.addf %92, %3 : vector<2x16x32xf32>
    %c0_44 = arith.constant 0 : index
    %c0_45 = arith.constant 0 : index
    %c0_46 = arith.constant 0 : index
    %94 = vector.load %arg12[%c0_44, %c0_45, %c0_46] : memref<1x1x32xf32, #tpu.memory_space<vmem>>, vector<1x1x32xf32>
    %95 = vector.shape_cast %94 : vector<1x1x32xf32> to vector<1x32xf32>
    %c0_47 = arith.constant 0 : index
    %c0_48 = arith.constant 0 : index
    %c0_49 = arith.constant 0 : index
    %96 = vector.load %arg13[%c0_47, %c0_48, %c0_49] : memref<1x1x32xf32, #tpu.memory_space<vmem>>, vector<1x1x32xf32>
    %97 = vector.shape_cast %96 : vector<1x1x32xf32> to vector<1x32xf32>
    %cst_50 = arith.constant dense<0.000000e+00> : vector<2x16xf32>
    %98 = vector.multi_reduction <add>, %93, %cst_50 [2] : vector<2x16x32xf32> to vector<2x16xf32>
    %99 = vector.shape_cast %98 : vector<2x16xf32> to vector<2x16x1xf32>
    %cst_51 = arith.constant 3.200000e+01 : f32
    %100 = vector.broadcast %cst_51 : f32 to vector<2x16x1xf32>
    %101 = arith.divf %99, %100 : vector<2x16x1xf32>
    %102 = vector.broadcast %101 : vector<2x16x1xf32> to vector<2x16x32xf32>
    %103 = arith.subf %93, %102 : vector<2x16x32xf32>
    %104 = arith.mulf %103, %103 : vector<2x16x32xf32>
    %cst_52 = arith.constant dense<0.000000e+00> : vector<2x16xf32>
    %105 = vector.multi_reduction <add>, %104, %cst_52 [2] : vector<2x16x32xf32> to vector<2x16xf32>
    %106 = vector.shape_cast %105 : vector<2x16xf32> to vector<2x16x1xf32>
    %cst_53 = arith.constant 3.200000e+01 : f32
    %107 = vector.broadcast %cst_53 : f32 to vector<2x16x1xf32>
    %108 = arith.divf %106, %107 : vector<2x16x1xf32>
    %109 = vector.broadcast %101 : vector<2x16x1xf32> to vector<2x16x32xf32>
    %110 = arith.subf %93, %109 : vector<2x16x32xf32>
    %cst_54 = arith.constant 9.99999996E-13 : f32
    %111 = vector.broadcast %cst_54 : f32 to vector<2x16x1xf32>
    %112 = arith.addf %108, %111 : vector<2x16x1xf32>
    %113 = math.rsqrt %112 : vector<2x16x1xf32>
    %114 = vector.broadcast %113 : vector<2x16x1xf32> to vector<2x16x32xf32>
    %115 = arith.mulf %110, %114 : vector<2x16x32xf32>
    %116 = vector.shape_cast %95 : vector<1x32xf32> to vector<1x1x32xf32>
    %117 = vector.broadcast %116 : vector<1x1x32xf32> to vector<2x16x32xf32>
    %118 = arith.mulf %115, %117 : vector<2x16x32xf32>
    %119 = vector.shape_cast %97 : vector<1x32xf32> to vector<1x1x32xf32>
    %120 = vector.broadcast %119 : vector<1x1x32xf32> to vector<2x16x32xf32>
    %121 = arith.addf %118, %120 : vector<2x16x32xf32>
    %122 = vector.shape_cast %121 : vector<2x16x32xf32> to vector<32x32xf32>
    %123 = arith.truncf %122 : vector<32x32xf32> to vector<32x32xbf16>
    %c0_55 = arith.constant 0 : index
    %c0_56 = arith.constant 0 : index
    %c0_57 = arith.constant 0 : index
    %124 = vector.load %arg14[%c0_55, %c0_56, %c0_57] : memref<1x32x128xbf16, #tpu.memory_space<vmem>>, vector<1x32x128xbf16>
    %125 = vector.shape_cast %124 : vector<1x32x128xbf16> to vector<32x128xbf16>
    %cst_58 = arith.constant dense<0.000000e+00> : vector<32x128xf32>
    %126 = tpu.matmul %123, %125, %cst_58 {dimension_numbers = #tpu.dot_dimension_numbers<[1], [0], [0], [1], [0, 0, 1, 1], [], []>} : vector<32x32xbf16>, vector<32x128xbf16>, vector<32x128xf32> -> vector<32x128xf32>
    %c0_59 = arith.constant 0 : index
    %c0_60 = arith.constant 0 : index
    %c0_61 = arith.constant 0 : index
    %127 = vector.load %arg15[%c0_59, %c0_60, %c0_61] : memref<1x1x128xf32, #tpu.memory_space<vmem>>, vector<1x1x128xf32>
    %128 = vector.shape_cast %127 : vector<1x1x128xf32> to vector<1x128xf32>
    %129 = vector.broadcast %128 : vector<1x128xf32> to vector<32x128xf32>
    %130 = arith.addf %126, %129 : vector<32x128xf32>
    %cst_62 = arith.constant 5.000000e-01 : f32
    %131 = vector.broadcast %cst_62 : f32 to vector<32x128xf32>
    %132 = arith.mulf %131, %130 : vector<32x128xf32>
    %cst_63 = arith.constant 4.471500e-02 : f32
    %133 = vector.broadcast %cst_63 : f32 to vector<32x128xf32>
    %134 = arith.mulf %133, %130 : vector<32x128xf32>
    %135 = arith.mulf %134, %130 : vector<32x128xf32>
    %136 = arith.mulf %135, %130 : vector<32x128xf32>
    %137 = arith.addf %130, %136 : vector<32x128xf32>
    %cst_64 = arith.constant 0.797884583 : f32
    %138 = vector.broadcast %cst_64 : f32 to vector<32x128xf32>
    %139 = arith.mulf %138, %137 : vector<32x128xf32>
    %140 = math.tanh %139 : vector<32x128xf32>
    %cst_65 = arith.constant 1.000000e+00 : f32
    %141 = vector.broadcast %cst_65 : f32 to vector<32x128xf32>
    %142 = arith.addf %141, %140 : vector<32x128xf32>
    %143 = arith.mulf %132, %142 : vector<32x128xf32>
    %144 = arith.truncf %143 : vector<32x128xf32> to vector<32x128xbf16>
    %c0_66 = arith.constant 0 : index
    %c0_67 = arith.constant 0 : index
    %c0_68 = arith.constant 0 : index
    %145 = vector.load %arg16[%c0_66, %c0_67, %c0_68] : memref<1x128x32xbf16, #tpu.memory_space<vmem>>, vector<1x128x32xbf16>
    %146 = vector.shape_cast %145 : vector<1x128x32xbf16> to vector<128x32xbf16>
    %cst_69 = arith.constant dense<0.000000e+00> : vector<32x32xf32>
    %147 = tpu.matmul %144, %146, %cst_69 {dimension_numbers = #tpu.dot_dimension_numbers<[1], [0], [0], [1], [0, 0, 1, 1], [], []>} : vector<32x128xbf16>, vector<128x32xbf16>, vector<32x32xf32> -> vector<32x32xf32>
    %c0_70 = arith.constant 0 : index
    %c0_71 = arith.constant 0 : index
    %c0_72 = arith.constant 0 : index
    %148 = vector.load %arg17[%c0_70, %c0_71, %c0_72] : memref<1x1x32xf32, #tpu.memory_space<vmem>>, vector<1x1x32xf32>
    %149 = vector.shape_cast %148 : vector<1x1x32xf32> to vector<1x32xf32>
    %150 = vector.broadcast %149 : vector<1x32xf32> to vector<32x32xf32>
    %151 = arith.addf %147, %150 : vector<32x32xf32>
    %152 = vector.shape_cast %151 : vector<32x32xf32> to vector<2x16x32xf32>
    %153 = arith.addf %152, %121 : vector<2x16x32xf32>
    %c0_73 = arith.constant 0 : index
    %c0_74 = arith.constant 0 : index
    %c0_75 = arith.constant 0 : index
    %154 = vector.load %arg18[%c0_73, %c0_74, %c0_75] : memref<1x1x32xf32, #tpu.memory_space<vmem>>, vector<1x1x32xf32>
    %155 = vector.shape_cast %154 : vector<1x1x32xf32> to vector<1x32xf32>
    %c0_76 = arith.constant 0 : index
    %c0_77 = arith.constant 0 : index
    %c0_78 = arith.constant 0 : index
    %156 = vector.load %arg19[%c0_76, %c0_77, %c0_78] : memref<1x1x32xf32, #tpu.memory_space<vmem>>, vector<1x1x32xf32>
    %157 = vector.shape_cast %156 : vector<1x1x32xf32> to vector<1x32xf32>
    %cst_79 = arith.constant dense<0.000000e+00> : vector<2x16xf32>
    %158 = vector.multi_reduction <add>, %153, %cst_79 [2] : vector<2x16x32xf32> to vector<2x16xf32>
    %159 = vector.shape_cast %158 : vector<2x16xf32> to vector<2x16x1xf32>
    %cst_80 = arith.constant 3.200000e+01 : f32
    %160 = vector.broadcast %cst_80 : f32 to vector<2x16x1xf32>
    %161 = arith.divf %159, %160 : vector<2x16x1xf32>
    %162 = vector.broadcast %161 : vector<2x16x1xf32> to vector<2x16x32xf32>
    %163 = arith.subf %153, %162 : vector<2x16x32xf32>
    %164 = arith.mulf %163, %163 : vector<2x16x32xf32>
    %cst_81 = arith.constant dense<0.000000e+00> : vector<2x16xf32>
    %165 = vector.multi_reduction <add>, %164, %cst_81 [2] : vector<2x16x32xf32> to vector<2x16xf32>
    %166 = vector.shape_cast %165 : vector<2x16xf32> to vector<2x16x1xf32>
    %cst_82 = arith.constant 3.200000e+01 : f32
    %167 = vector.broadcast %cst_82 : f32 to vector<2x16x1xf32>
    %168 = arith.divf %166, %167 : vector<2x16x1xf32>
    %169 = vector.broadcast %161 : vector<2x16x1xf32> to vector<2x16x32xf32>
    %170 = arith.subf %153, %169 : vector<2x16x32xf32>
    %cst_83 = arith.constant 9.99999996E-13 : f32
    %171 = vector.broadcast %cst_83 : f32 to vector<2x16x1xf32>
    %172 = arith.addf %168, %171 : vector<2x16x1xf32>
    %173 = math.rsqrt %172 : vector<2x16x1xf32>
    %174 = vector.broadcast %173 : vector<2x16x1xf32> to vector<2x16x32xf32>
    %175 = arith.mulf %170, %174 : vector<2x16x32xf32>
    %176 = vector.shape_cast %155 : vector<1x32xf32> to vector<1x1x32xf32>
    %177 = vector.broadcast %176 : vector<1x1x32xf32> to vector<2x16x32xf32>
    %178 = arith.mulf %175, %177 : vector<2x16x32xf32>
    %179 = vector.shape_cast %157 : vector<1x32xf32> to vector<1x1x32xf32>
    %180 = vector.broadcast %179 : vector<1x1x32xf32> to vector<2x16x32xf32>
    %181 = arith.addf %178, %180 : vector<2x16x32xf32>
    %c0_84 = arith.constant 0 : index
    %c0_85 = arith.constant 0 : index
    %c0_86 = arith.constant 0 : index
    %182 = vector.load %arg21[%c0_84, %c0_85, %c0_86] : memref<2x16x32xf32, #tpu.memory_space<vmem>>, vector<2x16x32xf32>
    tpu.vector_store %arg21[%c0_84, %c0_85, %c0_86], %181 {strides = array<i32>} : memref<2x16x32xf32, #tpu.memory_space<vmem>>, vector<2x16x32xf32>,
    %c1_i32 = arith.constant 1 : i32
    %183 = arith.cmpi eq, %arg1, %c1_i32 : i32
    %184 = arith.extui %183 : i1 to i32
    %c0_i32_87 = arith.constant 0 : i32
    %185 = arith.cmpi ne, %184, %c0_i32_87 : i32
    scf.if %185 {
      %186 = vector.extract_strided_slice %181 {offsets = [0, 8, 0], sizes = [2, 8, 32], strides = [1, 1, 1]} : vector<2x16x32xf32> to vector<2x8x32xf32>
      %c0_88 = arith.constant 0 : index
      %c0_89 = arith.constant 0 : index
      %c0_90 = arith.constant 0 : index
      %187 = vector.load %arg20[%c0_88, %c0_89, %c0_90] : memref<2x8x32xf32, #tpu.memory_space<vmem>>, vector<2x8x32xf32>
      tpu.vector_store %arg20[%c0_88, %c0_89, %c0_90], %186 {strides = array<i32>} : memref<2x8x32xf32, #tpu.memory_space<vmem>>, vector<2x8x32xf32>,
    } else {
    }
    return
  }
  func.func @transform_0(%arg0: i32, %arg1: i32) -> (i32, i32, i32) {
    %c0_i32 = arith.constant 0 : i32
    %c0_i32_0 = arith.constant 0 : i32
    %c0_i32_1 = arith.constant 0 : i32
    return %arg0, %c0_i32, %c0_i32_0 : i32, i32, i32
  }
  func.func @transform_1(%arg0: i32, %arg1: i32) -> (i32, i32, i32) {
    %c0_i32 = arith.constant 0 : i32
    %c0_i32_0 = arith.constant 0 : i32
    %c0_i32_1 = arith.constant 0 : i32
    return %arg0, %c0_i32, %c0_i32_0 : i32, i32, i32
  }
  func.func @transform_2(%arg0: i32, %arg1: i32) -> (i32, i32, i32) {
    %c0_i32 = arith.constant 0 : i32
    %c0_i32_0 = arith.constant 0 : i32
    %c0_i32_1 = arith.constant 0 : i32
    return %arg1, %c0_i32, %c0_i32_0 : i32, i32, i32
  }
  func.func @transform_3(%arg0: i32, %arg1: i32) -> (i32, i32, i32) {
    %c0_i32 = arith.constant 0 : i32
    %c0_i32_0 = arith.constant 0 : i32
    %c0_i32_1 = arith.constant 0 : i32
    return %arg1, %c0_i32, %c0_i32_0 : i32, i32, i32
  }
  func.func @transform_4(%arg0: i32, %arg1: i32) -> (i32, i32, i32) {
    %c0_i32 = arith.constant 0 : i32
    %c0_i32_0 = arith.constant 0 : i32
    %c0_i32_1 = arith.constant 0 : i32
    return %arg1, %c0_i32, %c0_i32_0 : i32, i32, i32
  }
  func.func @transform_5(%arg0: i32, %arg1: i32) -> (i32, i32, i32) {
    %c0_i32 = arith.constant 0 : i32
    %c0_i32_0 = arith.constant 0 : i32
    %c0_i32_1 = arith.constant 0 : i32
    return %arg1, %c0_i32, %c0_i32_0 : i32, i32, i32
  }
  func.func @transform_6(%arg0: i32, %arg1: i32) -> (i32, i32, i32) {
    %c0_i32 = arith.constant 0 : i32
    %c0_i32_0 = arith.constant 0 : i32
    %c0_i32_1 = arith.constant 0 : i32
    return %arg1, %c0_i32, %c0_i32_0 : i32, i32, i32
  }
  func.func @transform_7(%arg0: i32, %arg1: i32) -> (i32, i32, i32) {
    %c0_i32 = arith.constant 0 : i32
    %c0_i32_0 = arith.constant 0 : i32
    %c0_i32_1 = arith.constant 0 : i32
    return %arg1, %c0_i32, %c0_i32_0 : i32, i32, i32
  }
  func.func @transform_8(%arg0: i32, %arg1: i32) -> (i32, i32, i32) {
    %c0_i32 = arith.constant 0 : i32
    %c0_i32_0 = arith.constant 0 : i32
    %c0_i32_1 = arith.constant 0 : i32
    return %arg1, %c0_i32, %c0_i32_0 : i32, i32, i32
  }
  func.func @transform_9(%arg0: i32, %arg1: i32) -> (i32, i32, i32) {
    %c0_i32 = arith.constant 0 : i32
    %c0_i32_0 = arith.constant 0 : i32
    %c0_i32_1 = arith.constant 0 : i32
    return %arg1, %c0_i32, %c0_i32_0 : i32, i32, i32
  }
  func.func @transform_10(%arg0: i32, %arg1: i32) -> (i32, i32, i32) {
    %c0_i32 = arith.constant 0 : i32
    %c0_i32_0 = arith.constant 0 : i32
    %c0_i32_1 = arith.constant 0 : i32
    return %arg1, %c0_i32, %c0_i32_0 : i32, i32, i32
  }
  func.func @transform_11(%arg0: i32, %arg1: i32) -> (i32, i32, i32) {
    %c0_i32 = arith.constant 0 : i32
    %c0_i32_0 = arith.constant 0 : i32
    %c0_i32_1 = arith.constant 0 : i32
    return %arg1, %c0_i32, %c0_i32_0 : i32, i32, i32
  }
  func.func @transform_12(%arg0: i32, %arg1: i32) -> (i32, i32, i32) {
    %c0_i32 = arith.constant 0 : i32
    %c0_i32_0 = arith.constant 0 : i32
    %c0_i32_1 = arith.constant 0 : i32
    return %arg1, %c0_i32, %c0_i32_0 : i32, i32, i32
  }
  func.func @transform_13(%arg0: i32, %arg1: i32) -> (i32, i32, i32) {
    %c0_i32 = arith.constant 0 : i32
    %c0_i32_0 = arith.constant 0 : i32
    %c0_i32_1 = arith.constant 0 : i32
    return %arg1, %c0_i32, %c0_i32_0 : i32, i32, i32
  }
  func.func @transform_14(%arg0: i32, %arg1: i32) -> (i32, i32, i32) {
    %c0_i32 = arith.constant 0 : i32
    %c0_i32_0 = arith.constant 0 : i32
    %c0_i32_1 = arith.constant 0 : i32
    return %arg1, %c0_i32, %c0_i32_0 : i32, i32, i32
  }
  func.func @transform_15(%arg0: i32, %arg1: i32) -> (i32, i32, i32) {
    %c0_i32 = arith.constant 0 : i32
    %c0_i32_0 = arith.constant 0 : i32
    %c0_i32_1 = arith.constant 0 : i32
    return %arg1, %c0_i32, %c0_i32_0 : i32, i32, i32
  }
  func.func @transform_16(%arg0: i32, %arg1: i32) -> (i32, i32, i32) {
    %c0_i32 = arith.constant 0 : i32
    %c0_i32_0 = arith.constant 0 : i32
    %c0_i32_1 = arith.constant 0 : i32
    return %arg1, %c0_i32, %c0_i32_0 : i32, i32, i32
  }
  func.func @transform_17(%arg0: i32, %arg1: i32) -> (i32, i32, i32) {
    %c0_i32 = arith.constant 0 : i32
    %c0_i32_0 = arith.constant 0 : i32
    %c0_i32_1 = arith.constant 0 : i32
    return %arg1, %c0_i32, %c0_i32_0 : i32, i32, i32
  }
  func.func @transform_18(%arg0: i32, %arg1: i32) -> (i32, i32, i32) {
    %c0_i32 = arith.constant 0 : i32
    %c0_i32_0 = arith.constant 0 : i32
    %c0_i32_1 = arith.constant 0 : i32
    return %arg0, %c0_i32, %c0_i32_0 : i32, i32, i32
  }
}

</mosaic_0001>

<llo_original>
// kernel: tc4rec_forward.3
$region0: #{tc4rec_forward.3}
  #allocation0 [shape = 'u32[]', space=smem, size = 0x4, offset = 0x4, fixed_abs, tag = 'smem constant byte address 0x4 - core index']
  #allocation1 [shape = 'u32[144,128]{1,0:T(1,128)}', space=vmem, size = 0x12000, scoped, tag = 'internal scratch']
  %s0 = inlined_call_operand.vmem [shape: f32[2,32], index: 0, kind: input, shape index: {}]
  %s1 = inlined_call_operand.vmem [shape: f32[2,32], index: 1, kind: input, shape index: {}]
  %s2 = inlined_call_operand.vmem [shape: f32[1,32], index: 2, kind: input, shape index: {}]
  %s3 = inlined_call_operand.vmem [shape: f32[1,32], index: 3, kind: input, shape index: {}]
  %s4 = inlined_call_operand.vmem [shape: f32[1,32], index: 4, kind: input, shape index: {}]
  %s5 = inlined_call_operand.vmem [shape: f32[1,32], index: 5, kind: input, shape index: {}]
  %s6 = inlined_call_operand.vmem [shape: f32[1,32], index: 6, kind: input, shape index: {}]
  %s7 = inlined_call_operand.vmem [shape: f32[1,32], index: 7, kind: input, shape index: {}]
  %s8 = inlined_call_operand.vmem [shape: f32[1,32], index: 8, kind: input, shape index: {}]
  %s9 = inlined_call_operand.vmem [shape: f32[1,32], index: 9, kind: input, shape index: {}]
  %s10 = inlined_call_operand.vmem [shape: bf16[32,128], index: 10, kind: input, shape index: {}]
  %s11 = inlined_call_operand.hbm [shape: f32[2,128], index: 11, kind: output, shape index: {}]
  %s12 = sld [smem:[#allocation0]]
  $region54: #{tc4rec_forward.3} parent=0
    _
  %s14 = ssub.s32 1, %s12
  %s15 = scalar_select 0, %s14, %s12
  $region1: #{tc4rec_forward.3} parent=0
    #allocation2 [shape = 'u8[1024]{0}', space=vmem, size = 0x400, scoped, tag = 'output window, operand 0, single buffered']
    #allocation3 [shape = 's32[1]{0}', space=sflag, size = 0x4, scoped, tag = 'scoped memory for tc4rec_forward.3']
    %16 = vsyncpa [#allocation3], 0
    // Predicated region
    $region2: #{tc4rec_forward.3} parent=1 // pred_check
      _
    $region3: #{tc4rec_forward.3} parent=1 // pred_check_branch
      %18 = sbr.rel (0) target = $region5
    $region4: #{tc4rec_forward.3} parent=1 // pred_region
      _
    $region5: #{tc4rec_forward.3} parent=1 // pred_fallthru
      _
    // Predicated region
    $region6: #{tc4rec_forward.3} parent=1 // pred_check
      _
    $region7: #{tc4rec_forward.3} parent=1 // pred_check_branch
      %20 = sbr.rel (0) target = $region9
    $region8: #{tc4rec_forward.3} parent=1 // pred_region
      _
    $region9: #{tc4rec_forward.3} parent=1 // pred_fallthru
      _
    // Predicated region
    $region10: #{tc4rec_forward.3} parent=1 // pred_check
      _
    $region11: #{tc4rec_forward.3} parent=1 // pred_check_branch
      %22 = sbr.rel (0) target = $region13
    $region12: #{tc4rec_forward.3} parent=1 // pred_region
      _
    $region13: #{tc4rec_forward.3} parent=1 // pred_fallthru
      _
    // Predicated region
    $region14: #{tc4rec_forward.3} parent=1 // pred_check
      _
    $region15: #{tc4rec_forward.3} parent=1 // pred_check_branch
      %24 = sbr.rel (0) target = $region17
    $region16: #{tc4rec_forward.3} parent=1 // pred_region
      _
    $region17: #{tc4rec_forward.3} parent=1 // pred_fallthru
      _
    // Predicated region
    $region18: #{tc4rec_forward.3} parent=1 // pred_check
      _
    $region19: #{tc4rec_forward.3} parent=1 // pred_check_branch
      %26 = sbr.rel (0) target = $region21
    $region20: #{tc4rec_forward.3} parent=1 // pred_region
      _
    $region21: #{tc4rec_forward.3} parent=1 // pred_fallthru
      _
    // Predicated region
    $region22: #{tc4rec_forward.3} parent=1 // pred_check
      _
    $region23: #{tc4rec_forward.3} parent=1 // pred_check_branch
      %28 = sbr.rel (0) target = $region25
    $region24: #{tc4rec_forward.3} parent=1 // pred_region
      _
    $region25: #{tc4rec_forward.3} parent=1 // pred_fallthru
      _
    // Predicated region
    $region26: #{tc4rec_forward.3} parent=1 // pred_check
      _
    $region27: #{tc4rec_forward.3} parent=1 // pred_check_branch
      %30 = sbr.rel (0) target = $region29
    $region28: #{tc4rec_forward.3} parent=1 // pred_region
      _
    $region29: #{tc4rec_forward.3} parent=1 // pred_fallthru
      _
    // Predicated region
    $region30: #{tc4rec_forward.3} parent=1 // pred_check
      _
    $region31: #{tc4rec_forward.3} parent=1 // pred_check_branch
      %32 = sbr.rel (0) target = $region33
    $region32: #{tc4rec_forward.3} parent=1 // pred_region
      _
    $region33: #{tc4rec_forward.3} parent=1 // pred_fallthru
      _
    // Predicated region
    $region34: #{tc4rec_forward.3} parent=1 // pred_check
      _
    $region35: #{tc4rec_forward.3} parent=1 // pred_check_branch
      %34 = sbr.rel (0) target = $region37
    $region36: #{tc4rec_forward.3} parent=1 // pred_region
      _
    $region37: #{tc4rec_forward.3} parent=1 // pred_fallthru
      _
    // Predicated region
    $region38: #{tc4rec_forward.3} parent=1 // pred_check
      _
    $region39: #{tc4rec_forward.3} parent=1 // pred_check_branch
      %36 = sbr.rel (0) target = $region41
    $region40: #{tc4rec_forward.3} parent=1 // pred_region
      _
    $region41: #{tc4rec_forward.3} parent=1 // pred_fallthru
      _
    // Predicated region
    $region42: #{tc4rec_forward.3} parent=1 // pred_check
      _
    $region43: #{tc4rec_forward.3} parent=1 // pred_check_branch
      %38 = sbr.rel (0) target = $region45
    $region44: #{tc4rec_forward.3} parent=1 // pred_region
      _
    $region45: #{tc4rec_forward.3} parent=1 // pred_fallthru
      _
    %v40 = vld [vmem:[%s2] sm:$0x1]
    %v41 = vld [vmem:[%s0] sm:$0x3]
    %v43 = vlaneseq
    %v44 = vshrl.u32 %v43, 7
    %v45 = vsub.s32 0, %v44
    %v46 = vrot.slane %v40, %v45
    %v48 = vmul.f32 %v46, %v41
    %v49 = vld [vmem:[%s3] sm:$0x1]
    %v51 = vlaneseq
    %v52 = vshrl.u32 %v51, 7
    %v53 = vsub.s32 0, %v52
    %v54 = vrot.slane %v49, %v53
    %v56 = vadd.f32 %v48, %v54
    %v57 = vld [vmem:[%s4] sm:$0x1]
    %v58 = vld [vmem:[%s5] sm:$0x1]
    %vm59 = vcmask 254976
    %v60 = vsel %vm59, %v56, 0.0
    %61 = vadd.xlane.f32.xlu0 %v60
    %v62 = vpop.xlane.xlu0 %61
    %v63 = vrcp.pop 32.0
    %v64 = vmul.f32 %v62, %v63
    %v65 = vsub.f32 %v56, %v64
    %v66 = vmul.f32 %v65, %v65
    %v67 = vsel %vm59, %v66, 0.0
    %68 = vadd.xlane.f32.xlu0 %v67
    %v69 = vpop.xlane.xlu0 %68
    %v70 = vmul.f32 %v69, %v63
    %v71 = vadd.f32 %v70, 1e-05
    %v72 = vrsqrt.pop %v71
    %v73 = vmul.f32 %v65, %v72
    %v75 = vlaneseq
    %v76 = vshrl.u32 %v75, 7
    %v77 = vsub.s32 0, %v76
    %v78 = vrot.slane %v57, %v77
    %v80 = vmul.f32 %v73, %v78
    %v82 = vlaneseq
    %v83 = vshrl.u32 %v82, 7
    %v84 = vsub.s32 0, %v83
    %v85 = vrot.slane %v58, %v84
    %v87 = vadd.f32 %v80, %v85
    %v88 = vld [vmem:[%s6] sm:$0x1]
    %v89 = vld [vmem:[%s1] sm:$0x3]
    %v91 = vlaneseq
    %v92 = vshrl.u32 %v91, 7
    %v93 = vsub.s32 0, %v92
    %v94 = vrot.slane %v88, %v93
    %v96 = vmul.f32 %v94, %v89
    %v97 = vld [vmem:[%s7] sm:$0x1]
    %v99 = vlaneseq
    %v100 = vshrl.u32 %v99, 7
    %v101 = vsub.s32 0, %v100
    %v102 = vrot.slane %v97, %v101
    %v104 = vadd.f32 %v96, %v102
    %v105 = vld [vmem:[%s8] sm:$0x1]
    %v106 = vld [vmem:[%s9] sm:$0x1]
    %v107 = vsel %vm59, %v104, 0.0
    %108 = vadd.xlane.f32.xlu0 %v107
    %v109 = vpop.xlane.xlu0 %108
    %v110 = vmul.f32 %v109, %v63
    %v111 = vsub.f32 %v104, %v110
    %v112 = vmul.f32 %v111, %v111
    %v113 = vsel %vm59, %v112, 0.0
    %114 = vadd.xlane.f32.xlu0 %v113
    %v115 = vpop.xlane.xlu0 %114
    %v116 = vmul.f32 %v115, %v63
    %v117 = vadd.f32 %v116, 1e-05
    %v118 = vrsqrt.pop %v117
    %v119 = vmul.f32 %v111, %v118
    %v121 = vlaneseq
    %v122 = vshrl.u32 %v121, 7
    %v123 = vsub.s32 0, %v122
    %v124 = vrot.slane %v105, %v123
    %v126 = vmul.f32 %v119, %v124
    %v128 = vlaneseq
    %v129 = vshrl.u32 %v128, 7
    %v130 = vsub.s32 0, %v129
    %v131 = vrot.slane %v106, %v130
    %v133 = vadd.f32 %v126, %v131
    %v134 = vadd.f32 %v87, %v133
    %v135 = vpack.c.bf16 %v134, %v134
    %v136 = vld [vmem:[%s10] sm:$0xf]
    %v137 = vld [vmem:[%s10 + $0x4] sm:$0xf]
    %v138 = vld [vmem:[%s10 + $0x8] sm:$0xf]
    %v139 = vld [vmem:[%s10 + $0xc] sm:$0xf]
    %v144 = vunpack.c.l.b16 %v136
    %v145 = vunpack.c.l.b16 %v137
    %v146 = vunpack.c.l.b16 %v138
    %v147 = vunpack.c.l.b16 %v139
    %v148 = vpack.c.b16 %v145, %v144
    %v149 = vpack.c.b16 %v147, %v146
    %vm152 = vcmask 261120
    %v154 = vsel %vm152, %v135, 0
    %156 = vmatprep.subr.bf16.mxu0 0
    %157 = vmatpush1.bf16.msra.mxu0 %v148
    %158 = vmatprep.subr.bf16.mxu0 0
    %159 = vmatpush1.bf16.msra.mxu0 %v149
    %160 = vmatprep.subr.bf16.mxu0 0
    %161 = vmatpush1.bf16.msra.mxu0 0
    %162 = vmatprep.subr.bf16.mxu0 0
    %163 = vmatpush1.bf16.msra.mxu0 0
    %164 = vmatprep.subr.bf16.mxu0 0
    %165 = vmatpush1.bf16.msra.mxu0 0
    %166 = vmatprep.subr.bf16.mxu0 0
    %167 = vmatpush1.bf16.msra.mxu0 0
    %168 = vmatprep.subr.bf16.mxu0 0
    %169 = vmatpush1.bf16.msra.mxu0 0
    %170 = vmatprep.subr.bf16.mxu0 0
    %171 = vmatpush1.bf16.msra.mxu0 0
    %172 = vmatprep.subr.bf16.mxu0 0
    %173 = vmatpush1.bf16.msra.mxu0 0
    %174 = vmatprep.subr.bf16.mxu0 0
    %175 = vmatpush1.bf16.msra.mxu0 0
    %176 = vmatprep.subr.bf16.mxu0 0
    %177 = vmatpush1.bf16.msra.mxu0 0
    %178 = vmatprep.subr.bf16.mxu0 0
    %179 = vmatpush1.bf16.msra.mxu0 0
    %180 = vmatprep.subr.bf16.mxu0 0
    %181 = vmatpush1.bf16.msra.mxu0 0
    %182 = vmatprep.subr.bf16.mxu0 0
    %183 = vmatpush1.bf16.msra.mxu0 0
    %184 = vmatprep.subr.bf16.mxu0 0
    %185 = vmatpush1.bf16.msra.mxu0 0
    %186 = vmatprep.subr.bf16.mxu0 0
    %187 = vmatpush1.bf16.msra.mxu0 0
    %188 = vmatprep.mubr.bf16.mxu0 0
    %189 = vmatmul.mubr.bf16.gmra.mrb[0].mxu0 %v154
    %v190 = vpop.f32.mrb[0].mxu0
    %v191 = vadd.f32 0.0, %v190
    %v192 = vpop.f32.mrb[0].mxu0
    %v193 = vpop.f32.mrb[0].mxu0
    %v194 = vpop.f32.mrb[0].mxu0
    %195 = vdwg.mxu0
    %196 = vst [vmem:[#allocation2] sm:$0x3] %v191
    // Predicated region
    $region46: #{tc4rec_forward.3} parent=1 // pred_check
      _
    $region47: #{tc4rec_forward.3} parent=1 // pred_check_branch
      %198 = sbr.rel (0) target = $region49
    $region48: #{tc4rec_forward.3} parent=1 // pred_region
      %s200 = ssub.s32 32, 32
      %201 = vsyncadd [#allocation3], %s200
      %s203 = sshll.u32 [#allocation2], 4
      %s204 = int_to_ptr.vmem [resolvable:$true] %s203
      %206 = dma.vmem_to_hbm [thread:$0]  %s204, 32, %s11, [#allocation3]
    $region49: #{tc4rec_forward.3} parent=1 // pred_fallthru
      _
    // Predicated region
    $region50: #{tc4rec_forward.3} parent=1 // pred_check
      _
    $region51: #{tc4rec_forward.3} parent=1 // pred_check_branch
      %208 = sbr.rel (0) target = $region53
    $region52: #{tc4rec_forward.3} parent=1 // pred_region
      %209 = dma.done [#allocation3], 32
    $region53: #{tc4rec_forward.3} parent=1 // pred_fallthru
      _
    %210 = vsyncpa [#allocation3], 1

// kernel: tc4rec_forward.2
$region0: #{tc4rec_forward.2}
  #allocation0 [shape = 'u32[]', space=smem, size = 0x4, offset = 0x4, fixed_abs, tag = 'smem constant byte address 0x4 - core index']
  #allocation1 [shape = 'u32[144,128]{1,0:T(1,128)}', space=vmem, size = 0x12000, scoped, tag = 'internal scratch']
  #allocation2 [shape = 'f32[2,16,32]{2,1,0:T(8,128)}', space=vmem, size = 0x4000, scoped, tag = 'scratch operand']
  %s0 = inlined_call_operand.vmem [shape: f32[2,16,32], index: 0, kind: input, shape index: {}]
  %s1 = inlined_call_operand.vmem [shape: f32[2,1,16], index: 1, kind: input, shape index: {}]
  %s2 = inlined_call_operand.vmem [shape: bf16[2,32,32], index: 2, kind: input, shape index: {}]
  %s3 = inlined_call_operand.vmem [shape: f32[2,1,32], index: 3, kind: input, shape index: {}]
  %s4 = inlined_call_operand.vmem [shape: bf16[2,32,32], index: 4, kind: input, shape index: {}]
  %s5 = inlined_call_operand.vmem [shape: f32[2,1,32], index: 5, kind: input, shape index: {}]
  %s6 = inlined_call_operand.vmem [shape: bf16[2,32,32], index: 6, kind: input, shape index: {}]
  %s7 = inlined_call_operand.vmem [shape: f32[2,1,32], index: 7, kind: input, shape index: {}]
  %s8 = inlined_call_operand.vmem [shape: bf16[2,32,32], index: 8, kind: input, shape index: {}]
  %s9 = inlined_call_operand.vmem [shape: f32[2,1,32], index: 9, kind: input, shape index: {}]
  %s10 = inlined_call_operand.vmem [shape: f32[2,1,32], index: 10, kind: input, shape index: {}]
  %s11 = inlined_call_operand.vmem [shape: f32[2,1,32], index: 11, kind: input, shape index: {}]
  %s12 = inlined_call_operand.vmem [shape: bf16[2,32,128], index: 12, kind: input, shape index: {}]
  %s13 = inlined_call_operand.vmem [shape: f32[2,1,128], index: 13, kind: input, shape index: {}]
  %s14 = inlined_call_operand.vmem [shape: bf16[2,128,32], index: 14, kind: input, shape index: {}]
  %s15 = inlined_call_operand.vmem [shape: f32[2,1,32], index: 15, kind: input, shape index: {}]
  %s16 = inlined_call_operand.vmem [shape: f32[2,1,32], index: 16, kind: input, shape index: {}]
  %s17 = inlined_call_operand.vmem [shape: f32[2,1,32], index: 17, kind: input, shape index: {}]
  %s18 = inlined_call_operand.vmem [shape: f32[2,8,32], index: 18, kind: output, shape index: {}]
  %s19 = sld [smem:[#allocation0]]
  $region113: #{tc4rec_forward.2} parent=0
    _
  %s21 = ssub.s32 1, %s19
  %s22 = scalar_select 0, %s21, %s19
  loop: start=0, step=1, limit=4
  $region2: #{tc4rec_forward.2} parent=0 // loop_pre_header
    _
  $region3: #{tc4rec_forward.2} parent=0 // loop_header
    %s24 = sphi 0, %s28
    %p25 = scmp.ge.s32.totalorder %s24, 4
    %s31 = sphi 0, %s43
    %s32 = sphi 0, %s39
    %s33 = sphi 0, %s31
    %s34 = sphi 0, %s32
    %s35 = sphi 0, %s33
    %s36 = sphi 0, %s34
    %s46 = sphi 0, %s48
    %s49 = sphi 0, %s46
    %s50 = sphi 0, %s49
    %s66 = sphi 0, %s50
    %s72 = sphi 0, %s74
    %s75 = sphi 0, %s72
    %s76 = sphi 0, %s75
    %s92 = sphi 0, %s76
    %s98 = sphi 0, %s100
    %s101 = sphi 0, %s98
    %s102 = sphi 0, %s101
    %s118 = sphi 0, %s102
    %s124 = sphi 0, %s126
    %s127 = sphi 0, %s124
    %s128 = sphi 0, %s127
    %s144 = sphi 0, %s128
    %s150 = sphi 0, %s152
    %s153 = sphi 0, %s150
    %s154 = sphi 0, %s153
    %s170 = sphi 0, %s154
    %s176 = sphi 0, %s178
    %s179 = sphi 0, %s176
    %s180 = sphi 0, %s179
    %s196 = sphi 0, %s180
    %s202 = sphi 0, %s204
    %s205 = sphi 0, %s202
    %s206 = sphi 0, %s205
    %s222 = sphi 0, %s206
    %s228 = sphi 0, %s230
    %s231 = sphi 0, %s228
    %s232 = sphi 0, %s231
    %s248 = sphi 0, %s232
    %s254 = sphi 0, %s256
    %s257 = sphi 0, %s254
    %s258 = sphi 0, %s257
    %s274 = sphi 0, %s258
    %s280 = sphi 0, %s282
    %s283 = sphi 0, %s280
    %s284 = sphi 0, %s283
    %s300 = sphi 0, %s284
    %s306 = sphi 0, %s308
    %s309 = sphi 0, %s306
    %s310 = sphi 0, %s309
    %s326 = sphi 0, %s310
    %s332 = sphi 0, %s334
    %s335 = sphi 0, %s332
    %s336 = sphi 0, %s335
    %s352 = sphi 0, %s336
    %s358 = sphi 0, %s360
    %s361 = sphi 0, %s358
    %s362 = sphi 0, %s361
    %s378 = sphi 0, %s362
    %s384 = sphi 0, %s386
    %s387 = sphi 0, %s384
    %s388 = sphi 0, %s387
    %s404 = sphi 0, %s388
    %s410 = sphi 0, %s412
    %s413 = sphi 0, %s410
    %s414 = sphi 0, %s413
    %s430 = sphi 0, %s414
    %s436 = sphi 0, %s438
    %s439 = sphi 0, %s436
    %s440 = sphi 0, %s439
    %s456 = sphi 0, %s440
    %s462 = sphi 0, %s464
    %s465 = sphi 0, %s462
    %s466 = sphi 0, %s465
    %s482 = sphi 0, %s466
    %s488 = sphi 0, %s490
    %s491 = sphi 0, %s488
    %s492 = sphi 0, %s491
    %s508 = sphi 0, %s492
    %s514 = sphi 0, %s516
    %s517 = sphi 0, %s514
    %s518 = sphi 0, %s517
    %s534 = sphi 0, %s518
  $region4: #{tc4rec_forward.2} parent=0 // loop_header_branch
    %27 = sbr.rel (%p25) target = $region8
  $region5: #{tc4rec_forward.2} parent=0 // loop_body
    %s29 = ssub.s32 %s24, 1
    %s30 = ssub.s32 %s24, 2
    %s37 = sadd.s32 1, %s32
    %p38 = scmp.ge.s32.totalorder %s37, 2
    %s39 = scalar_select %p38, 0, %s37
    %s40 = sadd.s32 1, %s31
    %s41 = scalar_select %p38, %s40, %s31
    %p42 = scmp.ge.s32.totalorder %s41, 1
    %s43 = scalar_select %p42, 0, %s41
    %s44 = ssub.s32 %s31, %s43
    %p45 = scmp.eq.s32.totalorder %s44, 0
    %s47 = sadd.s32 %s46, 1
    %s48 = scalar_select %p45, %s46, %s47
    %p51 = pneg %p45
    %p52 = scmp.eq.s32.totalorder %s24, 1
    %p53 = por %p51, %p52
    %p54 = scmp.ne.s32.totalorder %s46, %s49
    %p55 = scmp.eq.s32.totalorder %s24, 0
    %p56 = por %p54, %p55
    %p57 = scmp.ne.s32.totalorder %s46, %s49
    %p58 = scmp.eq.s32.totalorder %s29, 1
    %p59 = por %p57, %p58
    %p60 = scmp.ne.s32.totalorder %s49, %s50
    %p61 = scmp.eq.s32.totalorder %s29, 0
    %p62 = por %p60, %p61
    %p63 = scmp.ne.s32.totalorder %s49, %s50
    %p64 = scmp.eq.s32.totalorder %s30, 1
    %p65 = por %p63, %p64
    %p67 = scmp.ne.s32.totalorder %s50, %s66
    %p68 = scmp.eq.s32.totalorder %s30, 0
    %p69 = por %p67, %p68
    %s70 = ssub.s32 %s31, %s43
    %p71 = scmp.eq.s32.totalorder %s70, 0
    %s73 = sadd.s32 %s72, 1
    %s74 = scalar_select %p71, %s72, %s73
    %p77 = pneg %p71
    %p78 = scmp.eq.s32.totalorder %s24, 1
    %p79 = por %p77, %p78
    %p80 = scmp.ne.s32.totalorder %s72, %s75
    %p81 = scmp.eq.s32.totalorder %s24, 0
    %p82 = por %p80, %p81
    %p83 = scmp.ne.s32.totalorder %s72, %s75
    %p84 = scmp.eq.s32.totalorder %s29, 1
    %p85 = por %p83, %p84
    %p86 = scmp.ne.s32.totalorder %s75, %s76
    %p87 = scmp.eq.s32.totalorder %s29, 0
    %p88 = por %p86, %p87
    %p89 = scmp.ne.s32.totalorder %s75, %s76
    %p90 = scmp.eq.s32.totalorder %s30, 1
    %p91 = por %p89, %p90
    %p93 = scmp.ne.s32.totalorder %s76, %s92
    %p94 = scmp.eq.s32.totalorder %s30, 0
    %p95 = por %p93, %p94
    %s96 = ssub.s32 %s32, %s39
    %p97 = scmp.eq.s32.totalorder %s96, 0
    %s99 = sadd.s32 %s98, 1
    %s100 = scalar_select %p97, %s98, %s99
    %p103 = pneg %p97
    %p104 = scmp.eq.s32.totalorder %s24, 1
    %p105 = por %p103, %p104
    %p106 = scmp.ne.s32.totalorder %s98, %s101
    %p107 = scmp.eq.s32.totalorder %s24, 0
    %p108 = por %p106, %p107
    %p109 = scmp.ne.s32.totalorder %s98, %s101
    %p110 = scmp.eq.s32.totalorder %s29, 1
    %p111 = por %p109, %p110
    %p112 = scmp.ne.s32.totalorder %s101, %s102
    %p113 = scmp.eq.s32.totalorder %s29, 0
    %p114 = por %p112, %p113
    %p115 = scmp.ne.s32.totalorder %s101, %s102
    %p116 = scmp.eq.s32.totalorder %s30, 1
    %p117 = por %p115, %p116
    %p119 = scmp.ne.s32.totalorder %s102, %s118
    %p120 = scmp.eq.s32.totalorder %s30, 0
    %p121 = por %p119, %p120
    %s122 = ssub.s32 %s32, %s39
    %p123 = scmp.eq.s32.totalorder %s122, 0
    %s125 = sadd.s32 %s124, 1
    %s126 = scalar_select %p123, %s124, %s125
    %p129 = pneg %p123
    %p130 = scmp.eq.s32.totalorder %s24, 1
    %p131 = por %p129, %p130
    %p132 = scmp.ne.s32.totalorder %s124, %s127
    %p133 = scmp.eq.s32.totalorder %s24, 0
    %p134 = por %p132, %p133
    %p135 = scmp.ne.s32.totalorder %s124, %s127
    %p136 = scmp.eq.s32.totalorder %s29, 1
    %p137 = por %p135, %p136
    %p138 = scmp.ne.s32.totalorder %s127, %s128
    %p139 = scmp.eq.s32.totalorder %s29, 0
    %p140 = por %p138, %p139
    %p141 = scmp.ne.s32.totalorder %s127, %s128
    %p142 = scmp.eq.s32.totalorder %s30, 1
    %p143 = por %p141, %p142
    %p145 = scmp.ne.s32.totalorder %s128, %s144
    %p146 = scmp.eq.s32.totalorder %s30, 0
    %p147 = por %p145, %p146
    %s148 = ssub.s32 %s32, %s39
    %p149 = scmp.eq.s32.totalorder %s148, 0
    %s151 = sadd.s32 %s150, 1
    %s152 = scalar_select %p149, %s150, %s151
    %p155 = pneg %p149
    %p156 = scmp.eq.s32.totalorder %s24, 1
    %p157 = por %p155, %p156
    %p158 = scmp.ne.s32.totalorder %s150, %s153
    %p159 = scmp.eq.s32.totalorder %s24, 0
    %p160 = por %p158, %p159
    %p161 = scmp.ne.s32.totalorder %s150, %s153
    %p162 = scmp.eq.s32.totalorder %s29, 1
    %p163 = por %p161, %p162
    %p164 = scmp.ne.s32.totalorder %s153, %s154
    %p165 = scmp.eq.s32.totalorder %s29, 0
    %p166 = por %p164, %p165
    %p167 = scmp.ne.s32.totalorder %s153, %s154
    %p168 = scmp.eq.s32.totalorder %s30, 1
    %p169 = por %p167, %p168
    %p171 = scmp.ne.s32.totalorder %s154, %s170
    %p172 = scmp.eq.s32.totalorder %s30, 0
    %p173 = por %p171, %p172
    %s174 = ssub.s32 %s32, %s39
    %p175 = scmp.eq.s32.totalorder %s174, 0
    %s177 = sadd.s32 %s176, 1
    %s178 = scalar_select %p175, %s176, %s177
    %p181 = pneg %p175
    %p182 = scmp.eq.s32.totalorder %s24, 1
    %p183 = por %p181, %p182
    %p184 = scmp.ne.s32.totalorder %s176, %s179
    %p185 = scmp.eq.s32.totalorder %s24, 0
    %p186 = por %p184, %p185
    %p187 = scmp.ne.s32.totalorder %s176, %s179
    %p188 = scmp.eq.s32.totalorder %s29, 1
    %p189 = por %p187, %p188
    %p190 = scmp.ne.s32.totalorder %s179, %s180
    %p191 = scmp.eq.s32.totalorder %s29, 0
    %p192 = por %p190, %p191
    %p193 = scmp.ne.s32.totalorder %s179, %s180
    %p194 = scmp.eq.s32.totalorder %s30, 1
    %p195 = por %p193, %p194
    %p197 = scmp.ne.s32.totalorder %s180, %s196
    %p198 = scmp.eq.s32.totalorder %s30, 0
    %p199 = por %p197, %p198
    %s200 = ssub.s32 %s32, %s39
    %p201 = scmp.eq.s32.totalorder %s200, 0
    %s203 = sadd.s32 %s202, 1
    %s204 = scalar_select %p201, %s202, %s203
    %p207 = pneg %p201
    %p208 = scmp.eq.s32.totalorder %s24, 1
    %p209 = por %p207, %p208
    %p210 = scmp.ne.s32.totalorder %s202, %s205
    %p211 = scmp.eq.s32.totalorder %s24, 0
    %p212 = por %p210, %p211
    %p213 = scmp.ne.s32.totalorder %s202, %s205
    %p214 = scmp.eq.s32.totalorder %s29, 1
    %p215 = por %p213, %p214
    %p216 = scmp.ne.s32.totalorder %s205, %s206
    %p217 = scmp.eq.s32.totalorder %s29, 0
    %p218 = por %p216, %p217
    %p219 = scmp.ne.s32.totalorder %s205, %s206
    %p220 = scmp.eq.s32.totalorder %s30, 1
    %p221 = por %p219, %p220
    %p223 = scmp.ne.s32.totalorder %s206, %s222
    %p224 = scmp.eq.s32.totalorder %s30, 0
    %p225 = por %p223, %p224
    %s226 = ssub.s32 %s32, %s39
    %p227 = scmp.eq.s32.totalorder %s226, 0
    %s229 = sadd.s32 %s228, 1
    %s230 = scalar_select %p227, %s228, %s229
    %p233 = pneg %p227
    %p234 = scmp.eq.s32.totalorder %s24, 1
    %p235 = por %p233, %p234
    %p236 = scmp.ne.s32.totalorder %s228, %s231
    %p237 = scmp.eq.s32.totalorder %s24, 0
    %p238 = por %p236, %p237
    %p239 = scmp.ne.s32.totalorder %s228, %s231
    %p240 = scmp.eq.s32.totalorder %s29, 1
    %p241 = por %p239, %p240
    %p242 = scmp.ne.s32.totalorder %s231, %s232
    %p243 = scmp.eq.s32.totalorder %s29, 0
    %p244 = por %p242, %p243
    %p245 = scmp.ne.s32.totalorder %s231, %s232
    %p246 = scmp.eq.s32.totalorder %s30, 1
    %p247 = por %p245, %p246
    %p249 = scmp.ne.s32.totalorder %s232, %s248
    %p250 = scmp.eq.s32.totalorder %s30, 0
    %p251 = por %p249, %p250
    %s252 = ssub.s32 %s32, %s39
    %p253 = scmp.eq.s32.totalorder %s252, 0
    %s255 = sadd.s32 %s254, 1
    %s256 = scalar_select %p253, %s254, %s255
    %p259 = pneg %p253
    %p260 = scmp.eq.s32.totalorder %s24, 1
    %p261 = por %p259, %p260
    %p262 = scmp.ne.s32.totalorder %s254, %s257
    %p263 = scmp.eq.s32.totalorder %s24, 0
    %p264 = por %p262, %p263
    %p265 = scmp.ne.s32.totalorder %s254, %s257
    %p266 = scmp.eq.s32.totalorder %s29, 1
    %p267 = por %p265, %p266
    %p268 = scmp.ne.s32.totalorder %s257, %s258
    %p269 = scmp.eq.s32.totalorder %s29, 0
    %p270 = por %p268, %p269
    %p271 = scmp.ne.s32.totalorder %s257, %s258
    %p272 = scmp.eq.s32.totalorder %s30, 1
    %p273 = por %p271, %p272
    %p275 = scmp.ne.s32.totalorder %s258, %s274
    %p276 = scmp.eq.s32.totalorder %s30, 0
    %p277 = por %p275, %p276
    %s278 = ssub.s32 %s32, %s39
    %p279 = scmp.eq.s32.totalorder %s278, 0
    %s281 = sadd.s32 %s280, 1
    %s282 = scalar_select %p279, %s280, %s281
    %p285 = pneg %p279
    %p286 = scmp.eq.s32.totalorder %s24, 1
    %p287 = por %p285, %p286
    %p288 = scmp.ne.s32.totalorder %s280, %s283
    %p289 = scmp.eq.s32.totalorder %s24, 0
    %p290 = por %p288, %p289
    %p291 = scmp.ne.s32.totalorder %s280, %s283
    %p292 = scmp.eq.s32.totalorder %s29, 1
    %p293 = por %p291, %p292
    %p294 = scmp.ne.s32.totalorder %s283, %s284
    %p295 = scmp.eq.s32.totalorder %s29, 0
    %p296 = por %p294, %p295
    %p297 = scmp.ne.s32.totalorder %s283, %s284
    %p298 = scmp.eq.s32.totalorder %s30, 1
    %p299 = por %p297, %p298
    %p301 = scmp.ne.s32.totalorder %s284, %s300
    %p302 = scmp.eq.s32.totalorder %s30, 0
    %p303 = por %p301, %p302
    %s304 = ssub.s32 %s32, %s39
    %p305 = scmp.eq.s32.totalorder %s304, 0
    %s307 = sadd.s32 %s306, 1
    %s308 = scalar_select %p305, %s306, %s307
    %p311 = pneg %p305
    %p312 = scmp.eq.s32.totalorder %s24, 1
    %p313 = por %p311, %p312
    %p314 = scmp.ne.s32.totalorder %s306, %s309
    %p315 = scmp.eq.s32.totalorder %s24, 0
    %p316 = por %p314, %p315
    %p317 = scmp.ne.s32.totalorder %s306, %s309
    %p318 = scmp.eq.s32.totalorder %s29, 1
    %p319 = por %p317, %p318
    %p320 = scmp.ne.s32.totalorder %s309, %s310
    %p321 = scmp.eq.s32.totalorder %s29, 0
    %p322 = por %p320, %p321
    %p323 = scmp.ne.s32.totalorder %s309, %s310
    %p324 = scmp.eq.s32.totalorder %s30, 1
    %p325 = por %p323, %p324
    %p327 = scmp.ne.s32.totalorder %s310, %s326
    %p328 = scmp.eq.s32.totalorder %s30, 0
    %p329 = por %p327, %p328
    %s330 = ssub.s32 %s32, %s39
    %p331 = scmp.eq.s32.totalorder %s330, 0
    %s333 = sadd.s32 %s332, 1
    %s334 = scalar_select %p331, %s332, %s333
    %p337 = pneg %p331
    %p338 = scmp.eq.s32.totalorder %s24, 1
    %p339 = por %p337, %p338
    %p340 = scmp.ne.s32.totalorder %s332, %s335
    %p341 = scmp.eq.s32.totalorder %s24, 0
    %p342 = por %p340, %p341
    %p343 = scmp.ne.s32.totalorder %s332, %s335
    %p344 = scmp.eq.s32.totalorder %s29, 1
    %p345 = por %p343, %p344
    %p346 = scmp.ne.s32.totalorder %s335, %s336
    %p347 = scmp.eq.s32.totalorder %s29, 0
    %p348 = por %p346, %p347
    %p349 = scmp.ne.s32.totalorder %s335, %s336
    %p350 = scmp.eq.s32.totalorder %s30, 1
    %p351 = por %p349, %p350
    %p353 = scmp.ne.s32.totalorder %s336, %s352
    %p354 = scmp.eq.s32.totalorder %s30, 0
    %p355 = por %p353, %p354
    %s356 = ssub.s32 %s32, %s39
    %p357 = scmp.eq.s32.totalorder %s356, 0
    %s359 = sadd.s32 %s358, 1
    %s360 = scalar_select %p357, %s358, %s359
    %p363 = pneg %p357
    %p364 = scmp.eq.s32.totalorder %s24, 1
    %p365 = por %p363, %p364
    %p366 = scmp.ne.s32.totalorder %s358, %s361
    %p367 = scmp.eq.s32.totalorder %s24, 0
    %p368 = por %p366, %p367
    %p369 = scmp.ne.s32.totalorder %s358, %s361
    %p370 = scmp.eq.s32.totalorder %s29, 1
    %p371 = por %p369, %p370
    %p372 = scmp.ne.s32.totalorder %s361, %s362
    %p373 = scmp.eq.s32.totalorder %s29, 0
    %p374 = por %p372, %p373
    %p375 = scmp.ne.s32.totalorder %s361, %s362
    %p376 = scmp.eq.s32.totalorder %s30, 1
    %p377 = por %p375, %p376
    %p379 = scmp.ne.s32.totalorder %s362, %s378
    %p380 = scmp.eq.s32.totalorder %s30, 0
    %p381 = por %p379, %p380
    %s382 = ssub.s32 %s32, %s39
    %p383 = scmp.eq.s32.totalorder %s382, 0
    %s385 = sadd.s32 %s384, 1
    %s386 = scalar_select %p383, %s384, %s385
    %p389 = pneg %p383
    %p390 = scmp.eq.s32.totalorder %s24, 1
    %p391 = por %p389, %p390
    %p392 = scmp.ne.s32.totalorder %s384, %s387
    %p393 = scmp.eq.s32.totalorder %s24, 0
    %p394 = por %p392, %p393
    %p395 = scmp.ne.s32.totalorder %s384, %s387
    %p396 = scmp.eq.s32.totalorder %s29, 1
    %p397 = por %p395, %p396
    %p398 = scmp.ne.s32.totalorder %s387, %s388
    %p399 = scmp.eq.s32.totalorder %s29, 0
    %p400 = por %p398, %p399
    %p401 = scmp.ne.s32.totalorder %s387, %s388
    %p402 = scmp.eq.s32.totalorder %s30, 1
    %p403 = por %p401, %p402
    %p405 = scmp.ne.s32.totalorder %s388, %s404
    %p406 = scmp.eq.s32.totalorder %s30, 0
    %p407 = por %p405, %p406
    %s408 = ssub.s32 %s32, %s39
    %p409 = scmp.eq.s32.totalorder %s408, 0
    %s411 = sadd.s32 %s410, 1
    %s412 = scalar_select %p409, %s410, %s411
    %p415 = pneg %p409
    %p416 = scmp.eq.s32.totalorder %s24, 1
    %p417 = por %p415, %p416
    %p418 = scmp.ne.s32.totalorder %s410, %s413
    %p419 = scmp.eq.s32.totalorder %s24, 0
    %p420 = por %p418, %p419
    %p421 = scmp.ne.s32.totalorder %s410, %s413
    %p422 = scmp.eq.s32.totalorder %s29, 1
    %p423 = por %p421, %p422
    %p424 = scmp.ne.s32.totalorder %s413, %s414
    %p425 = scmp.eq.s32.totalorder %s29, 0
    %p426 = por %p424, %p425
    %p427 = scmp.ne.s32.totalorder %s413, %s414
    %p428 = scmp.eq.s32.totalorder %s30, 1
    %p429 = por %p427, %p428
    %p431 = scmp.ne.s32.totalorder %s414, %s430
    %p432 = scmp.eq.s32.totalorder %s30, 0
    %p433 = por %p431, %p432
    %s434 = ssub.s32 %s32, %s39
    %p435 = scmp.eq.s32.totalorder %s434, 0
    %s437 = sadd.s32 %s436, 1
    %s438 = scalar_select %p435, %s436, %s437
    %p441 = pneg %p435
    %p442 = scmp.eq.s32.totalorder %s24, 1
    %p443 = por %p441, %p442
    %p444 = scmp.ne.s32.totalorder %s436, %s439
    %p445 = scmp.eq.s32.totalorder %s24, 0
    %p446 = por %p444, %p445
    %p447 = scmp.ne.s32.totalorder %s436, %s439
    %p448 = scmp.eq.s32.totalorder %s29, 1
    %p449 = por %p447, %p448
    %p450 = scmp.ne.s32.totalorder %s439, %s440
    %p451 = scmp.eq.s32.totalorder %s29, 0
    %p452 = por %p450, %p451
    %p453 = scmp.ne.s32.totalorder %s439, %s440
    %p454 = scmp.eq.s32.totalorder %s30, 1
    %p455 = por %p453, %p454
    %p457 = scmp.ne.s32.totalorder %s440, %s456
    %p458 = scmp.eq.s32.totalorder %s30, 0
    %p459 = por %p457, %p458
    %s460 = ssub.s32 %s32, %s39
    %p461 = scmp.eq.s32.totalorder %s460, 0
    %s463 = sadd.s32 %s462, 1
    %s464 = scalar_select %p461, %s462, %s463
    %p467 = pneg %p461
    %p468 = scmp.eq.s32.totalorder %s24, 1
    %p469 = por %p467, %p468
    %p470 = scmp.ne.s32.totalorder %s462, %s465
    %p471 = scmp.eq.s32.totalorder %s24, 0
    %p472 = por %p470, %p471
    %p473 = scmp.ne.s32.totalorder %s462, %s465
    %p474 = scmp.eq.s32.totalorder %s29, 1
    %p475 = por %p473, %p474
    %p476 = scmp.ne.s32.totalorder %s465, %s466
    %p477 = scmp.eq.s32.totalorder %s29, 0
    %p478 = por %p476, %p477
    %p479 = scmp.ne.s32.totalorder %s465, %s466
    %p480 = scmp.eq.s32.totalorder %s30, 1
    %p481 = por %p479, %p480
    %p483 = scmp.ne.s32.totalorder %s466, %s482
    %p484 = scmp.eq.s32.totalorder %s30, 0
    %p485 = por %p483, %p484
    %s486 = ssub.s32 %s32, %s39
    %p487 = scmp.eq.s32.totalorder %s486, 0
    %s489 = sadd.s32 %s488, 1
    %s490 = scalar_select %p487, %s488, %s489
    %p493 = pneg %p487
    %p494 = scmp.eq.s32.totalorder %s24, 1
    %p495 = por %p493, %p494
    %p496 = scmp.ne.s32.totalorder %s488, %s491
    %p497 = scmp.eq.s32.totalorder %s24, 0
    %p498 = por %p496, %p497
    %p499 = scmp.ne.s32.totalorder %s488, %s491
    %p500 = scmp.eq.s32.totalorder %s29, 1
    %p501 = por %p499, %p500
    %p502 = scmp.ne.s32.totalorder %s491, %s492
    %p503 = scmp.eq.s32.totalorder %s29, 0
    %p504 = por %p502, %p503
    %p505 = scmp.ne.s32.totalorder %s491, %s492
    %p506 = scmp.eq.s32.totalorder %s30, 1
    %p507 = por %p505, %p506
    %p509 = scmp.ne.s32.totalorder %s492, %s508
    %p510 = scmp.eq.s32.totalorder %s30, 0
    %p511 = por %p509, %p510
    %s512 = ssub.s32 %s31, %s43
    %p513 = scmp.eq.s32.totalorder %s512, 0
    %s515 = sadd.s32 %s514, 1
    %s516 = scalar_select %p513, %s514, %s515
    %p519 = pneg %p513
    %p520 = scmp.eq.s32.totalorder %s24, 1
    %p521 = por %p519, %p520
    %p522 = scmp.ne.s32.totalorder %s514, %s517
    %p523 = scmp.eq.s32.totalorder %s24, 0
    %p524 = por %p522, %p523
    %p525 = scmp.ne.s32.totalorder %s514, %s517
    %p526 = scmp.eq.s32.totalorder %s29, 1
    %p527 = por %p525, %p526
    %p528 = scmp.ne.s32.totalorder %s517, %s518
    %p529 = scmp.eq.s32.totalorder %s29, 0
    %p530 = por %p528, %p529
    %p531 = scmp.ne.s32.totalorder %s517, %s518
    %p532 = scmp.eq.s32.totalorder %s30, 1
    %p533 = por %p531, %p532
    %p535 = scmp.ne.s32.totalorder %s518, %s534
    %p536 = scmp.eq.s32.totalorder %s30, 0
    %p537 = por %p535, %p536
    %p538 = scmp.le.s32.totalorder 1, %s24
    %p539 = scmp.lt.s32.totalorder %s24, 3
    %p540 = pnand %p538, %p539
    %p541 = pneg %p540
    // Predicated region
    $region9: #{tc4rec_forward.2} parent=5 // pred_check
      _
    $region10: #{tc4rec_forward.2} parent=5 // pred_check_branch
      %543 = sbr.rel (%p540) target = $region12
    $region11: #{tc4rec_forward.2} parent=5 // pred_region
      %s544 = ssub.s32 %s24, 1
      // Predicated region
      $region13: #{tc4rec_forward.2} parent=11 // pred_check
        %p545 = pneg %p62
      $region14: #{tc4rec_forward.2} parent=11 // pred_check_branch
        %547 = sbr.rel (%p545) target = $region16
      $region15: #{tc4rec_forward.2} parent=11 // pred_region
        %s548 = smul.u32 2, %s33
        %p549 = scmp.lt.s32.totalorder %s548, 1
        %s550 = scalar_select %p549, %s548, 1
        %s551 = smul.addr %s550, 2
        %s552 = smul.addr %s551, 8
        %s553 = scalar_lea.vmem %s0, %s552
        %s554 = smul.u32 2, %s33
      $region16: #{tc4rec_forward.2} parent=11 // pred_fallthru
        _
      // Predicated region
      $region17: #{tc4rec_forward.2} parent=11 // pred_check
        %p555 = pneg %p88
      $region18: #{tc4rec_forward.2} parent=11 // pred_check_branch
        %557 = sbr.rel (%p555) target = $region20
      $region19: #{tc4rec_forward.2} parent=11 // pred_region
        %s558 = smul.u32 2, %s33
        %p559 = scmp.lt.s32.totalorder %s558, 1
        %s560 = scalar_select %p559, %s558, 1
        %s561 = scalar_lea.vmem %s1, %s560
        %s562 = smul.u32 2, %s33
      $region20: #{tc4rec_forward.2} parent=11 // pred_fallthru
        _
    $region12: #{tc4rec_forward.2} parent=5 // pred_fallthru
      _
    %p563 = scmp.lt.s32.totalorder %s24, 2
    // Predicated region
    $region21: #{tc4rec_forward.2} parent=5 // pred_check
      %p564 = pneg %p563
    $region22: #{tc4rec_forward.2} parent=5 // pred_check_branch
      %566 = sbr.rel (%p564) target = $region24
    $region23: #{tc4rec_forward.2} parent=5 // pred_region
      // Predicated region
      $region25: #{tc4rec_forward.2} parent=23 // pred_check
        %p567 = pneg %p108
      $region26: #{tc4rec_forward.2} parent=23 // pred_check_branch
        %569 = sbr.rel (%p567) target = $region28
      $region27: #{tc4rec_forward.2} parent=23 // pred_region
        %p570 = scmp.lt.s32.totalorder %s32, 1
        %s571 = scalar_select %p570, %s32, 1
        %s572 = smul.addr %s571, 4
        %s573 = smul.addr %s572, 4
        %s574 = scalar_lea.vmem %s2, %s573
      $region28: #{tc4rec_forward.2} parent=23 // pred_fallthru
        _
      // Predicated region
      $region29: #{tc4rec_forward.2} parent=23 // pred_check
        %p575 = pneg %p134
      $region30: #{tc4rec_forward.2} parent=23 // pred_check_branch
        %577 = sbr.rel (%p575) target = $region32
      $region31: #{tc4rec_forward.2} parent=23 // pred_region
        %p578 = scmp.lt.s32.totalorder %s32, 1
        %s579 = scalar_select %p578, %s32, 1
        %s580 = scalar_lea.vmem %s3, %s579
      $region32: #{tc4rec_forward.2} parent=23 // pred_fallthru
        _
      // Predicated region
      $region33: #{tc4rec_forward.2} parent=23 // pred_check
        %p581 = pneg %p160
      $region34: #{tc4rec_forward.2} parent=23 // pred_check_branch
        %583 = sbr.rel (%p581) target = $region36
      $region35: #{tc4rec_forward.2} parent=23 // pred_region
        %p584 = scmp.lt.s32.totalorder %s32, 1
        %s585 = scalar_select %p584, %s32, 1
        %s586 = smul.addr %s585, 4
        %s587 = smul.addr %s586, 4
        %s588 = scalar_lea.vmem %s4, %s587
      $region36: #{tc4rec_forward.2} parent=23 // pred_fallthru
        _
      // Predicated region
      $region37: #{tc4rec_forward.2} parent=23 // pred_check
        %p589 = pneg %p186
      $region38: #{tc4rec_forward.2} parent=23 // pred_check_branch
        %591 = sbr.rel (%p589) target = $region40
      $region39: #{tc4rec_forward.2} parent=23 // pred_region
        %p592 = scmp.lt.s32.totalorder %s32, 1
        %s593 = scalar_select %p592, %s32, 1
        %s594 = scalar_lea.vmem %s5, %s593
      $region40: #{tc4rec_forward.2} parent=23 // pred_fallthru
        _
      // Predicated region
      $region41: #{tc4rec_forward.2} parent=23 // pred_check
        %p595 = pneg %p212
      $region42: #{tc4rec_forward.2} parent=23 // pred_check_branch
        %597 = sbr.rel (%p595) target = $region44
      $region43: #{tc4rec_forward.2} parent=23 // pred_region
        %p598 = scmp.lt.s32.totalorder %s32, 1
        %s599 = scalar_select %p598, %s32, 1
        %s600 = smul.addr %s599, 4
        %s601 = smul.addr %s600, 4
        %s602 = scalar_lea.vmem %s6, %s601
      $region44: #{tc4rec_forward.2} parent=23 // pred_fallthru
        _
      // Predicated region
      $region45: #{tc4rec_forward.2} parent=23 // pred_check
        %p603 = pneg %p238
      $region46: #{tc4rec_forward.2} parent=23 // pred_check_branch
        %605 = sbr.rel (%p603) target = $region48
      $region47: #{tc4rec_forward.2} parent=23 // pred_region
        %p606 = scmp.lt.s32.totalorder %s32, 1
        %s607 = scalar_select %p606, %s32, 1
        %s608 = scalar_lea.vmem %s7, %s607
      $region48: #{tc4rec_forward.2} parent=23 // pred_fallthru
        _
      // Predicated region
      $region49: #{tc4rec_forward.2} parent=23 // pred_check
        %p609 = pneg %p264
      $region50: #{tc4rec_forward.2} parent=23 // pred_check_branch
        %611 = sbr.rel (%p609) target = $region52
      $region51: #{tc4rec_forward.2} parent=23 // pred_region
        %p612 = scmp.lt.s32.totalorder %s32, 1
        %s613 = scalar_select %p612, %s32, 1
        %s614 = smul.addr %s613, 4
        %s615 = smul.addr %s614, 4
        %s616 = scalar_lea.vmem %s8, %s615
      $region52: #{tc4rec_forward.2} parent=23 // pred_fallthru
        _
      // Predicated region
      $region53: #{tc4rec_forward.2} parent=23 // pred_check
        %p617 = pneg %p290
      $region54: #{tc4rec_forward.2} parent=23 // pred_check_branch
        %619 = sbr.rel (%p617) target = $region56
      $region55: #{tc4rec_forward.2} parent=23 // pred_region
        %p620 = scmp.lt.s32.totalorder %s32, 1
        %s621 = scalar_select %p620, %s32, 1
        %s622 = scalar_lea.vmem %s9, %s621
      $region56: #{tc4rec_forward.2} parent=23 // pred_fallthru
        _
      // Predicated region
      $region57: #{tc4rec_forward.2} parent=23 // pred_check
        %p623 = pneg %p316
      $region58: #{tc4rec_forward.2} parent=23 // pred_check_branch
        %625 = sbr.rel (%p623) target = $region60
      $region59: #{tc4rec_forward.2} parent=23 // pred_region
        %p626 = scmp.lt.s32.totalorder %s32, 1
        %s627 = scalar_select %p626, %s32, 1
        %s628 = scalar_lea.vmem %s10, %s627
      $region60: #{tc4rec_forward.2} parent=23 // pred_fallthru
        _
      // Predicated region
      $region61: #{tc4rec_forward.2} parent=23 // pred_check
        %p629 = pneg %p342
      $region62: #{tc4rec_forward.2} parent=23 // pred_check_branch
        %631 = sbr.rel (%p629) target = $region64
      $region63: #{tc4rec_forward.2} parent=23 // pred_region
        %p632 = scmp.lt.s32.totalorder %s32, 1
        %s633 = scalar_select %p632, %s32, 1
        %s634 = scalar_lea.vmem %s11, %s633
      $region64: #{tc4rec_forward.2} parent=23 // pred_fallthru
        _
      // Predicated region
      $region65: #{tc4rec_forward.2} parent=23 // pred_check
        %p635 = pneg %p368
      $region66: #{tc4rec_forward.2} parent=23 // pred_check_branch
        %637 = sbr.rel (%p635) target = $region68
      $region67: #{tc4rec_forward.2} parent=23 // pred_region
        %p638 = scmp.lt.s32.totalorder %s32, 1
        %s639 = scalar_select %p638, %s32, 1
        %s640 = smul.addr %s639, 4
        %s641 = smul.addr %s640, 4
        %s642 = scalar_lea.vmem %s12, %s641
      $region68: #{tc4rec_forward.2} parent=23 // pred_fallthru
        _
      // Predicated region
      $region69: #{tc4rec_forward.2} parent=23 // pred_check
        %p643 = pneg %p394
      $region70: #{tc4rec_forward.2} parent=23 // pred_check_branch
        %645 = sbr.rel (%p643) target = $region72
      $region71: #{tc4rec_forward.2} parent=23 // pred_region
        %p646 = scmp.lt.s32.totalorder %s32, 1
        %s647 = scalar_select %p646, %s32, 1
        %s648 = scalar_lea.vmem %s13, %s647
      $region72: #{tc4rec_forward.2} parent=23 // pred_fallthru
        _
      // Predicated region
      $region73: #{tc4rec_forward.2} parent=23 // pred_check
        %p649 = pneg %p420
      $region74: #{tc4rec_forward.2} parent=23 // pred_check_branch
        %651 = sbr.rel (%p649) target = $region76
      $region75: #{tc4rec_forward.2} parent=23 // pred_region
        %p652 = scmp.lt.s32.totalorder %s32, 1
        %s653 = scalar_select %p652, %s32, 1
        %s654 = smul.addr %s653, 16
        %s655 = smul.addr %s654, 4
        %s656 = scalar_lea.vmem %s14, %s655
      $region76: #{tc4rec_forward.2} parent=23 // pred_fallthru
        _
      // Predicated region
      $region77: #{tc4rec_forward.2} parent=23 // pred_check
        %p657 = pneg %p446
      $region78: #{tc4rec_forward.2} parent=23 // pred_check_branch
        %659 = sbr.rel (%p657) target = $region80
      $region79: #{tc4rec_forward.2} parent=23 // pred_region
        %p660 = scmp.lt.s32.totalorder %s32, 1
        %s661 = scalar_select %p660, %s32, 1
        %s662 = scalar_lea.vmem %s15, %s661
      $region80: #{tc4rec_forward.2} parent=23 // pred_fallthru
        _
      // Predicated region
      $region81: #{tc4rec_forward.2} parent=23 // pred_check
        %p663 = pneg %p472
      $region82: #{tc4rec_forward.2} parent=23 // pred_check_branch
        %665 = sbr.rel (%p663) target = $region84
      $region83: #{tc4rec_forward.2} parent=23 // pred_region
        %p666 = scmp.lt.s32.totalorder %s32, 1
        %s667 = scalar_select %p666, %s32, 1
        %s668 = scalar_lea.vmem %s16, %s667
      $region84: #{tc4rec_forward.2} parent=23 // pred_fallthru
        _
      // Predicated region
      $region85: #{tc4rec_forward.2} parent=23 // pred_check
        %p669 = pneg %p498
      $region86: #{tc4rec_forward.2} parent=23 // pred_check_branch
        %671 = sbr.rel (%p669) target = $region88
      $region87: #{tc4rec_forward.2} parent=23 // pred_region
        %p672 = scmp.lt.s32.totalorder %s32, 1
        %s673 = scalar_select %p672, %s32, 1
        %s674 = scalar_lea.vmem %s17, %s673
      $region88: #{tc4rec_forward.2} parent=23 // pred_fallthru
        _
    $region24: #{tc4rec_forward.2} parent=5 // pred_fallthru
      _
    %p675 = scmp.le.s32.totalorder 1, %s24
    %p676 = scmp.lt.s32.totalorder %s24, 3
    %p677 = pnand %p675, %p676
    %p678 = pneg %p677
    // Predicated region
    $region89: #{tc4rec_forward.2} parent=5 // pred_check
      _
    $region90: #{tc4rec_forward.2} parent=5 // pred_check_branch
      %680 = sbr.rel (%p677) target = $region92
    $region91: #{tc4rec_forward.2} parent=5 // pred_region
      %s681 = ssub.s32 %s24, 1
      %s682 = smul.u32 2, %s33
      %p683 = scmp.lt.s32.totalorder %s682, 1
      %s684 = scalar_select %p683, %s682, 1
      %s685 = smul.addr %s684, 2
      %s686 = smul.addr %s685, 8
      %s687 = scalar_lea.vmem %s0, %s686
      %p688 = pneg %p62
      %p689 = pneg %p59
      %s690 = smul.u32 2, %s33
      %p691 = scmp.lt.s32.totalorder %s690, 1
      %s692 = scalar_select %p691, %s690, 1
      %s693 = scalar_lea.vmem %s1, %s692
      %p694 = pneg %p88
      %p695 = pneg %p85
      %p696 = scmp.lt.s32.totalorder %s34, 1
      %s697 = scalar_select %p696, %s34, 1
      %s698 = smul.addr %s697, 4
      %s699 = smul.addr %s698, 4
      %s700 = scalar_lea.vmem %s2, %s699
      %p701 = pneg %p114
      %p702 = pneg %p111
      %p703 = scmp.lt.s32.totalorder %s34, 1
      %s704 = scalar_select %p703, %s34, 1
      %s705 = scalar_lea.vmem %s3, %s704
      %p706 = pneg %p140
      %p707 = pneg %p137
      %p708 = scmp.lt.s32.totalorder %s34, 1
      %s709 = scalar_select %p708, %s34, 1
      %s710 = smul.addr %s709, 4
      %s711 = smul.addr %s710, 4
      %s712 = scalar_lea.vmem %s4, %s711
      %p713 = pneg %p166
      %p714 = pneg %p163
      %p715 = scmp.lt.s32.totalorder %s34, 1
      %s716 = scalar_select %p715, %s34, 1
      %s717 = scalar_lea.vmem %s5, %s716
      %p718 = pneg %p192
      %p719 = pneg %p189
      %p720 = scmp.lt.s32.totalorder %s34, 1
      %s721 = scalar_select %p720, %s34, 1
      %s722 = smul.addr %s721, 4
      %s723 = smul.addr %s722, 4
      %s724 = scalar_lea.vmem %s6, %s723
      %p725 = pneg %p218
      %p726 = pneg %p215
      %p727 = scmp.lt.s32.totalorder %s34, 1
      %s728 = scalar_select %p727, %s34, 1
      %s729 = scalar_lea.vmem %s7, %s728
      %p730 = pneg %p244
      %p731 = pneg %p241
      %p732 = scmp.lt.s32.totalorder %s34, 1
      %s733 = scalar_select %p732, %s34, 1
      %s734 = smul.addr %s733, 4
      %s735 = smul.addr %s734, 4
      %s736 = scalar_lea.vmem %s8, %s735
      %p737 = pneg %p270
      %p738 = pneg %p267
      %p739 = scmp.lt.s32.totalorder %s34, 1
      %s740 = scalar_select %p739, %s34, 1
      %s741 = scalar_lea.vmem %s9, %s740
      %p742 = pneg %p296
      %p743 = pneg %p293
      %p744 = scmp.lt.s32.totalorder %s34, 1
      %s745 = scalar_select %p744, %s34, 1
      %s746 = scalar_lea.vmem %s10, %s745
      %p747 = pneg %p322
      %p748 = pneg %p319
      %p749 = scmp.lt.s32.totalorder %s34, 1
      %s750 = scalar_select %p749, %s34, 1
      %s751 = scalar_lea.vmem %s11, %s750
      %p752 = pneg %p348
      %p753 = pneg %p345
      %p754 = scmp.lt.s32.totalorder %s34, 1
      %s755 = scalar_select %p754, %s34, 1
      %s756 = smul.addr %s755, 4
      %s757 = smul.addr %s756, 4
      %s758 = scalar_lea.vmem %s12, %s757
      %p759 = pneg %p374
      %p760 = pneg %p371
      %p761 = scmp.lt.s32.totalorder %s34, 1
      %s762 = scalar_select %p761, %s34, 1
      %s763 = scalar_lea.vmem %s13, %s762
      %p764 = pneg %p400
      %p765 = pneg %p397
      %p766 = scmp.lt.s32.totalorder %s34, 1
      %s767 = scalar_select %p766, %s34, 1
      %s768 = smul.addr %s767, 16
      %s769 = smul.addr %s768, 4
      %s770 = scalar_lea.vmem %s14, %s769
      %p771 = pneg %p426
      %p772 = pneg %p423
      %p773 = scmp.lt.s32.totalorder %s34, 1
      %s774 = scalar_select %p773, %s34, 1
      %s775 = scalar_lea.vmem %s15, %s774
      %p776 = pneg %p452
      %p777 = pneg %p449
      %p778 = scmp.lt.s32.totalorder %s34, 1
      %s779 = scalar_select %p778, %s34, 1
      %s780 = scalar_lea.vmem %s16, %s779
      %p781 = pneg %p478
      %p782 = pneg %p475
      %p783 = scmp.lt.s32.totalorder %s34, 1
      %s784 = scalar_select %p783, %s34, 1
      %s785 = scalar_lea.vmem %s17, %s784
      %p786 = pneg %p504
      %p787 = pneg %p501
      %p788 = pneg %p530
      %p789 = pneg %p527
      %s790 = smul.u32 2, %s33
      %p791 = scmp.lt.s32.totalorder %s790, 1
      %s792 = scalar_select %p791, %s790, 1
      %s793 = smul.addr %s792, 8
      %s794 = scalar_lea.vmem %s18, %s793
      %s795 = smul.u32 2, %s33
      %p796 = scmp.lt.s32.totalorder %s795, 1
      %s797 = scalar_select %p796, %s795, 1
      %s798 = smul.addr %s797, 2
      %s799 = smul.addr %s798, 8
      %s800 = scalar_lea.vmem %s0, %s799
      %s801 = smul.u32 2, %s33
      %s802 = smul.u32 2, %s33
      %p803 = scmp.lt.s32.totalorder %s802, 1
      %s804 = scalar_select %p803, %s802, 1
      %s805 = scalar_lea.vmem %s1, %s804
      %s806 = smul.u32 2, %s33
      %p807 = scmp.lt.s32.totalorder %s34, 1
      %s808 = scalar_select %p807, %s34, 1
      %s809 = smul.addr %s808, 4
      %s810 = smul.addr %s809, 4
      %s811 = scalar_lea.vmem %s2, %s810
      %p812 = scmp.lt.s32.totalorder %s34, 1
      %s813 = scalar_select %p812, %s34, 1
      %s814 = scalar_lea.vmem %s3, %s813
      %p815 = scmp.lt.s32.totalorder %s34, 1
      %s816 = scalar_select %p815, %s34, 1
      %s817 = smul.addr %s816, 4
      %s818 = smul.addr %s817, 4
      %s819 = scalar_lea.vmem %s4, %s818
      %p820 = scmp.lt.s32.totalorder %s34, 1
      %s821 = scalar_select %p820, %s34, 1
      %s822 = scalar_lea.vmem %s5, %s821
      %p823 = scmp.lt.s32.totalorder %s34, 1
      %s824 = scalar_select %p823, %s34, 1
      %s825 = smul.addr %s824, 4
      %s826 = smul.addr %s825, 4
      %s827 = scalar_lea.vmem %s6, %s826
      %p828 = scmp.lt.s32.totalorder %s34, 1
      %s829 = scalar_select %p828, %s34, 1
      %s830 = scalar_lea.vmem %s7, %s829
      %p831 = scmp.lt.s32.totalorder %s34, 1
      %s832 = scalar_select %p831, %s34, 1
      %s833 = smul.addr %s832, 4
      %s834 = smul.addr %s833, 4
      %s835 = scalar_lea.vmem %s8, %s834
      %p836 = scmp.lt.s32.totalorder %s34, 1
      %s837 = scalar_select %p836, %s34, 1
      %s838 = scalar_lea.vmem %s9, %s837
      %p839 = scmp.lt.s32.totalorder %s34, 1
      %s840 = scalar_select %p839, %s34, 1
      %s841 = scalar_lea.vmem %s10, %s840
      %p842 = scmp.lt.s32.totalorder %s34, 1
      %s843 = scalar_select %p842, %s34, 1
      %s844 = scalar_lea.vmem %s11, %s843
      %p845 = scmp.lt.s32.totalorder %s34, 1
      %s846 = scalar_select %p845, %s34, 1
      %s847 = smul.addr %s846, 4
      %s848 = smul.addr %s847, 4
      %s849 = scalar_lea.vmem %s12, %s848
      %p850 = scmp.lt.s32.totalorder %s34, 1
      %s851 = scalar_select %p850, %s34, 1
      %s852 = scalar_lea.vmem %s13, %s851
      %p853 = scmp.lt.s32.totalorder %s34, 1
      %s854 = scalar_select %p853, %s34, 1
      %s855 = smul.addr %s854, 16
      %s856 = smul.addr %s855, 4
      %s857 = scalar_lea.vmem %s14, %s856
      %p858 = scmp.lt.s32.totalorder %s34, 1
      %s859 = scalar_select %p858, %s34, 1
      %s860 = scalar_lea.vmem %s15, %s859
      %p861 = scmp.lt.s32.totalorder %s34, 1
      %s862 = scalar_select %p861, %s34, 1
      %s863 = scalar_lea.vmem %s16, %s862
      %p864 = scmp.lt.s32.totalorder %s34, 1
      %s865 = scalar_select %p864, %s34, 1
      %s866 = scalar_lea.vmem %s17, %s865
      %s867 = smul.u32 2, %s33
      %p868 = scmp.lt.s32.totalorder %s867, 1
      %s869 = scalar_select %p868, %s867, 1
      %s870 = smul.addr %s869, 8
      %s871 = scalar_lea.vmem %s18, %s870
      %s872 = smul.u32 2, %s33
      %p874 = scmp.eq.s32.totalorder %s34, 0
      // Predicated region
      $region93: #{tc4rec_forward.2} parent=91 // pred_check
        %p875 = pneg %p874
      $region94: #{tc4rec_forward.2} parent=91 // pred_check_branch
        %877 = sbr.rel (%p875) target = $region96
      $region95: #{tc4rec_forward.2} parent=91 // pred_region
        %v878 = vld [vmem:[%s800] sm:$0xff]
        %v879 = vld [vmem:[%s800 + $0x8] sm:$0xff]
        %v880 = vld [vmem:[%s800 + $0x10] sm:$0xff]
        %v881 = vld [vmem:[%s800 + $0x18] sm:$0xff]
        %vm882 = vcmask 261120
        %883 = vst.msk [vmem:[#allocation2] sm:$0xff] %vm882, %v878
        %884 = vst.msk [vmem:[#allocation2 + $0x8] sm:$0xff] %vm882, %v879
        %885 = vst.msk [vmem:[#allocation2 + $0x10] sm:$0xff] %vm882, %v880
        %886 = vst.msk [vmem:[#allocation2 + $0x18] sm:$0xff] %vm882, %v881
      $region96: #{tc4rec_forward.2} parent=91 // pred_fallthru
        _
      %v887 = vld [vmem:[#allocation2] sm:$0xff]
      %v888 = vld [vmem:[#allocation2 + $0x8] sm:$0xff]
      %v889 = vld [vmem:[#allocation2 + $0x10] sm:$0xff]
      %v890 = vld [vmem:[#allocation2 + $0x18] sm:$0xff]
      %v891 = vpack.c.bf16 %v888, %v887
      %v892 = vpack.c.bf16 %v890, %v889
      %v893 = vld [vmem:[%s811] sm:$0xf]
      %v894 = vld [vmem:[%s811 + $0x4] sm:$0xf]
      %v895 = vld [vmem:[%s811 + $0x8] sm:$0xf]
      %v896 = vld [vmem:[%s811 + $0xc] sm:$0xf]
      %v897 = vld [vmem:[%s814] sm:$0x1]
      %v899 = vlaneseq
      %v900 = vshrl.u32 %v899, 7
      %v901 = vsub.s32 0, %v900
      %v902 = vrot.slane %v897, %v901
      %v908 = vunpack.c.l.b16 %v893
      %v909 = vunpack.c.l.b16 %v894
      %v910 = vunpack.c.l.b16 %v895
      %v911 = vunpack.c.l.b16 %v896
      %v912 = vpack.c.b16 %v909, %v908
      %v913 = vpack.c.b16 %v911, %v910
      %vm916 = vcmask 261120
      %v918 = vsel %vm916, %v891, 0
      %v921 = vsel %vm916, %v892, 0
      %923 = vmatprep.subr.bf16.mxu0 0
      %924 = vmatpush1.bf16.msra.mxu0 %v912
      %925 = vmatprep.subr.bf16.mxu0 0
      %926 = vmatpush1.bf16.msra.mxu0 %v913
      %927 = vmatprep.subr.bf16.mxu0 0
      %928 = vmatpush1.bf16.msra.mxu0 0
      %929 = vmatprep.subr.bf16.mxu0 0
      %930 = vmatpush1.bf16.msra.mxu0 0
      %931 = vmatprep.subr.bf16.mxu0 0
      %932 = vmatpush1.bf16.msra.mxu0 0
      %933 = vmatprep.subr.bf16.mxu0 0
      %934 = vmatpush1.bf16.msra.mxu0 0
      %935 = vmatprep.subr.bf16.mxu0 0
      %936 = vmatpush1.bf16.msra.mxu0 0
      %937 = vmatprep.subr.bf16.mxu0 0
      %938 = vmatpush1.bf16.msra.mxu0 0
      %939 = vmatprep.subr.bf16.mxu0 0
      %940 = vmatpush1.bf16.msra.mxu0 0
      %941 = vmatprep.subr.bf16.mxu0 0
      %942 = vmatpush1.bf16.msra.mxu0 0
      %943 = vmatprep.subr.bf16.mxu0 0
      %944 = vmatpush1.bf16.msra.mxu0 0
      %945 = vmatprep.subr.bf16.mxu0 0
      %946 = vmatpush1.bf16.msra.mxu0 0
      %947 = vmatprep.subr.bf16.mxu0 0
      %948 = vmatpush1.bf16.msra.mxu0 0
      %949 = vmatprep.subr.bf16.mxu0 0
      %950 = vmatpush1.bf16.msra.mxu0 0
      %951 = vmatprep.subr.bf16.mxu0 0
      %952 = vmatpush1.bf16.msra.mxu0 0
      %953 = vmatprep.subr.bf16.mxu0 0
      %954 = vmatpush1.bf16.msra.mxu0 0
      %955 = vmatprep.mubr.bf16.mxu0 0
      %956 = vmatmul.mubr.bf16.gmra.mrb[0].mxu0 %v918
      %v957 = vpop.f32.mrb[0].mxu0
      %v958 = vadd.f32 %v902, %v957
      %v959 = vpop.f32.mrb[0].mxu0
      %v960 = vpop.f32.mrb[0].mxu0
      %v961 = vadd.f32 %v902, %v960
      %v962 = vpop.f32.mrb[0].mxu0
      %963 = vmatprep.mubr.bf16.mxu0 0
      %964 = vmatmul.mubr.bf16.gmra.mrb[0].mxu0 %v921
      %v965 = vpop.f32.mrb[0].mxu0
      %v966 = vadd.f32 %v902, %v965
      %v967 = vpop.f32.mrb[0].mxu0
      %v968 = vpop.f32.mrb[0].mxu0
      %v969 = vadd.f32 %v902, %v968
      %v970 = vpop.f32.mrb[0].mxu0
      %971 = vdwg.mxu0
      %v972 = vld [vmem:[%s819] sm:$0xf]
      %v973 = vld [vmem:[%s819 + $0x4] sm:$0xf]
      %v974 = vld [vmem:[%s819 + $0x8] sm:$0xf]
      %v975 = vld [vmem:[%s819 + $0xc] sm:$0xf]
      %v976 = vld [vmem:[%s822] sm:$0x1]
      %v978 = vlaneseq
      %v979 = vshrl.u32 %v978, 7
      %v980 = vsub.s32 0, %v979
      %v981 = vrot.slane %v976, %v980
      %v987 = vunpack.c.l.b16 %v972
      %v988 = vunpack.c.l.b16 %v973
      %v989 = vunpack.c.l.b16 %v974
      %v990 = vunpack.c.l.b16 %v975
      %v991 = vpack.c.b16 %v988, %v987
      %v992 = vpack.c.b16 %v990, %v989
      %995 = vmatprep.subr.bf16.mxu0 0
      %996 = vmatpush1.bf16.msra.mxu0 %v991
      %997 = vmatprep.subr.bf16.mxu0 0
      %998 = vmatpush1.bf16.msra.mxu0 %v992
      %999 = vmatprep.subr.bf16.mxu0 0
      %1000 = vmatpush1.bf16.msra.mxu0 0
      %1001 = vmatprep.subr.bf16.mxu0 0
      %1002 = vmatpush1.bf16.msra.mxu0 0
      %1003 = vmatprep.subr.bf16.mxu0 0
      %1004 = vmatpush1.bf16.msra.mxu0 0
      %1005 = vmatprep.subr.bf16.mxu0 0
      %1006 = vmatpush1.bf16.msra.mxu0 0
      %1007 = vmatprep.subr.bf16.mxu0 0
      %1008 = vmatpush1.bf16.msra.mxu0 0
      %1009 = vmatprep.subr.bf16.mxu0 0
      %1010 = vmatpush1.bf16.msra.mxu0 0
      %1011 = vmatprep.subr.bf16.mxu0 0
      %1012 = vmatpush1.bf16.msra.mxu0 0
      %1013 = vmatprep.subr.bf16.mxu0 0
      %1014 = vmatpush1.bf16.msra.mxu0 0
      %1015 = vmatprep.subr.bf16.mxu0 0
      %1016 = vmatpush1.bf16.msra.mxu0 0
      %1017 = vmatprep.subr.bf16.mxu0 0
      %1018 = vmatpush1.bf16.msra.mxu0 0
      %1019 = vmatprep.subr.bf16.mxu0 0
      %1020 = vmatpush1.bf16.msra.mxu0 0
      %1021 = vmatprep.subr.bf16.mxu0 0
      %1022 = vmatpush1.bf16.msra.mxu0 0
      %1023 = vmatprep.subr.bf16.mxu0 0
      %1024 = vmatpush1.bf16.msra.mxu0 0
      %1025 = vmatprep.subr.bf16.mxu0 0
      %1026 = vmatpush1.bf16.msra.mxu0 0
      %1027 = vmatprep.mubr.bf16.mxu0 0
      %1028 = vmatmul.mubr.bf16.gmra.mrb[0].mxu0 %v918
      %v1029 = vpop.f32.mrb[0].mxu0
      %v1030 = vadd.f32 %v981, %v1029
      %v1031 = vpop.f32.mrb[0].mxu0
      %v1032 = vpop.f32.mrb[0].mxu0
      %v1033 = vadd.f32 %v981, %v1032
      %v1034 = vpop.f32.mrb[0].mxu0
      %1035 = vmatprep.mubr.bf16.mxu0 0
      %1036 = vmatmul.mubr.bf16.gmra.mrb[0].mxu0 %v921
      %v1037 = vpop.f32.mrb[0].mxu0
      %v1038 = vadd.f32 %v981, %v1037
      %v1039 = vpop.f32.mrb[0].mxu0
      %v1040 = vpop.f32.mrb[0].mxu0
      %v1041 = vadd.f32 %v981, %v1040
      %v1042 = vpop.f32.mrb[0].mxu0
      %1043 = vdwg.mxu0
      %v1044 = vld [vmem:[%s827] sm:$0xf]
      %v1045 = vld [vmem:[%s827 + $0x4] sm:$0xf]
      %v1046 = vld [vmem:[%s827 + $0x8] sm:$0xf]
      %v1047 = vld [vmem:[%s827 + $0xc] sm:$0xf]
      %v1048 = vld [vmem:[%s830] sm:$0x1]
      %v1050 = vlaneseq
      %v1051 = vshrl.u32 %v1050, 7
      %v1052 = vsub.s32 0, %v1051
      %v1053 = vrot.slane %v1048, %v1052
      %v1059 = vunpack.c.l.b16 %v1044
      %v1060 = vunpack.c.l.b16 %v1045
      %v1061 = vunpack.c.l.b16 %v1046
      %v1062 = vunpack.c.l.b16 %v1047
      %v1063 = vpack.c.b16 %v1060, %v1059
      %v1064 = vpack.c.b16 %v1062, %v1061
      %1067 = vmatprep.subr.bf16.mxu0 0
      %1068 = vmatpush1.bf16.msra.mxu0 %v1063
      %1069 = vmatprep.subr.bf16.mxu0 0
      %1070 = vmatpush1.bf16.msra.mxu0 %v1064
      %1071 = vmatprep.subr.bf16.mxu0 0
      %1072 = vmatpush1.bf16.msra.mxu0 0
      %1073 = vmatprep.subr.bf16.mxu0 0
      %1074 = vmatpush1.bf16.msra.mxu0 0
      %1075 = vmatprep.subr.bf16.mxu0 0
      %1076 = vmatpush1.bf16.msra.mxu0 0
      %1077 = vmatprep.subr.bf16.mxu0 0
      %1078 = vmatpush1.bf16.msra.mxu0 0
      %1079 = vmatprep.subr.bf16.mxu0 0
      %1080 = vmatpush1.bf16.msra.mxu0 0
      %1081 = vmatprep.subr.bf16.mxu0 0
      %1082 = vmatpush1.bf16.msra.mxu0 0
      %1083 = vmatprep.subr.bf16.mxu0 0
      %1084 = vmatpush1.bf16.msra.mxu0 0
      %1085 = vmatprep.subr.bf16.mxu0 0
      %1086 = vmatpush1.bf16.msra.mxu0 0
      %1087 = vmatprep.subr.bf16.mxu0 0
      %1088 = vmatpush1.bf16.msra.mxu0 0
      %1089 = vmatprep.subr.bf16.mxu0 0
      %1090 = vmatpush1.bf16.msra.mxu0 0
      %1091 = vmatprep.subr.bf16.mxu0 0
      %1092 = vmatpush1.bf16.msra.mxu0 0
      %1093 = vmatprep.subr.bf16.mxu0 0
      %1094 = vmatpush1.bf16.msra.mxu0 0
      %1095 = vmatprep.subr.bf16.mxu0 0
      %1096 = vmatpush1.bf16.msra.mxu0 0
      %1097 = vmatprep.subr.bf16.mxu0 0
      %1098 = vmatpush1.bf16.msra.mxu0 0
      %1099 = vmatprep.mubr.bf16.mxu0 0
      %1100 = vmatmul.mubr.bf16.gmra.mrb[0].mxu0 %v918
      %v1101 = vpop.f32.mrb[0].mxu0
      %v1102 = vadd.f32 %v1053, %v1101
      %v1103 = vpop.f32.mrb[0].mxu0
      %v1104 = vpop.f32.mrb[0].mxu0
      %v1105 = vadd.f32 %v1053, %v1104
      %v1106 = vpop.f32.mrb[0].mxu0
      %1107 = vmatprep.mubr.bf16.mxu0 0
      %1108 = vmatmul.mubr.bf16.gmra.mrb[0].mxu0 %v921
      %v1109 = vpop.f32.mrb[0].mxu0
      %v1110 = vadd.f32 %v1053, %v1109
      %v1111 = vpop.f32.mrb[0].mxu0
      %v1112 = vpop.f32.mrb[0].mxu0
      %v1113 = vadd.f32 %v1053, %v1112
      %v1114 = vpop.f32.mrb[0].mxu0
      %1115 = vdwg.mxu0
      %v1116 = vld [vmem:[%s805] sm:$0x1]
      %v1117 = vld [vmem:[%s805 + $0x1] sm:$0x1]
      %v1118 = vld [vmem:[%s835] sm:$0xf]
      %v1119 = vld [vmem:[%s835 + $0x4] sm:$0xf]
      %v1120 = vld [vmem:[%s835 + $0x8] sm:$0xf]
      %v1121 = vld [vmem:[%s835 + $0xc] sm:$0xf]
      %v1122 = vpack.c.bf16 %v961, %v958
      %v1123 = vpack.c.bf16 %v969, %v966
      %v1124 = vpack.c.bf16 %v1033, %v1030
      %v1125 = vpack.c.bf16 %v1041, %v1038
      %v1126 = vpack.c.bf16 %v1105, %v1102
      %v1127 = vpack.c.bf16 %v1113, %v1110
      %vm1128 = vcmask 130048
      %v1130 = vsel %vm1128, %v1122, 0
      %v1133 = vsel %vm1128, %v1124, 0
      %1135 = vmatprep.subr.bf16.mxu0 0
      %1136 = vmatpush1.bf16.xpose.msra.mxu0 %v1133
      %1137 = vmatprep.subr.bf16.mxu0 0
      %1138 = vmatpush1.bf16.xpose.msra.mxu0 0
      %1139 = vmatprep.subr.bf16.mxu0 0
      %1140 = vmatpush1.bf16.xpose.msra.mxu0 0
      %1141 = vmatprep.subr.bf16.mxu0 0
      %1142 = vmatpush1.bf16.xpose.msra.mxu0 0
      %1143 = vmatprep.subr.bf16.mxu0 0
      %1144 = vmatpush1.bf16.xpose.msra.mxu0 0
      %1145 = vmatprep.subr.bf16.mxu0 0
      %1146 = vmatpush1.bf16.xpose.msra.mxu0 0
      %1147 = vmatprep.subr.bf16.mxu0 0
      %1148 = vmatpush1.bf16.xpose.msra.mxu0 0
      %1149 = vmatprep.subr.bf16.mxu0 0
      %1150 = vmatpush1.bf16.xpose.msra.mxu0 0
      %1151 = vmatprep.subr.bf16.mxu0 0
      %1152 = vmatpush1.bf16.xpose.msra.mxu0 0
      %1153 = vmatprep.subr.bf16.mxu0 0
      %1154 = vmatpush1.bf16.xpose.msra.mxu0 0
      %1155 = vmatprep.subr.bf16.mxu0 0
      %1156 = vmatpush1.bf16.xpose.msra.mxu0 0
      %1157 = vmatprep.subr.bf16.mxu0 0
      %1158 = vmatpush1.bf16.xpose.msra.mxu0 0
      %1159 = vmatprep.subr.bf16.mxu0 0
      %1160 = vmatpush1.bf16.xpose.msra.mxu0 0
      %1161 = vmatprep.subr.bf16.mxu0 0
      %1162 = vmatpush1.bf16.xpose.msra.mxu0 0
      %1163 = vmatprep.subr.bf16.mxu0 0
      %1164 = vmatpush1.bf16.xpose.msra.mxu0 0
      %1165 = vmatprep.subr.bf16.mxu0 0
      %1166 = vmatpush1.bf16.xpose.msra.mxu0 0
      %1167 = vmatprep.mubr.bf16.mxu0 0
      %1168 = vmatmul.mubr.bf16.gmra.mrb[0].mxu0 %v1130
      %v1169 = vpop.f32.mrb[0].mxu0
      %v1170 = vadd.f32 0.0, %v1169
      %v1171 = vpop.f32.mrb[0].mxu0
      %v1172 = vpop.f32.mrb[0].mxu0
      %v1173 = vadd.f32 0.0, %v1172
      %v1174 = vpop.f32.mrb[0].mxu0
      %1175 = vdwg.mxu0
      %v1177 = vsel %vm1128, %v1123, 0
      %v1180 = vsel %vm1128, %v1125, 0
      %1182 = vmatprep.subr.bf16.mxu0 0
      %1183 = vmatpush1.bf16.xpose.msra.mxu0 %v1180
      %1184 = vmatprep.subr.bf16.mxu0 0
      %1185 = vmatpush1.bf16.xpose.msra.mxu0 0
      %1186 = vmatprep.subr.bf16.mxu0 0
      %1187 = vmatpush1.bf16.xpose.msra.mxu0 0
      %1188 = vmatprep.subr.bf16.mxu0 0
      %1189 = vmatpush1.bf16.xpose.msra.mxu0 0
      %1190 = vmatprep.subr.bf16.mxu0 0
      %1191 = vmatpush1.bf16.xpose.msra.mxu0 0
      %1192 = vmatprep.subr.bf16.mxu0 0
      %1193 = vmatpush1.bf16.xpose.msra.mxu0 0
      %1194 = vmatprep.subr.bf16.mxu0 0
      %1195 = vmatpush1.bf16.xpose.msra.mxu0 0
      %1196 = vmatprep.subr.bf16.mxu0 0
      %1197 = vmatpush1.bf16.xpose.msra.mxu0 0
      %1198 = vmatprep.subr.bf16.mxu0 0
      %1199 = vmatpush1.bf16.xpose.msra.mxu0 0
      %1200 = vmatprep.subr.bf16.mxu0 0
      %1201 = vmatpush1.bf16.xpose.msra.mxu0 0
      %1202 = vmatprep.subr.bf16.mxu0 0
      %1203 = vmatpush1.bf16.xpose.msra.mxu0 0
      %1204 = vmatprep.subr.bf16.mxu0 0
      %1205 = vmatpush1.bf16.xpose.msra.mxu0 0
      %1206 = vmatprep.subr.bf16.mxu0 0
      %1207 = vmatpush1.bf16.xpose.msra.mxu0 0
      %1208 = vmatprep.subr.bf16.mxu0 0
      %1209 = vmatpush1.bf16.xpose.msra.mxu0 0
      %1210 = vmatprep.subr.bf16.mxu0 0
      %1211 = vmatpush1.bf16.xpose.msra.mxu0 0
      %1212 = vmatprep.subr.bf16.mxu0 0
      %1213 = vmatpush1.bf16.xpose.msra.mxu0 0
      %1214 = vmatprep.mubr.bf16.mxu0 0
      %1215 = vmatmul.mubr.bf16.gmra.mrb[0].mxu0 %v1177
      %v1216 = vpop.f32.mrb[0].mxu0
      %v1217 = vadd.f32 0.0, %v1216
      %v1218 = vpop.f32.mrb[0].mxu0
      %v1219 = vpop.f32.mrb[0].mxu0
      %v1220 = vadd.f32 0.0, %v1219
      %v1221 = vpop.f32.mrb[0].mxu0
      %1222 = vdwg.mxu0
      %v1223 = vmul.f32 %v1170, 0.25
      %v1224 = vmul.f32 %v1173, 0.25
      %v1225 = vmul.f32 %v1217, 0.25
      %v1226 = vmul.f32 %v1220, 0.25
      %v1229 = vlaneseq
      %v1230 = vshrl.u32 %v1229, 7
      %v1231 = vsub.s32 0, %v1230
      %v1232 = vrot.slane %v1116, %v1231
      %v1233 = vlaneseq
      %v1234 = vshrl.u32 %v1233, 7
      %v1235 = vsub.s32 0, %v1234
      %v1236 = vrot.slane %v1117, %v1235
      %v1239 = vadd.f32 %v1223, %v1232
      %v1240 = vadd.f32 %v1224, %v1232
      %v1241 = vadd.f32 %v1225, %v1236
      %v1242 = vadd.f32 %v1226, %v1236
      %v1243 = vsel %vm1128, %v1239, -inf
      %1244 = vmax.xlane.f32.xlu0 %v1243
      %v1245 = vpop.xlane.xlu0 %1244
      %v1246 = vsel %vm1128, %v1240, -inf
      %1247 = vmax.xlane.f32.xlu0 %v1246
      %v1248 = vpop.xlane.xlu0 %1247
      %v1249 = vsel %vm1128, %v1241, -inf
      %1250 = vmax.xlane.f32.xlu0 %v1249
      %v1251 = vpop.xlane.xlu0 %1250
      %v1252 = vsel %vm1128, %v1242, -inf
      %1253 = vmax.xlane.f32.xlu0 %v1252
      %v1254 = vpop.xlane.xlu0 %1253
      %v1255 = vsub.f32 %v1239, %v1245
      %v1256 = vsub.f32 %v1240, %v1248
      %v1257 = vsub.f32 %v1241, %v1251
      %v1258 = vsub.f32 %v1242, %v1254
      %v1259 = vmul.f32 %v1255, 1.442695
      %v1260 = vpow.pop %v1259
      %v1261 = vmul.f32 %v1256, 1.442695
      %v1262 = vpow.pop %v1261
      %v1263 = vmul.f32 %v1257, 1.442695
      %v1264 = vpow.pop %v1263
      %v1265 = vmul.f32 %v1258, 1.442695
      %v1266 = vpow.pop %v1265
      %v1267 = vsel %vm1128, %v1260, 0.0
      %1268 = vadd.xlane.f32.xlu0 %v1267
      %v1269 = vpop.xlane.xlu0 %1268
      %v1270 = vsel %vm1128, %v1262, 0.0
      %1271 = vadd.xlane.f32.xlu0 %v1270
      %v1272 = vpop.xlane.xlu0 %1271
      %v1273 = vsel %vm1128, %v1264, 0.0
      %1274 = vadd.xlane.f32.xlu0 %v1273
      %v1275 = vpop.xlane.xlu0 %1274
      %v1276 = vsel %vm1128, %v1266, 0.0
      %1277 = vadd.xlane.f32.xlu0 %v1276
      %v1278 = vpop.xlane.xlu0 %1277
      %v1279 = vrcp.pop %v1269
      %v1280 = vrcp.pop %v1272
      %v1281 = vrcp.pop %v1275
      %v1282 = vrcp.pop %v1278
      %v1283 = vmul.f32 %v1260, %v1279
      %v1284 = vmul.f32 %v1262, %v1280
      %v1285 = vmul.f32 %v1264, %v1281
      %v1286 = vmul.f32 %v1266, %v1282
      %v1287 = vpack.c.bf16 %v1284, %v1283
      %v1288 = vpack.c.bf16 %v1286, %v1285
      %v1290 = vsel %vm1128, %v1287, 0
      %1292 = vmatprep.subr.bf16.mxu0 0
      %1293 = vmatpush1.bf16.msra.mxu0 %v1126
      %1294 = vmatprep.subr.bf16.mxu0 0
      %1295 = vmatpush1.bf16.msra.mxu0 0
      %1296 = vmatprep.subr.bf16.mxu0 0
      %1297 = vmatpush1.bf16.msra.mxu0 0
      %1298 = vmatprep.subr.bf16.mxu0 0
      %1299 = vmatpush1.bf16.msra.mxu0 0
      %1300 = vmatprep.subr.bf16.mxu0 0
      %1301 = vmatpush1.bf16.msra.mxu0 0
      %1302 = vmatprep.subr.bf16.mxu0 0
      %1303 = vmatpush1.bf16.msra.mxu0 0
      %1304 = vmatprep.subr.bf16.mxu0 0
      %1305 = vmatpush1.bf16.msra.mxu0 0
      %1306 = vmatprep.subr.bf16.mxu0 0
      %1307 = vmatpush1.bf16.msra.mxu0 0
      %1308 = vmatprep.subr.bf16.mxu0 0
      %1309 = vmatpush1.bf16.msra.mxu0 0
      %1310 = vmatprep.subr.bf16.mxu0 0
      %1311 = vmatpush1.bf16.msra.mxu0 0
      %1312 = vmatprep.subr.bf16.mxu0 0
      %1313 = vmatpush1.bf16.msra.mxu0 0
      %1314 = vmatprep.subr.bf16.mxu0 0
      %1315 = vmatpush1.bf16.msra.mxu0 0
      %1316 = vmatprep.subr.bf16.mxu0 0
      %1317 = vmatpush1.bf16.msra.mxu0 0
      %1318 = vmatprep.subr.bf16.mxu0 0
      %1319 = vmatpush1.bf16.msra.mxu0 0
      %1320 = vmatprep.subr.bf16.mxu0 0
      %1321 = vmatpush1.bf16.msra.mxu0 0
      %1322 = vmatprep.subr.bf16.mxu0 0
      %1323 = vmatpush1.bf16.msra.mxu0 0
      %1324 = vmatprep.mubr.bf16.mxu0 0
      %1325 = vmatmul.mubr.bf16.gmra.mrb[0].mxu0 %v1290
      %v1326 = vpop.f32.mrb[0].mxu0
      %v1327 = vadd.f32 0.0, %v1326
      %v1328 = vpop.f32.mrb[0].mxu0
      %v1329 = vpop.f32.mrb[0].mxu0
      %v1330 = vadd.f32 0.0, %v1329
      %v1331 = vpop.f32.mrb[0].mxu0
      %1332 = vdwg.mxu0
      %v1334 = vsel %vm1128, %v1288, 0
      %1336 = vmatprep.subr.bf16.mxu0 0
      %1337 = vmatpush1.bf16.msra.mxu0 %v1127
      %1338 = vmatprep.subr.bf16.mxu0 0
      %1339 = vmatpush1.bf16.msra.mxu0 0
      %1340 = vmatprep.subr.bf16.mxu0 0
      %1341 = vmatpush1.bf16.msra.mxu0 0
      %1342 = vmatprep.subr.bf16.mxu0 0
      %1343 = vmatpush1.bf16.msra.mxu0 0
      %1344 = vmatprep.subr.bf16.mxu0 0
      %1345 = vmatpush1.bf16.msra.mxu0 0
      %1346 = vmatprep.subr.bf16.mxu0 0
      %1347 = vmatpush1.bf16.msra.mxu0 0
      %1348 = vmatprep.subr.bf16.mxu0 0
      %1349 = vmatpush1.bf16.msra.mxu0 0
      %1350 = vmatprep.subr.bf16.mxu0 0
      %1351 = vmatpush1.bf16.msra.mxu0 0
      %1352 = vmatprep.subr.bf16.mxu0 0
      %1353 = vmatpush1.bf16.msra.mxu0 0
      %1354 = vmatprep.subr.bf16.mxu0 0
      %1355 = vmatpush1.bf16.msra.mxu0 0
      %1356 = vmatprep.subr.bf16.mxu0 0
      %1357 = vmatpush1.bf16.msra.mxu0 0
      %1358 = vmatprep.subr.bf16.mxu0 0
      %1359 = vmatpush1.bf16.msra.mxu0 0
      %1360 = vmatprep.subr.bf16.mxu0 0
      %1361 = vmatpush1.bf16.msra.mxu0 0
      %1362 = vmatprep.subr.bf16.mxu0 0
      %1363 = vmatpush1.bf16.msra.mxu0 0
      %1364 = vmatprep.subr.bf16.mxu0 0
      %1365 = vmatpush1.bf16.msra.mxu0 0
      %1366 = vmatprep.subr.bf16.mxu0 0
      %1367 = vmatpush1.bf16.msra.mxu0 0
      %1368 = vmatprep.mubr.bf16.mxu0 0
      %1369 = vmatmul.mubr.bf16.gmra.mrb[0].mxu0 %v1334
      %v1370 = vpop.f32.mrb[0].mxu0
      %v1371 = vadd.f32 0.0, %v1370
      %v1372 = vpop.f32.mrb[0].mxu0
      %v1373 = vpop.f32.mrb[0].mxu0
      %v1374 = vadd.f32 0.0, %v1373
      %v1375 = vpop.f32.mrb[0].mxu0
      %1376 = vdwg.mxu0
      %v1377 = vpack.c.bf16 %v1330, %v1327
      %v1378 = vpack.c.bf16 %v1374, %v1371
      %1380 = vrot.lane.b32.xlu0 %v1122, 112
      %v1381 = vpop.permute.xlu0 %1380
      %1383 = vrot.lane.b32.xlu0 %v1124, 112
      %v1384 = vpop.permute.xlu0 %1383
      %v1386 = vsel %vm1128, %v1381, 0
      %v1389 = vsel %vm1128, %v1384, 0
      %1391 = vmatprep.subr.bf16.mxu0 0
      %1392 = vmatpush1.bf16.xpose.msra.mxu0 %v1389
      %1393 = vmatprep.subr.bf16.mxu0 0
      %1394 = vmatpush1.bf16.xpose.msra.mxu0 0
      %1395 = vmatprep.subr.bf16.mxu0 0
      %1396 = vmatpush1.bf16.xpose.msra.mxu0 0
      %1397 = vmatprep.subr.bf16.mxu0 0
      %1398 = vmatpush1.bf16.xpose.msra.mxu0 0
      %1399 = vmatprep.subr.bf16.mxu0 0
      %1400 = vmatpush1.bf16.xpose.msra.mxu0 0
      %1401 = vmatprep.subr.bf16.mxu0 0
      %1402 = vmatpush1.bf16.xpose.msra.mxu0 0
      %1403 = vmatprep.subr.bf16.mxu0 0
      %1404 = vmatpush1.bf16.xpose.msra.mxu0 0
      %1405 = vmatprep.subr.bf16.mxu0 0
      %1406 = vmatpush1.bf16.xpose.msra.mxu0 0
      %1407 = vmatprep.subr.bf16.mxu0 0
      %1408 = vmatpush1.bf16.xpose.msra.mxu0 0
      %1409 = vmatprep.subr.bf16.mxu0 0
      %1410 = vmatpush1.bf16.xpose.msra.mxu0 0
      %1411 = vmatprep.subr.bf16.mxu0 0
      %1412 = vmatpush1.bf16.xpose.msra.mxu0 0
      %1413 = vmatprep.subr.bf16.mxu0 0
      %1414 = vmatpush1.bf16.xpose.msra.mxu0 0
      %1415 = vmatprep.subr.bf16.mxu0 0
      %1416 = vmatpush1.bf16.xpose.msra.mxu0 0
      %1417 = vmatprep.subr.bf16.mxu0 0
      %1418 = vmatpush1.bf16.xpose.msra.mxu0 0
      %1419 = vmatprep.subr.bf16.mxu0 0
      %1420 = vmatpush1.bf16.xpose.msra.mxu0 0
      %1421 = vmatprep.subr.bf16.mxu0 0
      %1422 = vmatpush1.bf16.xpose.msra.mxu0 0
      %1423 = vmatprep.mubr.bf16.mxu0 0
      %1424 = vmatmul.mubr.bf16.gmra.mrb[0].mxu0 %v1386
      %v1425 = vpop.f32.mrb[0].mxu0
      %v1426 = vadd.f32 0.0, %v1425
      %v1427 = vpop.f32.mrb[0].mxu0
      %v1428 = vpop.f32.mrb[0].mxu0
      %v1429 = vadd.f32 0.0, %v1428
      %v1430 = vpop.f32.mrb[0].mxu0
      %1431 = vdwg.mxu0
      %1433 = vrot.lane.b32.xlu0 %v1123, 112
      %v1434 = vpop.permute.xlu0 %1433
      %1436 = vrot.lane.b32.xlu0 %v1125, 112
      %v1437 = vpop.permute.xlu0 %1436
      %v1439 = vsel %vm1128, %v1434, 0
      %v1442 = vsel %vm1128, %v1437, 0
      %1444 = vmatprep.subr.bf16.mxu0 0
      %1445 = vmatpush1.bf16.xpose.msra.mxu0 %v1442
      %1446 = vmatprep.subr.bf16.mxu0 0
      %1447 = vmatpush1.bf16.xpose.msra.mxu0 0
      %1448 = vmatprep.subr.bf16.mxu0 0
      %1449 = vmatpush1.bf16.xpose.msra.mxu0 0
      %1450 = vmatprep.subr.bf16.mxu0 0
      %1451 = vmatpush1.bf16.xpose.msra.mxu0 0
      %1452 = vmatprep.subr.bf16.mxu0 0
      %1453 = vmatpush1.bf16.xpose.msra.mxu0 0
      %1454 = vmatprep.subr.bf16.mxu0 0
      %1455 = vmatpush1.bf16.xpose.msra.mxu0 0
      %1456 = vmatprep.subr.bf16.mxu0 0
      %1457 = vmatpush1.bf16.xpose.msra.mxu0 0
      %1458 = vmatprep.subr.bf16.mxu0 0
      %1459 = vmatpush1.bf16.xpose.msra.mxu0 0
      %1460 = vmatprep.subr.bf16.mxu0 0
      %1461 = vmatpush1.bf16.xpose.msra.mxu0 0
      %1462 = vmatprep.subr.bf16.mxu0 0
      %1463 = vmatpush1.bf16.xpose.msra.mxu0 0
      %1464 = vmatprep.subr.bf16.mxu0 0
      %1465 = vmatpush1.bf16.xpose.msra.mxu0 0
      %1466 = vmatprep.subr.bf16.mxu0 0
      %1467 = vmatpush1.bf16.xpose.msra.mxu0 0
      %1468 = vmatprep.subr.bf16.mxu0 0
      %1469 = vmatpush1.bf16.xpose.msra.mxu0 0
      %1470 = vmatprep.subr.bf16.mxu0 0
      %1471 = vmatpush1.bf16.xpose.msra.mxu0 0
      %1472 = vmatprep.subr.bf16.mxu0 0
      %1473 = vmatpush1.bf16.xpose.msra.mxu0 0
      %1474 = vmatprep.subr.bf16.mxu0 0
      %1475 = vmatpush1.bf16.xpose.msra.mxu0 0
      %1476 = vmatprep.mubr.bf16.mxu0 0
      %1477 = vmatmul.mubr.bf16.gmra.mrb[0].mxu0 %v1439
      %v1478 = vpop.f32.mrb[0].mxu0
      %v1479 = vadd.f32 0.0, %v1478
      %v1480 = vpop.f32.mrb[0].mxu0
      %v1481 = vpop.f32.mrb[0].mxu0
      %v1482 = vadd.f32 0.0, %v1481
      %v1483 = vpop.f32.mrb[0].mxu0
      %1484 = vdwg.mxu0
      %v1485 = vmul.f32 %v1426, 0.25
      %v1486 = vmul.f32 %v1429, 0.25
      %v1487 = vmul.f32 %v1479, 0.25
      %v1488 = vmul.f32 %v1482, 0.25
      %v1489 = vadd.f32 %v1485, %v1232
      %v1490 = vadd.f32 %v1486, %v1232
      %v1491 = vadd.f32 %v1487, %v1236
      %v1492 = vadd.f32 %v1488, %v1236
      %v1493 = vsel %vm1128, %v1489, -inf
      %1494 = vmax.xlane.f32.xlu0 %v1493
      %v1495 = vpop.xlane.xlu0 %1494
      %v1496 = vsel %vm1128, %v1490, -inf
      %1497 = vmax.xlane.f32.xlu0 %v1496
      %v1498 = vpop.xlane.xlu0 %1497
      %v1499 = vsel %vm1128, %v1491, -inf
      %1500 = vmax.xlane.f32.xlu0 %v1499
      %v1501 = vpop.xlane.xlu0 %1500
      %v1502 = vsel %vm1128, %v1492, -inf
      %1503 = vmax.xlane.f32.xlu0 %v1502
      %v1504 = vpop.xlane.xlu0 %1503
      %v1505 = vsub.f32 %v1489, %v1495
      %v1506 = vsub.f32 %v1490, %v1498
      %v1507 = vsub.f32 %v1491, %v1501
      %v1508 = vsub.f32 %v1492, %v1504
      %v1509 = vmul.f32 %v1505, 1.442695
      %v1510 = vpow.pop %v1509
      %v1511 = vmul.f32 %v1506, 1.442695
      %v1512 = vpow.pop %v1511
      %v1513 = vmul.f32 %v1507, 1.442695
      %v1514 = vpow.pop %v1513
      %v1515 = vmul.f32 %v1508, 1.442695
      %v1516 = vpow.pop %v1515
      %v1517 = vsel %vm1128, %v1510, 0.0
      %1518 = vadd.xlane.f32.xlu0 %v1517
      %v1519 = vpop.xlane.xlu0 %1518
      %v1520 = vsel %vm1128, %v1512, 0.0
      %1521 = vadd.xlane.f32.xlu0 %v1520
      %v1522 = vpop.xlane.xlu0 %1521
      %v1523 = vsel %vm1128, %v1514, 0.0
      %1524 = vadd.xlane.f32.xlu0 %v1523
      %v1525 = vpop.xlane.xlu0 %1524
      %v1526 = vsel %vm1128, %v1516, 0.0
      %1527 = vadd.xlane.f32.xlu0 %v1526
      %v1528 = vpop.xlane.xlu0 %1527
      %v1529 = vrcp.pop %v1519
      %v1530 = vrcp.pop %v1522
      %v1531 = vrcp.pop %v1525
      %v1532 = vrcp.pop %v1528
      %v1533 = vmul.f32 %v1510, %v1529
      %v1534 = vmul.f32 %v1512, %v1530
      %v1535 = vmul.f32 %v1514, %v1531
      %v1536 = vmul.f32 %v1516, %v1532
      %v1537 = vpack.c.bf16 %v1534, %v1533
      %v1538 = vpack.c.bf16 %v1536, %v1535
      %1540 = vrot.lane.b32.xlu0 %v1126, 112
      %v1541 = vpop.permute.xlu0 %1540
      %v1544 = vsel %vm1128, %v1537, 0
      %1546 = vmatprep.subr.bf16.mxu0 0
      %1547 = vmatpush1.bf16.msra.mxu0 %v1541
      %1548 = vmatprep.subr.bf16.mxu0 0
      %1549 = vmatpush1.bf16.msra.mxu0 0
      %1550 = vmatprep.subr.bf16.mxu0 0
      %1551 = vmatpush1.bf16.msra.mxu0 0
      %1552 = vmatprep.subr.bf16.mxu0 0
      %1553 = vmatpush1.bf16.msra.mxu0 0
      %1554 = vmatprep.subr.bf16.mxu0 0
      %1555 = vmatpush1.bf16.msra.mxu0 0
      %1556 = vmatprep.subr.bf16.mxu0 0
      %1557 = vmatpush1.bf16.msra.mxu0 0
      %1558 = vmatprep.subr.bf16.mxu0 0
      %1559 = vmatpush1.bf16.msra.mxu0 0
      %1560 = vmatprep.subr.bf16.mxu0 0
      %1561 = vmatpush1.bf16.msra.mxu0 0
      %1562 = vmatprep.subr.bf16.mxu0 0
      %1563 = vmatpush1.bf16.msra.mxu0 0
      %1564 = vmatprep.subr.bf16.mxu0 0
      %1565 = vmatpush1.bf16.msra.mxu0 0
      %1566 = vmatprep.subr.bf16.mxu0 0
      %1567 = vmatpush1.bf16.msra.mxu0 0
      %1568 = vmatprep.subr.bf16.mxu0 0
      %1569 = vmatpush1.bf16.msra.mxu0 0
      %1570 = vmatprep.subr.bf16.mxu0 0
      %1571 = vmatpush1.bf16.msra.mxu0 0
      %1572 = vmatprep.subr.bf16.mxu0 0
      %1573 = vmatpush1.bf16.msra.mxu0 0
      %1574 = vmatprep.subr.bf16.mxu0 0
      %1575 = vmatpush1.bf16.msra.mxu0 0
      %1576 = vmatprep.subr.bf16.mxu0 0
      %1577 = vmatpush1.bf16.msra.mxu0 0
      %1578 = vmatprep.mubr.bf16.mxu0 0
      %1579 = vmatmul.mubr.bf16.gmra.mrb[0].mxu0 %v1544
      %v1580 = vpop.f32.mrb[0].mxu0
      %v1581 = vadd.f32 0.0, %v1580
      %v1582 = vpop.f32.mrb[0].mxu0
      %v1583 = vpop.f32.mrb[0].mxu0
      %v1584 = vadd.f32 0.0, %v1583
      %v1585 = vpop.f32.mrb[0].mxu0
      %1586 = vdwg.mxu0
      %1588 = vrot.lane.b32.xlu0 %v1127, 112
      %v1589 = vpop.permute.xlu0 %1588
      %v1592 = vsel %vm1128, %v1538, 0
      %1594 = vmatprep.subr.bf16.mxu0 0
      %1595 = vmatpush1.bf16.msra.mxu0 %v1589
      %1596 = vmatprep.subr.bf16.mxu0 0
      %1597 = vmatpush1.bf16.msra.mxu0 0
      %1598 = vmatprep.subr.bf16.mxu0 0
      %1599 = vmatpush1.bf16.msra.mxu0 0
      %1600 = vmatprep.subr.bf16.mxu0 0
      %1601 = vmatpush1.bf16.msra.mxu0 0
      %1602 = vmatprep.subr.bf16.mxu0 0
      %1603 = vmatpush1.bf16.msra.mxu0 0
      %1604 = vmatprep.subr.bf16.mxu0 0
      %1605 = vmatpush1.bf16.msra.mxu0 0
      %1606 = vmatprep.subr.bf16.mxu0 0
      %1607 = vmatpush1.bf16.msra.mxu0 0
      %1608 = vmatprep.subr.bf16.mxu0 0
      %1609 = vmatpush1.bf16.msra.mxu0 0
      %1610 = vmatprep.subr.bf16.mxu0 0
      %1611 = vmatpush1.bf16.msra.mxu0 0
      %1612 = vmatprep.subr.bf16.mxu0 0
      %1613 = vmatpush1.bf16.msra.mxu0 0
      %1614 = vmatprep.subr.bf16.mxu0 0
      %1615 = vmatpush1.bf16.msra.mxu0 0
      %1616 = vmatprep.subr.bf16.mxu0 0
      %1617 = vmatpush1.bf16.msra.mxu0 0
      %1618 = vmatprep.subr.bf16.mxu0 0
      %1619 = vmatpush1.bf16.msra.mxu0 0
      %1620 = vmatprep.subr.bf16.mxu0 0
      %1621 = vmatpush1.bf16.msra.mxu0 0
      %1622 = vmatprep.subr.bf16.mxu0 0
      %1623 = vmatpush1.bf16.msra.mxu0 0
      %1624 = vmatprep.subr.bf16.mxu0 0
      %1625 = vmatpush1.bf16.msra.mxu0 0
      %1626 = vmatprep.mubr.bf16.mxu0 0
      %1627 = vmatmul.mubr.bf16.gmra.mrb[0].mxu0 %v1592
      %v1628 = vpop.f32.mrb[0].mxu0
      %v1629 = vadd.f32 0.0, %v1628
      %v1630 = vpop.f32.mrb[0].mxu0
      %v1631 = vpop.f32.mrb[0].mxu0
      %v1632 = vadd.f32 0.0, %v1631
      %v1633 = vpop.f32.mrb[0].mxu0
      %1634 = vdwg.mxu0
      %v1635 = vpack.c.bf16 %v1584, %v1581
      %v1636 = vpack.c.bf16 %v1632, %v1629
      %v1639 = vunpack.c.l.b16 %v1120
      %v1640 = vunpack.c.l.b16 %v1121
      %v1641 = vpack.c.b16 %v1640, %v1639
      %v1644 = vsel %vm1128, %v1635, 0
      %v1647 = vsel %vm1128, %v1636, 0
      %1649 = vmatprep.subr.bf16.mxu0 0
      %1650 = vmatpush1.bf16.msra.mxu0 %v1641
      %1651 = vmatprep.subr.bf16.mxu0 0
      %1652 = vmatpush1.bf16.msra.mxu0 0
      %1653 = vmatprep.subr.bf16.mxu0 0
      %1654 = vmatpush1.bf16.msra.mxu0 0
      %1655 = vmatprep.subr.bf16.mxu0 0
      %1656 = vmatpush1.bf16.msra.mxu0 0
      %1657 = vmatprep.subr.bf16.mxu0 0
      %1658 = vmatpush1.bf16.msra.mxu0 0
      %1659 = vmatprep.subr.bf16.mxu0 0
      %1660 = vmatpush1.bf16.msra.mxu0 0
      %1661 = vmatprep.subr.bf16.mxu0 0
      %1662 = vmatpush1.bf16.msra.mxu0 0
      %1663 = vmatprep.subr.bf16.mxu0 0
      %1664 = vmatpush1.bf16.msra.mxu0 0
      %1665 = vmatprep.subr.bf16.mxu0 0
      %1666 = vmatpush1.bf16.msra.mxu0 0
      %1667 = vmatprep.subr.bf16.mxu0 0
      %1668 = vmatpush1.bf16.msra.mxu0 0
      %1669 = vmatprep.subr.bf16.mxu0 0
      %1670 = vmatpush1.bf16.msra.mxu0 0
      %1671 = vmatprep.subr.bf16.mxu0 0
      %1672 = vmatpush1.bf16.msra.mxu0 0
      %1673 = vmatprep.subr.bf16.mxu0 0
      %1674 = vmatpush1.bf16.msra.mxu0 0
      %1675 = vmatprep.subr.bf16.mxu0 0
      %1676 = vmatpush1.bf16.msra.mxu0 0
      %1677 = vmatprep.subr.bf16.mxu0 0
      %1678 = vmatpush1.bf16.msra.mxu0 0
      %1679 = vmatprep.subr.bf16.mxu0 0
      %1680 = vmatpush1.bf16.msra.mxu0 0
      %1681 = vmatprep.mubr.bf16.mxu0 0
      %1682 = vmatmul.mubr.bf16.gmra.mrb[0].mxu0 %v1644
      %v1683 = vpop.f32.mrb[0].mxu0
      %v1684 = vadd.f32 0.0, %v1683
      %v1685 = vpop.f32.mrb[0].mxu0
      %v1686 = vpop.f32.mrb[0].mxu0
      %v1687 = vadd.f32 0.0, %v1686
      %v1688 = vpop.f32.mrb[0].mxu0
      %1689 = vmatprep.mubr.bf16.mxu0 0
      %1690 = vmatmul.mubr.bf16.gmra.mrb[0].mxu0 %v1647
      %v1691 = vpop.f32.mrb[0].mxu0
      %v1692 = vadd.f32 0.0, %v1691
      %v1693 = vpop.f32.mrb[0].mxu0
      %v1694 = vpop.f32.mrb[0].mxu0
      %v1695 = vadd.f32 0.0, %v1694
      %v1696 = vpop.f32.mrb[0].mxu0
      %1697 = vdwg.mxu0
      %v1700 = vunpack.c.l.b16 %v1118
      %v1701 = vunpack.c.l.b16 %v1119
      %v1702 = vpack.c.b16 %v1701, %v1700
      %v1705 = vsel %vm1128, %v1377, 0
      %v1708 = vsel %vm1128, %v1378, 0
      %1710 = vmatprep.subr.bf16.mxu0 0
      %1711 = vmatpush1.bf16.msra.mxu0 %v1702
      %1712 = vmatprep.subr.bf16.mxu0 0
      %1713 = vmatpush1.bf16.msra.mxu0 0
      %1714 = vmatprep.subr.bf16.mxu0 0
      %1715 = vmatpush1.bf16.msra.mxu0 0
      %1716 = vmatprep.subr.bf16.mxu0 0
      %1717 = vmatpush1.bf16.msra.mxu0 0
      %1718 = vmatprep.subr.bf16.mxu0 0
      %1719 = vmatpush1.bf16.msra.mxu0 0
      %1720 = vmatprep.subr.bf16.mxu0 0
      %1721 = vmatpush1.bf16.msra.mxu0 0
      %1722 = vmatprep.subr.bf16.mxu0 0
      %1723 = vmatpush1.bf16.msra.mxu0 0
      %1724 = vmatprep.subr.bf16.mxu0 0
      %1725 = vmatpush1.bf16.msra.mxu0 0
      %1726 = vmatprep.subr.bf16.mxu0 0
      %1727 = vmatpush1.bf16.msra.mxu0 0
      %1728 = vmatprep.subr.bf16.mxu0 0
      %1729 = vmatpush1.bf16.msra.mxu0 0
      %1730 = vmatprep.subr.bf16.mxu0 0
      %1731 = vmatpush1.bf16.msra.mxu0 0
      %1732 = vmatprep.subr.bf16.mxu0 0
      %1733 = vmatpush1.bf16.msra.mxu0 0
      %1734 = vmatprep.subr.bf16.mxu0 0
      %1735 = vmatpush1.bf16.msra.mxu0 0
      %1736 = vmatprep.subr.bf16.mxu0 0
      %1737 = vmatpush1.bf16.msra.mxu0 0
      %1738 = vmatprep.subr.bf16.mxu0 0
      %1739 = vmatpush1.bf16.msra.mxu0 0
      %1740 = vmatprep.subr.bf16.mxu0 0
      %1741 = vmatpush1.bf16.msra.mxu0 0
      %1742 = vmatprep.mubr.bf16.mxu0 0
      %1743 = vmatmul.mubr.bf16.gmra.mrb[0].mxu0 %v1705
      %v1744 = vpop.f32.mrb[0].mxu0
      %v1745 = vadd.f32 %v1684, %v1744
      %v1746 = vpop.f32.mrb[0].mxu0
      %v1747 = vpop.f32.mrb[0].mxu0
      %v1748 = vadd.f32 %v1687, %v1747
      %v1749 = vpop.f32.mrb[0].mxu0
      %1750 = vmatprep.mubr.bf16.mxu0 0
      %1751 = vmatmul.mubr.bf16.gmra.mrb[0].mxu0 %v1708
      %v1752 = vpop.f32.mrb[0].mxu0
      %v1753 = vadd.f32 %v1692, %v1752
      %v1754 = vpop.f32.mrb[0].mxu0
      %v1755 = vpop.f32.mrb[0].mxu0
      %v1756 = vadd.f32 %v1695, %v1755
      %v1757 = vpop.f32.mrb[0].mxu0
      %1758 = vdwg.mxu0
      %v1759 = vld [vmem:[%s838] sm:$0x1]
      %v1761 = vlaneseq
      %v1762 = vshrl.u32 %v1761, 7
      %v1763 = vsub.s32 0, %v1762
      %v1764 = vrot.slane %v1759, %v1763
      %v1766 = vadd.f32 %v1745, %v1764
      %v1767 = vadd.f32 %v1748, %v1764
      %v1768 = vadd.f32 %v1753, %v1764
      %v1769 = vadd.f32 %v1756, %v1764
      %v1770 = vadd.f32 %v1766, %v887
      %v1771 = vadd.f32 %v1767, %v888
      %v1772 = vadd.f32 %v1768, %v889
      %v1773 = vadd.f32 %v1769, %v890
      %v1774 = vld [vmem:[%s841] sm:$0x1]
      %v1775 = vld [vmem:[%s844] sm:$0x1]
      %v1776 = vsel %vm916, %v1770, 0.0
      %1777 = vadd.xlane.f32.xlu0 %v1776
      %v1778 = vpop.xlane.xlu0 %1777
      %v1779 = vsel %vm916, %v1771, 0.0
      %1780 = vadd.xlane.f32.xlu0 %v1779
      %v1781 = vpop.xlane.xlu0 %1780
      %v1782 = vsel %vm916, %v1772, 0.0
      %1783 = vadd.xlane.f32.xlu0 %v1782
      %v1784 = vpop.xlane.xlu0 %1783
      %v1785 = vsel %vm916, %v1773, 0.0
      %1786 = vadd.xlane.f32.xlu0 %v1785
      %v1787 = vpop.xlane.xlu0 %1786
      %v1788 = vrcp.pop 32.0
      %v1789 = vmul.f32 %v1778, %v1788
      %v1790 = vmul.f32 %v1781, %v1788
      %v1791 = vmul.f32 %v1784, %v1788
      %v1792 = vmul.f32 %v1787, %v1788
      %v1793 = vsub.f32 %v1770, %v1789
      %v1794 = vsub.f32 %v1771, %v1790
      %v1795 = vsub.f32 %v1772, %v1791
      %v1796 = vsub.f32 %v1773, %v1792
      %v1797 = vmul.f32 %v1793, %v1793
      %v1798 = vmul.f32 %v1794, %v1794
      %v1799 = vmul.f32 %v1795, %v1795
      %v1800 = vmul.f32 %v1796, %v1796
      %v1801 = vsel %vm916, %v1797, 0.0
      %1802 = vadd.xlane.f32.xlu0 %v1801
      %v1803 = vpop.xlane.xlu0 %1802
      %v1804 = vsel %vm916, %v1798, 0.0
      %1805 = vadd.xlane.f32.xlu0 %v1804
      %v1806 = vpop.xlane.xlu0 %1805
      %v1807 = vsel %vm916, %v1799, 0.0
      %1808 = vadd.xlane.f32.xlu0 %v1807
      %v1809 = vpop.xlane.xlu0 %1808
      %v1810 = vsel %vm916, %v1800, 0.0
      %1811 = vadd.xlane.f32.xlu0 %v1810
      %v1812 = vpop.xlane.xlu0 %1811
      %v1813 = vmul.f32 %v1803, %v1788
      %v1814 = vmul.f32 %v1806, %v1788
      %v1815 = vmul.f32 %v1809, %v1788
      %v1816 = vmul.f32 %v1812, %v1788
      %v1817 = vadd.f32 %v1813, 1e-12
      %v1818 = vadd.f32 %v1814, 1e-12
      %v1819 = vadd.f32 %v1815, 1e-12
      %v1820 = vadd.f32 %v1816, 1e-12
      %v1821 = vrsqrt.pop %v1817
      %v1822 = vrsqrt.pop %v1818
      %v1823 = vrsqrt.pop %v1819
      %v1824 = vrsqrt.pop %v1820
      %v1825 = vmul.f32 %v1793, %v1821
      %v1826 = vmul.f32 %v1794, %v1822
      %v1827 = vmul.f32 %v1795, %v1823
      %v1828 = vmul.f32 %v1796, %v1824
      %v1830 = vlaneseq
      %v1831 = vshrl.u32 %v1830, 7
      %v1832 = vsub.s32 0, %v1831
      %v1833 = vrot.slane %v1774, %v1832
      %v1835 = vmul.f32 %v1825, %v1833
      %v1836 = vmul.f32 %v1826, %v1833
      %v1837 = vmul.f32 %v1827, %v1833
      %v1838 = vmul.f32 %v1828, %v1833
      %v1840 = vlaneseq
      %v1841 = vshrl.u32 %v1840, 7
      %v1842 = vsub.s32 0, %v1841
      %v1843 = vrot.slane %v1775, %v1842
      %v1845 = vadd.f32 %v1835, %v1843
      %v1846 = vadd.f32 %v1836, %v1843
      %v1847 = vadd.f32 %v1837, %v1843
      %v1848 = vadd.f32 %v1838, %v1843
      %v1849 = vpack.c.bf16 %v1846, %v1845
      %v1850 = vpack.c.bf16 %v1848, %v1847
      %v1851 = vld [vmem:[%s849] sm:$0xf]
      %v1852 = vld [vmem:[%s849 + $0x4] sm:$0xf]
      %v1853 = vld [vmem:[%s849 + $0x8] sm:$0xf]
      %v1854 = vld [vmem:[%s849 + $0xc] sm:$0xf]
      %v1855 = vld [vmem:[%s852] sm:$0x1]
      %v1857 = vlaneseq
      %v1858 = vshrl.u32 %v1857, 7
      %v1859 = vsub.s32 0, %v1858
      %v1860 = vrot.slane %v1855, %v1859
      %v1866 = vunpack.c.l.b16 %v1851
      %v1867 = vunpack.c.l.b16 %v1852
      %v1868 = vunpack.c.l.b16 %v1853
      %v1869 = vunpack.c.l.b16 %v1854
      %v1870 = vpack.c.b16 %v1867, %v1866
      %v1871 = vpack.c.b16 %v1869, %v1868
      %v1875 = vsel %vm916, %v1849, 0
      %v1878 = vsel %vm916, %v1850, 0
      %1880 = vmatprep.subr.bf16.mxu0 0
      %1881 = vmatpush1.bf16.msra.mxu0 %v1870
      %1882 = vmatprep.subr.bf16.mxu0 0
      %1883 = vmatpush1.bf16.msra.mxu0 %v1871
      %1884 = vmatprep.subr.bf16.mxu0 0
      %1885 = vmatpush1.bf16.msra.mxu0 0
      %1886 = vmatprep.subr.bf16.mxu0 0
      %1887 = vmatpush1.bf16.msra.mxu0 0
      %1888 = vmatprep.subr.bf16.mxu0 0
      %1889 = vmatpush1.bf16.msra.mxu0 0
      %1890 = vmatprep.subr.bf16.mxu0 0
      %1891 = vmatpush1.bf16.msra.mxu0 0
      %1892 = vmatprep.subr.bf16.mxu0 0
      %1893 = vmatpush1.bf16.msra.mxu0 0
      %1894 = vmatprep.subr.bf16.mxu0 0
      %1895 = vmatpush1.bf16.msra.mxu0 0
      %1896 = vmatprep.subr.bf16.mxu0 0
      %1897 = vmatpush1.bf16.msra.mxu0 0
      %1898 = vmatprep.subr.bf16.mxu0 0
      %1899 = vmatpush1.bf16.msra.mxu0 0
      %1900 = vmatprep.subr.bf16.mxu0 0
      %1901 = vmatpush1.bf16.msra.mxu0 0
      %1902 = vmatprep.subr.bf16.mxu0 0
      %1903 = vmatpush1.bf16.msra.mxu0 0
      %1904 = vmatprep.subr.bf16.mxu0 0
      %1905 = vmatpush1.bf16.msra.mxu0 0
      %1906 = vmatprep.subr.bf16.mxu0 0
      %1907 = vmatpush1.bf16.msra.mxu0 0
      %1908 = vmatprep.subr.bf16.mxu0 0
      %1909 = vmatpush1.bf16.msra.mxu0 0
      %1910 = vmatprep.subr.bf16.mxu0 0
      %1911 = vmatpush1.bf16.msra.mxu0 0
      %1912 = vmatprep.mubr.bf16.mxu0 0
      %1913 = vmatmul.mubr.bf16.gmra.mrb[0].mxu0 %v1875
      %v1914 = vpop.f32.mrb[0].mxu0
      %v1915 = vadd.f32 %v1860, %v1914
      %v1916 = vpop.f32.mrb[0].mxu0
      %v1917 = vpop.f32.mrb[0].mxu0
      %v1918 = vadd.f32 %v1860, %v1917
      %v1919 = vpop.f32.mrb[0].mxu0
      %1920 = vmatprep.mubr.bf16.mxu0 0
      %1921 = vmatmul.mubr.bf16.gmra.mrb[0].mxu0 %v1878
      %v1922 = vpop.f32.mrb[0].mxu0
      %v1923 = vadd.f32 %v1860, %v1922
      %v1924 = vpop.f32.mrb[0].mxu0
      %v1925 = vpop.f32.mrb[0].mxu0
      %v1926 = vadd.f32 %v1860, %v1925
      %v1927 = vpop.f32.mrb[0].mxu0
      %1928 = vdwg.mxu0
      %v1929 = vmul.f32 %v1915, 0.5
      %v1930 = vmul.f32 %v1918, 0.5
      %v1931 = vmul.f32 %v1923, 0.5
      %v1932 = vmul.f32 %v1926, 0.5
      %v1933 = vmul.f32 %v1915, 0.044715
      %v1934 = vmul.f32 %v1918, 0.044715
      %v1935 = vmul.f32 %v1923, 0.044715
      %v1936 = vmul.f32 %v1926, 0.044715
      %v1937 = vmul.f32 %v1933, %v1915
      %v1938 = vmul.f32 %v1934, %v1918
      %v1939 = vmul.f32 %v1935, %v1923
      %v1940 = vmul.f32 %v1936, %v1926
      %v1941 = vmul.f32 %v1937, %v1915
      %v1942 = vmul.f32 %v1938, %v1918
      %v1943 = vmul.f32 %v1939, %v1923
      %v1944 = vmul.f32 %v1940, %v1926
      %v1945 = vadd.f32 %v1915, %v1941
      %v1946 = vadd.f32 %v1918, %v1942
      %v1947 = vadd.f32 %v1923, %v1943
      %v1948 = vadd.f32 %v1926, %v1944
      %v1949 = vmul.f32 %v1945, 0.7978846
      %v1950 = vmul.f32 %v1946, 0.7978846
      %v1951 = vmul.f32 %v1947, 0.7978846
      %v1952 = vmul.f32 %v1948, 0.7978846
      %v1953 = vtanh.pop %v1949
      %v1954 = vtanh.pop %v1950
      %v1955 = vtanh.pop %v1951
      %v1956 = vtanh.pop %v1952
      %v1957 = vadd.f32 %v1953, 1.0
      %v1958 = vadd.f32 %v1954, 1.0
      %v1959 = vadd.f32 %v1955, 1.0
      %v1960 = vadd.f32 %v1956, 1.0
      %v1961 = vmul.f32 %v1929, %v1957
      %v1962 = vmul.f32 %v1930, %v1958
      %v1963 = vmul.f32 %v1931, %v1959
      %v1964 = vmul.f32 %v1932, %v1960
      %v1965 = vpack.c.bf16 %v1962, %v1961
      %v1966 = vpack.c.bf16 %v1964, %v1963
      %v1967 = vld [vmem:[%s857] sm:$0xf]
      %v1968 = vld [vmem:[%s857 + $0x4] sm:$0xf]
      %v1969 = vld [vmem:[%s857 + $0x8] sm:$0xf]
      %v1970 = vld [vmem:[%s857 + $0xc] sm:$0xf]
      %v1971 = vld [vmem:[%s857 + $0x10] sm:$0xf]
      %v1972 = vld [vmem:[%s857 + $0x14] sm:$0xf]
      %v1973 = vld [vmem:[%s857 + $0x18] sm:$0xf]
      %v1974 = vld [vmem:[%s857 + $0x1c] sm:$0xf]
      %v1975 = vld [vmem:[%s857 + $0x20] sm:$0xf]
      %v1976 = vld [vmem:[%s857 + $0x24] sm:$0xf]
      %v1977 = vld [vmem:[%s857 + $0x28] sm:$0xf]
      %v1978 = vld [vmem:[%s857 + $0x2c] sm:$0xf]
      %v1979 = vld [vmem:[%s857 + $0x30] sm:$0xf]
      %v1980 = vld [vmem:[%s857 + $0x34] sm:$0xf]
      %v1981 = vld [vmem:[%s857 + $0x38] sm:$0xf]
      %v1982 = vld [vmem:[%s857 + $0x3c] sm:$0xf]
      %v1983 = vld [vmem:[%s860] sm:$0x1]
      %v1985 = vlaneseq
      %v1986 = vshrl.u32 %v1985, 7
      %v1987 = vsub.s32 0, %v1986
      %v1988 = vrot.slane %v1983, %v1987
      %v2006 = vunpack.c.l.b16 %v1967
      %v2007 = vunpack.c.l.b16 %v1968
      %v2008 = vunpack.c.l.b16 %v1969
      %v2009 = vunpack.c.l.b16 %v1970
      %v2010 = vunpack.c.l.b16 %v1971
      %v2011 = vunpack.c.l.b16 %v1972
      %v2012 = vunpack.c.l.b16 %v1973
      %v2013 = vunpack.c.l.b16 %v1974
      %v2014 = vunpack.c.l.b16 %v1975
      %v2015 = vunpack.c.l.b16 %v1976
      %v2016 = vunpack.c.l.b16 %v1977
      %v2017 = vunpack.c.l.b16 %v1978
      %v2018 = vunpack.c.l.b16 %v1979
      %v2019 = vunpack.c.l.b16 %v1980
      %v2020 = vunpack.c.l.b16 %v1981
      %v2021 = vunpack.c.l.b16 %v1982
      %v2022 = vpack.c.b16 %v2007, %v2006
      %v2023 = vpack.c.b16 %v2009, %v2008
      %v2024 = vpack.c.b16 %v2011, %v2010
      %v2025 = vpack.c.b16 %v2013, %v2012
      %v2026 = vpack.c.b16 %v2015, %v2014
      %v2027 = vpack.c.b16 %v2017, %v2016
      %v2028 = vpack.c.b16 %v2019, %v2018
      %v2029 = vpack.c.b16 %v2021, %v2020
      %2038 = vmatprep.subr.bf16.mxu0 0
      %2039 = vmatpush1.bf16.msra.mxu0 %v2022
      %2040 = vmatprep.subr.bf16.mxu0 0
      %2041 = vmatpush1.bf16.msra.mxu0 %v2023
      %2042 = vmatprep.subr.bf16.mxu0 0
      %2043 = vmatpush1.bf16.msra.mxu0 %v2024
      %2044 = vmatprep.subr.bf16.mxu0 0
      %2045 = vmatpush1.bf16.msra.mxu0 %v2025
      %2046 = vmatprep.subr.bf16.mxu0 0
      %2047 = vmatpush1.bf16.msra.mxu0 %v2026
      %2048 = vmatprep.subr.bf16.mxu0 0
      %2049 = vmatpush1.bf16.msra.mxu0 %v2027
      %2050 = vmatprep.subr.bf16.mxu0 0
      %2051 = vmatpush1.bf16.msra.mxu0 %v2028
      %2052 = vmatprep.subr.bf16.mxu0 0
      %2053 = vmatpush1.bf16.msra.mxu0 %v2029
      %2054 = vmatprep.subr.bf16.mxu0 0
      %2055 = vmatpush1.bf16.msra.mxu0 0
      %2056 = vmatprep.subr.bf16.mxu0 0
      %2057 = vmatpush1.bf16.msra.mxu0 0
      %2058 = vmatprep.subr.bf16.mxu0 0
      %2059 = vmatpush1.bf16.msra.mxu0 0
      %2060 = vmatprep.subr.bf16.mxu0 0
      %2061 = vmatpush1.bf16.msra.mxu0 0
      %2062 = vmatprep.subr.bf16.mxu0 0
      %2063 = vmatpush1.bf16.msra.mxu0 0
      %2064 = vmatprep.subr.bf16.mxu0 0
      %2065 = vmatpush1.bf16.msra.mxu0 0
      %2066 = vmatprep.subr.bf16.mxu0 0
      %2067 = vmatpush1.bf16.msra.mxu0 0
      %2068 = vmatprep.subr.bf16.mxu0 0
      %2069 = vmatpush1.bf16.msra.mxu0 0
      %2070 = vmatprep.mubr.bf16.mxu0 0
      %2071 = vmatmul.mubr.bf16.gmra.mrb[0].mxu0 %v1965
      %v2072 = vpop.f32.mrb[0].mxu0
      %v2073 = vadd.f32 %v1988, %v2072
      %v2074 = vpop.f32.mrb[0].mxu0
      %v2075 = vpop.f32.mrb[0].mxu0
      %v2076 = vadd.f32 %v1988, %v2075
      %v2077 = vpop.f32.mrb[0].mxu0
      %2078 = vmatprep.mubr.bf16.mxu0 0
      %2079 = vmatmul.mubr.bf16.gmra.mrb[0].mxu0 %v1966
      %v2080 = vpop.f32.mrb[0].mxu0
      %v2081 = vadd.f32 %v1988, %v2080
      %v2082 = vpop.f32.mrb[0].mxu0
      %v2083 = vpop.f32.mrb[0].mxu0
      %v2084 = vadd.f32 %v1988, %v2083
      %v2085 = vpop.f32.mrb[0].mxu0
      %2086 = vdwg.mxu0
      %v2087 = vadd.f32 %v2073, %v1845
      %v2088 = vadd.f32 %v2076, %v1846
      %v2089 = vadd.f32 %v2081, %v1847
      %v2090 = vadd.f32 %v2084, %v1848
      %v2091 = vld [vmem:[%s863] sm:$0x1]
      %v2092 = vld [vmem:[%s866] sm:$0x1]
      %v2093 = vsel %vm916, %v2087, 0.0
      %2094 = vadd.xlane.f32.xlu0 %v2093
      %v2095 = vpop.xlane.xlu0 %2094
      %v2096 = vsel %vm916, %v2088, 0.0
      %2097 = vadd.xlane.f32.xlu0 %v2096
      %v2098 = vpop.xlane.xlu0 %2097
      %v2099 = vsel %vm916, %v2089, 0.0
      %2100 = vadd.xlane.f32.xlu0 %v2099
      %v2101 = vpop.xlane.xlu0 %2100
      %v2102 = vsel %vm916, %v2090, 0.0
      %2103 = vadd.xlane.f32.xlu0 %v2102
      %v2104 = vpop.xlane.xlu0 %2103
      %v2105 = vmul.f32 %v2095, %v1788
      %v2106 = vmul.f32 %v2098, %v1788
      %v2107 = vmul.f32 %v2101, %v1788
      %v2108 = vmul.f32 %v2104, %v1788
      %v2109 = vsub.f32 %v2087, %v2105
      %v2110 = vsub.f32 %v2088, %v2106
      %v2111 = vsub.f32 %v2089, %v2107
      %v2112 = vsub.f32 %v2090, %v2108
      %v2113 = vmul.f32 %v2109, %v2109
      %v2114 = vmul.f32 %v2110, %v2110
      %v2115 = vmul.f32 %v2111, %v2111
      %v2116 = vmul.f32 %v2112, %v2112
      %v2117 = vsel %vm916, %v2113, 0.0
      %2118 = vadd.xlane.f32.xlu0 %v2117
      %v2119 = vpop.xlane.xlu0 %2118
      %v2120 = vsel %vm916, %v2114, 0.0
      %2121 = vadd.xlane.f32.xlu0 %v2120
      %v2122 = vpop.xlane.xlu0 %2121
      %v2123 = vsel %vm916, %v2115, 0.0
      %2124 = vadd.xlane.f32.xlu0 %v2123
      %v2125 = vpop.xlane.xlu0 %2124
      %v2126 = vsel %vm916, %v2116, 0.0
      %2127 = vadd.xlane.f32.xlu0 %v2126
      %v2128 = vpop.xlane.xlu0 %2127
      %v2129 = vmul.f32 %v2119, %v1788
      %v2130 = vmul.f32 %v2122, %v1788
      %v2131 = vmul.f32 %v2125, %v1788
      %v2132 = vmul.f32 %v2128, %v1788
      %v2133 = vadd.f32 %v2129, 1e-12
      %v2134 = vadd.f32 %v2130, 1e-12
      %v2135 = vadd.f32 %v2131, 1e-12
      %v2136 = vadd.f32 %v2132, 1e-12
      %v2137 = vrsqrt.pop %v2133
      %v2138 = vrsqrt.pop %v2134
      %v2139 = vrsqrt.pop %v2135
      %v2140 = vrsqrt.pop %v2136
      %v2141 = vmul.f32 %v2109, %v2137
      %v2142 = vmul.f32 %v2110, %v2138
      %v2143 = vmul.f32 %v2111, %v2139
      %v2144 = vmul.f32 %v2112, %v2140
      %v2146 = vlaneseq
      %v2147 = vshrl.u32 %v2146, 7
      %v2148 = vsub.s32 0, %v2147
      %v2149 = vrot.slane %v2091, %v2148
      %v2151 = vmul.f32 %v2141, %v2149
      %v2152 = vmul.f32 %v2142, %v2149
      %v2153 = vmul.f32 %v2143, %v2149
      %v2154 = vmul.f32 %v2144, %v2149
      %v2156 = vlaneseq
      %v2157 = vshrl.u32 %v2156, 7
      %v2158 = vsub.s32 0, %v2157
      %v2159 = vrot.slane %v2092, %v2158
      %v2161 = vadd.f32 %v2151, %v2159
      %v2162 = vadd.f32 %v2152, %v2159
      %v2163 = vadd.f32 %v2153, %v2159
      %v2164 = vadd.f32 %v2154, %v2159
      %2165 = vst.msk [vmem:[#allocation2] sm:$0xff] %vm916, %v2161
      %2166 = vst.msk [vmem:[#allocation2 + $0x8] sm:$0xff] %vm916, %v2162
      %2167 = vst.msk [vmem:[#allocation2 + $0x10] sm:$0xff] %vm916, %v2163
      %2168 = vst.msk [vmem:[#allocation2 + $0x18] sm:$0xff] %vm916, %v2164
      %p2169 = scmp.eq.s32.totalorder %s34, 1
      // Predicated region
      $region97: #{tc4rec_forward.2} parent=91 // pred_check
        %p2170 = pneg %p2169
      $region98: #{tc4rec_forward.2} parent=91 // pred_check_branch
        %2172 = sbr.rel (%p2170) target = $region100
      $region99: #{tc4rec_forward.2} parent=91 // pred_region
        %2173 = vst.msk [vmem:[%s871] sm:$0xff] %vm916, %v2162
        %2174 = vst.msk [vmem:[%s871 + $0x8] sm:$0xff] %vm916, %v2164
      $region100: #{tc4rec_forward.2} parent=91 // pred_fallthru
        _
      %s2175 = smul.u32 2, %s33
      %p2176 = scmp.lt.s32.totalorder %s2175, 1
      %s2177 = scalar_select %p2176, %s2175, 1
      %s2178 = smul.addr %s2177, 8
      %s2179 = scalar_lea.vmem %s18, %s2178
      // Predicated region
      $region101: #{tc4rec_forward.2} parent=91 // pred_check
        %p2180 = pneg %p527
      $region102: #{tc4rec_forward.2} parent=91 // pred_check_branch
        %2182 = sbr.rel (%p2180) target = $region104
      $region103: #{tc4rec_forward.2} parent=91 // pred_region
        %s2183 = smul.u32 2, %s33
      $region104: #{tc4rec_forward.2} parent=91 // pred_fallthru
        _
      // Predicated region
      $region105: #{tc4rec_forward.2} parent=91 // pred_check
        %p2184 = pneg %p527
      $region106: #{tc4rec_forward.2} parent=91 // pred_check_branch
        %2186 = sbr.rel (%p2184) target = $region108
      $region107: #{tc4rec_forward.2} parent=91 // pred_region
        %s2187 = smul.u32 2, %s33
        %p2188 = scmp.lt.s32.totalorder %s2187, 1
        %s2189 = scalar_select %p2188, %s2187, 1
        %s2190 = smul.addr %s2189, 8
        %s2191 = scalar_lea.vmem %s18, %s2190
      $region108: #{tc4rec_forward.2} parent=91 // pred_fallthru
        _
    $region92: #{tc4rec_forward.2} parent=5 // pred_fallthru
      _
    %p2192 = scmp.le.s32.totalorder 2, %s24
    // Predicated region
    $region109: #{tc4rec_forward.2} parent=5 // pred_check
      %p2193 = pneg %p2192
    $region110: #{tc4rec_forward.2} parent=5 // pred_check_branch
      %2195 = sbr.rel (%p2193) target = $region112
    $region111: #{tc4rec_forward.2} parent=5 // pred_region
      %s2196 = ssub.s32 %s24, 2
    $region112: #{tc4rec_forward.2} parent=5 // pred_fallthru
      _
  $region6: #{tc4rec_forward.2} parent=0 // loop_footer
    %s28 = sadd.s32 1, %s24
  $region7: #{tc4rec_forward.2} parent=0 // loop_footer_branch
    %23 = sbr.rel target = $region3
  $region8: #{tc4rec_forward.2} parent=0 // loop_exit
    _

</llo_original>
